<compile_context>
chip_gen: v6e
topology: v6e:2x2x1
jax: 0.10.0
libtpu: 0.0.40
codegen_flags: <defaults>
</compile_context>

<pallas_src>
import functools

import jax
import jax.numpy as jnp
from jax.experimental import pallas as pl
from jax.experimental.pallas import tpu as pltpu

_LANE = 128
_TN = 256               # batch-row tile for the large-batch (tiled) path
_FUSED_MAX_ROWS = 2048  # whole-batch fused path while activations fit VMEM


def _round_up(v, m):
    return (v + m - 1) // m * m


# ---------------------------------------------------------------------------
# In-kernel sparse dropout: zero the k smallest-|value| elements (global).
# ---------------------------------------------------------------------------
def _drop_smallest_abs(h, k):
    """Exact k-th (0-indexed) order statistic of |h| + masking, in-kernel.

    |h| >= 0, so its f32 bit pattern compared as int32 orders exactly like the
    float value.  Build the order statistic's bit pattern MSB-first with a
    counting bisection: 31 VPU compare + reduce passes, no sort, no HBM pass.
    Keeps |h| >= threshold (ties kept) — identical to sort(|h|)[k] semantics.
    """
    bits = pltpu.bitcast(jnp.abs(h), jnp.int32)          # non-negative int32
    kp1 = jnp.int32(k + 1)
    res = jnp.zeros((1, 1), jnp.int32)
    for b in range(30, -1, -1):                          # sign bit is always 0
        upper = res | ((1 << b) - 1)                     # candidate: bit b = 0
        le = (bits <= upper).astype(jnp.int32)
        cnt = jnp.sum(jnp.sum(le, axis=1, keepdims=True), axis=0, keepdims=True)
        res = jnp.where(cnt >= kp1, res, res | (1 << b))
    return jnp.where(bits >= res, h, 0.0)


# ---------------------------------------------------------------------------
# Fused whole-network kernel (batch resident in VMEM).
# ---------------------------------------------------------------------------
def _fused_kernel(x_ref, w1_ref, b1_ref, w2_ref, b2_ref, w3_ref, b3_ref,
                  o_ref, *, k1, k2):
    h1 = jnp.dot(x_ref[...].astype(jnp.bfloat16), w1_ref[...],
                 preferred_element_type=jnp.float32) + b1_ref[...]
    h1 = jnp.maximum(h1, 0.0)
    h1 = _drop_smallest_abs(h1, k1)
    h2 = jnp.dot(h1.astype(jnp.bfloat16), w2_ref[...],
                 preferred_element_type=jnp.float32) + b2_ref[...]
    h2 = jnp.maximum(h2, 0.0)
    h2 = _drop_smallest_abs(h2, k2)
    o_ref[...] = jnp.dot(h2.astype(jnp.bfloat16), w3_ref[...],
                         preferred_element_type=jnp.float32) + b3_ref[...]


def _fused_forward(x, w1, b1, w2, b2, w3, b3, *, k1, k2):
    n, d_in = x.shape
    d1, d2, d3 = w1.shape[1], w2.shape[1], w3.shape[1]
    kernel = functools.partial(_fused_kernel, k1=k1, k2=k2)

    def full(shape):
        return pl.BlockSpec(shape, lambda i: (0, 0))

    return pl.pallas_call(
        kernel,
        out_shape=jax.ShapeDtypeStruct((n, d3), jnp.float32),
        grid=(1,),
        in_specs=[
            full((n, d_in)),                 # x (f32, lane-padded)
            full((d_in, d1)), full((1, d1)),  # fc1 weight (bf16) + bias (f32)
            full((d1, d2)), full((1, d2)),    # fc2
            full((d2, d3)), full((1, d3)),    # fc3 (output lane-padded)
        ],
        out_specs=full((n, d3)),
    )(x, w1, b1, w2, b2, w3, b3)


# ---------------------------------------------------------------------------
# Tiled fallback path for batches too large to keep resident in VMEM.
# ---------------------------------------------------------------------------
def _linear_kernel(thr_ref, x_ref, w_ref, b_ref, o_ref, *, apply_mask, apply_relu):
    x = x_ref[...]
    if apply_mask:
        t = thr_ref[0, 0]
        x = jnp.where(jnp.abs(x) >= t, x, jnp.zeros_like(x))
    y = jnp.dot(x.astype(jnp.bfloat16), w_ref[...],
                preferred_element_type=jnp.float32) + b_ref[...]
    if apply_relu:
        y = jnp.maximum(y, 0.0)
    o_ref[...] = y


def _linear_layer(x, w, b_row, thr=None, *, apply_relu):
    n, d_in = x.shape
    d_out = w.shape[1]
    apply_mask = thr is not None
    if thr is None:
        thr = jnp.zeros((1, 1), jnp.float32)
    kernel = functools.partial(_linear_kernel, apply_mask=apply_mask,
                               apply_relu=apply_relu)
    return pl.pallas_call(
        kernel,
        out_shape=jax.ShapeDtypeStruct((n, d_out), jnp.float32),
        grid=(n // _TN,),
        in_specs=[
            pl.BlockSpec((1, 1), lambda i: (0, 0),
                         memory_space=pltpu.MemorySpace.SMEM),   # threshold
            pl.BlockSpec((_TN, d_in), lambda i: (i, 0)),          # activations
            pl.BlockSpec((d_in, d_out), lambda i: (0, 0)),        # weight (bf16)
            pl.BlockSpec((1, d_out), lambda i: (0, 0)),           # bias row
        ],
        out_specs=pl.BlockSpec((_TN, d_out), lambda i: (i, 0)),
        compiler_params=pltpu.CompilerParams(
            dimension_semantics=("parallel",)),
    )(thr, x, w, b_row)


def _sparse_dropout_threshold(h, p=0.5):
    # TODO(synk): a global cross-tile top-k selection has no clean single-
    # kernel Pallas primitive, so the large-batch path computes the scalar
    # threshold host-side with lax.top_k (min of the kept set == sort[drop]).
    flat = jnp.abs(h).reshape(-1)
    keep = flat.size - int(flat.size * p)
    return jax.lax.top_k(flat, keep)[0][-1].reshape(1, 1).astype(jnp.float32)


def _tiled_forward(x, w1, b1, w2, b2, w3, b3, n_real):
    n_pad = _round_up(max(n_real, _TN), _TN)
    x = jnp.pad(x, ((0, n_pad - n_real), (0, 0)))
    h1 = _linear_layer(x, w1, b1, apply_relu=True)
    t1 = _sparse_dropout_threshold(h1[:n_real])
    h2 = _linear_layer(h1, w2, b2, thr=t1, apply_relu=True)
    t2 = _sparse_dropout_threshold(h2[:n_real])
    out = _linear_layer(h2, w3, b3, thr=t2, apply_relu=False)
    return out[:n_real]


# ---------------------------------------------------------------------------
# Public forward (PyTorch weight layout: (out_features, in_features)).
# ---------------------------------------------------------------------------
def graph_embedding_forward(x, params):
    (w1, b1), (w2, b2), (w3, b3) = params
    n, d_in = x.shape
    d1, d2, d_out = w1.shape[0], w2.shape[0], w3.shape[0]

    d_in_p = _round_up(d_in, _LANE)    # lane-dense fc1 input (32 -> 128)
    d_out_p = _round_up(d_out, _LANE)  # lane-dense fc3 output (64 -> 128)

    # Zero padding keeps the math exact; weights shipped as bf16 (activations
    # stay f32 in HBM so the dropout compare is exact, cast to bf16 in-kernel
    # right before each MXU dot with f32 accumulation).
    x_p = jnp.pad(x, ((0, 0), (0, d_in_p - d_in))).astype(jnp.float32)
    w1_p = jnp.pad(w1.T, ((0, d_in_p - d_in), (0, 0))).astype(jnp.bfloat16)
    w2_p = w2.T.astype(jnp.bfloat16)
    w3_p = jnp.pad(w3.T, ((0, 0), (0, d_out_p - d_out))).astype(jnp.bfloat16)
    b1_r = b1.reshape(1, d1).astype(jnp.float32)
    b2_r = b2.reshape(1, d2).astype(jnp.float32)
    b3_r = jnp.pad(b3, (0, d_out_p - d_out)).reshape(1, d_out_p).astype(jnp.float32)

    if n <= _FUSED_MAX_ROWS:
        out = _fused_forward(x_p, w1_p, b1_r, w2_p, b2_r, w3_p, b3_r,
                             k1=int(n * d1 * 0.5), k2=int(n * d2 * 0.5))
    else:
        out = _tiled_forward(x_p, w1_p, b1_r, w2_p, b2_r, w3_p, b3_r, n_real=n)
    return out[:, :d_out]


def init_params(key, input_dim, embed_dim):
    """Deterministic PyTorch-Linear-style uniform init (weight shape (out, in))."""
    dims = [(input_dim, 256), (256, 128), (128, embed_dim)]
    params = []
    for i, (fi, fo) in enumerate(dims):
        kw, kb = jax.random.split(jax.random.fold_in(key, i))
        bound = 1.0 / (fi ** 0.5)
        w = jax.random.uniform(kw, (fo, fi), jnp.float32, -bound, bound)
        b = jax.random.uniform(kb, (fo,), jnp.float32, -bound, bound)
        params.append((w, b))
    return params


def reference_forward(x, params):
    """Pure-JAX f32 reference of the same forward semantics (sanity check)."""
    (w1, b1), (w2, b2), (w3, b3) = params

    def sd(h):
        t = jnp.sort(jnp.abs(h).reshape(-1))[int(h.size * 0.5)]
        return jnp.where(jnp.abs(h) >= t, h, 0.0)

    h = jnp.maximum(x @ w1.T + b1, 0.0)
    h = sd(h)
    h = jnp.maximum(h @ w2.T + b2, 0.0)
    h = sd(h)
    return h @ w3.T + b3


if __name__ == "__main__":
    N, INPUT_DIM, EMBED_DIM = 8, 32, 64

    key = jax.random.PRNGKey(0)
    kx, kp = jax.random.split(key)
    x = jax.random.normal(kx, (N, INPUT_DIM), jnp.float32)
    params = init_params(kp, INPUT_DIM, EMBED_DIM)

    forward = jax.jit(graph_embedding_forward)
    out = forward(x, params)
    out = jax.block_until_ready(out)

    ref = reference_forward(x, params)
    assert out.shape == (N, EMBED_DIM)
    # bf16 matmul operands (per perf review) -> compare vs f32 reference with
    # a bf16-appropriate tolerance.
    assert jnp.allclose(out, ref, atol=5e-2, rtol=5e-2), "mismatch vs reference"

    print("KERNEL_OK")
</pallas_src>

<mosaic_0001>
module attributes {stable_mosaic.version = 11 : i64} {
  func.func @_fused_kernel(%arg0: i32, %arg1: memref<8x128xf32, #tpu.memory_space<vmem>>, %arg2: memref<128x256xbf16, #tpu.memory_space<vmem>>, %arg3: memref<1x256xf32, #tpu.memory_space<vmem>>, %arg4: memref<256x128xbf16, #tpu.memory_space<vmem>>, %arg5: memref<1x128xf32, #tpu.memory_space<vmem>>, %arg6: memref<128x128xbf16, #tpu.memory_space<vmem>>, %arg7: memref<1x128xf32, #tpu.memory_space<vmem>>, %arg8: memref<8x128xf32, #tpu.memory_space<vmem>>) attributes {dimension_semantics = [#tpu.dimension_semantics<arbitrary>], iteration_bounds = array<i64: 1>, scalar_prefetch = 0 : i64, scratch_operands = 0 : i64, tpu.core_type = #tpu.core_type<tc>, window_params = [{pipeline_mode = #tpu.pipeline_mode<synchronous>, transform_indices = @transform_0, window_bounds = array<i64: 8, 128>}, {pipeline_mode = #tpu.pipeline_mode<synchronous>, transform_indices = @transform_1, window_bounds = array<i64: 128, 256>}, {pipeline_mode = #tpu.pipeline_mode<synchronous>, transform_indices = @transform_2, window_bounds = array<i64: 1, 256>}, {pipeline_mode = #tpu.pipeline_mode<synchronous>, transform_indices = @transform_3, window_bounds = array<i64: 256, 128>}, {pipeline_mode = #tpu.pipeline_mode<synchronous>, transform_indices = @transform_4, window_bounds = array<i64: 1, 128>}, {pipeline_mode = #tpu.pipeline_mode<synchronous>, transform_indices = @transform_5, window_bounds = array<i64: 128, 128>}, {pipeline_mode = #tpu.pipeline_mode<synchronous>, transform_indices = @transform_6, window_bounds = array<i64: 1, 128>}, {pipeline_mode = #tpu.pipeline_mode<synchronous>, transform_indices = @transform_7, window_bounds = array<i64: 8, 128>}]} {
    %c0 = arith.constant 0 : index
    %c0_0 = arith.constant 0 : index
    %0 = vector.load %arg1[%c0, %c0_0] : memref<8x128xf32, #tpu.memory_space<vmem>>, vector<8x128xf32>
    %1 = arith.truncf %0 : vector<8x128xf32> to vector<8x128xbf16>
    %c0_1 = arith.constant 0 : index
    %c0_2 = arith.constant 0 : index
    %2 = vector.load %arg2[%c0_1, %c0_2] : memref<128x256xbf16, #tpu.memory_space<vmem>>, vector<128x256xbf16>
    %cst = arith.constant dense<0.000000e+00> : vector<8x256xf32>
    %3 = tpu.matmul %1, %2, %cst {dimension_numbers = #tpu.dot_dimension_numbers<[1], [0], [0], [1], [0, 0, 1, 1], [], []>} : vector<8x128xbf16>, vector<128x256xbf16>, vector<8x256xf32> -> vector<8x256xf32>
    %c0_3 = arith.constant 0 : index
    %c0_4 = arith.constant 0 : index
    %4 = vector.load %arg3[%c0_3, %c0_4] : memref<1x256xf32, #tpu.memory_space<vmem>>, vector<1x256xf32>
    %5 = vector.broadcast %4 : vector<1x256xf32> to vector<8x256xf32>
    %6 = arith.addf %3, %5 : vector<8x256xf32>
    %cst_5 = arith.constant 0.000000e+00 : f32
    %7 = vector.broadcast %cst_5 : f32 to vector<8x256xf32>
    %8 = arith.maximumf %6, %7 : vector<8x256xf32>
    %9 = math.absf %8 : vector<8x256xf32>
    %10 = tpu.bitcast %9 : vector<8x256xf32> -> vector<8x256xi32>
    %c0_i32 = arith.constant 0 : i32
    %11 = vector.broadcast %c0_i32 : i32 to vector<1x1xi32>
    %c1073741823_i32 = arith.constant 1073741823 : i32
    %12 = vector.broadcast %c1073741823_i32 : i32 to vector<1x1xi32>
    %13 = arith.ori %11, %12 : vector<1x1xi32>
    %14 = vector.broadcast %13 : vector<1x1xi32> to vector<8x256xi32>
    %15 = arith.cmpi sle, %10, %14 : vector<8x256xi32>
    %16 = arith.extui %15 : vector<8x256xi1> to vector<8x256xi32>
    %cst_6 = arith.constant dense<0> : vector<8xi32>
    %17 = vector.multi_reduction <add>, %16, %cst_6 [1] : vector<8x256xi32> to vector<8xi32>
    %18 = vector.shape_cast %17 : vector<8xi32> to vector<8x1xi32>
    %cst_7 = arith.constant dense<0> : vector<1xi32>
    %19 = vector.multi_reduction <add>, %18, %cst_7 [0] : vector<8x1xi32> to vector<1xi32>
    %20 = vector.shape_cast %19 : vector<1xi32> to vector<1x1xi32>
    %c1025_i32 = arith.constant 1025 : i32
    %21 = vector.broadcast %c1025_i32 : i32 to vector<1x1xi32>
    %22 = arith.cmpi sge, %20, %21 : vector<1x1xi32>
    %c1073741824_i32 = arith.constant 1073741824 : i32
    %23 = vector.broadcast %c1073741824_i32 : i32 to vector<1x1xi32>
    %24 = arith.ori %11, %23 : vector<1x1xi32>
    %25 = arith.select %22, %11, %24 : vector<1x1xi1>, vector<1x1xi32>
    %c536870911_i32 = arith.constant 536870911 : i32
    %26 = vector.broadcast %c536870911_i32 : i32 to vector<1x1xi32>
    %27 = arith.ori %25, %26 : vector<1x1xi32>
    %28 = vector.broadcast %27 : vector<1x1xi32> to vector<8x256xi32>
    %29 = arith.cmpi sle, %10, %28 : vector<8x256xi32>
    %30 = arith.extui %29 : vector<8x256xi1> to vector<8x256xi32>
    %cst_8 = arith.constant dense<0> : vector<8xi32>
    %31 = vector.multi_reduction <add>, %30, %cst_8 [1] : vector<8x256xi32> to vector<8xi32>
    %32 = vector.shape_cast %31 : vector<8xi32> to vector<8x1xi32>
    %cst_9 = arith.constant dense<0> : vector<1xi32>
    %33 = vector.multi_reduction <add>, %32, %cst_9 [0] : vector<8x1xi32> to vector<1xi32>
    %34 = vector.shape_cast %33 : vector<1xi32> to vector<1x1xi32>
    %c1025_i32_10 = arith.constant 1025 : i32
    %35 = vector.broadcast %c1025_i32_10 : i32 to vector<1x1xi32>
    %36 = arith.cmpi sge, %34, %35 : vector<1x1xi32>
    %c536870912_i32 = arith.constant 536870912 : i32
    %37 = vector.broadcast %c536870912_i32 : i32 to vector<1x1xi32>
    %38 = arith.ori %25, %37 : vector<1x1xi32>
    %39 = arith.select %36, %25, %38 : vector<1x1xi1>, vector<1x1xi32>
    %c268435455_i32 = arith.constant 268435455 : i32
    %40 = vector.broadcast %c268435455_i32 : i32 to vector<1x1xi32>
    %41 = arith.ori %39, %40 : vector<1x1xi32>
    %42 = vector.broadcast %41 : vector<1x1xi32> to vector<8x256xi32>
    %43 = arith.cmpi sle, %10, %42 : vector<8x256xi32>
    %44 = arith.extui %43 : vector<8x256xi1> to vector<8x256xi32>
    %cst_11 = arith.constant dense<0> : vector<8xi32>
    %45 = vector.multi_reduction <add>, %44, %cst_11 [1] : vector<8x256xi32> to vector<8xi32>
    %46 = vector.shape_cast %45 : vector<8xi32> to vector<8x1xi32>
    %cst_12 = arith.constant dense<0> : vector<1xi32>
    %47 = vector.multi_reduction <add>, %46, %cst_12 [0] : vector<8x1xi32> to vector<1xi32>
    %48 = vector.shape_cast %47 : vector<1xi32> to vector<1x1xi32>
    %c1025_i32_13 = arith.constant 1025 : i32
    %49 = vector.broadcast %c1025_i32_13 : i32 to vector<1x1xi32>
    %50 = arith.cmpi sge, %48, %49 : vector<1x1xi32>
    %c268435456_i32 = arith.constant 268435456 : i32
    %51 = vector.broadcast %c268435456_i32 : i32 to vector<1x1xi32>
    %52 = arith.ori %39, %51 : vector<1x1xi32>
    %53 = arith.select %50, %39, %52 : vector<1x1xi1>, vector<1x1xi32>
    %c134217727_i32 = arith.constant 134217727 : i32
    %54 = vector.broadcast %c134217727_i32 : i32 to vector<1x1xi32>
    %55 = arith.ori %53, %54 : vector<1x1xi32>
    %56 = vector.broadcast %55 : vector<1x1xi32> to vector<8x256xi32>
    %57 = arith.cmpi sle, %10, %56 : vector<8x256xi32>
    %58 = arith.extui %57 : vector<8x256xi1> to vector<8x256xi32>
    %cst_14 = arith.constant dense<0> : vector<8xi32>
    %59 = vector.multi_reduction <add>, %58, %cst_14 [1] : vector<8x256xi32> to vector<8xi32>
    %60 = vector.shape_cast %59 : vector<8xi32> to vector<8x1xi32>
    %cst_15 = arith.constant dense<0> : vector<1xi32>
    %61 = vector.multi_reduction <add>, %60, %cst_15 [0] : vector<8x1xi32> to vector<1xi32>
    %62 = vector.shape_cast %61 : vector<1xi32> to vector<1x1xi32>
    %c1025_i32_16 = arith.constant 1025 : i32
    %63 = vector.broadcast %c1025_i32_16 : i32 to vector<1x1xi32>
    %64 = arith.cmpi sge, %62, %63 : vector<1x1xi32>
    %c134217728_i32 = arith.constant 134217728 : i32
    %65 = vector.broadcast %c134217728_i32 : i32 to vector<1x1xi32>
    %66 = arith.ori %53, %65 : vector<1x1xi32>
    %67 = arith.select %64, %53, %66 : vector<1x1xi1>, vector<1x1xi32>
    %c67108863_i32 = arith.constant 67108863 : i32
    %68 = vector.broadcast %c67108863_i32 : i32 to vector<1x1xi32>
    %69 = arith.ori %67, %68 : vector<1x1xi32>
    %70 = vector.broadcast %69 : vector<1x1xi32> to vector<8x256xi32>
    %71 = arith.cmpi sle, %10, %70 : vector<8x256xi32>
    %72 = arith.extui %71 : vector<8x256xi1> to vector<8x256xi32>
    %cst_17 = arith.constant dense<0> : vector<8xi32>
    %73 = vector.multi_reduction <add>, %72, %cst_17 [1] : vector<8x256xi32> to vector<8xi32>
    %74 = vector.shape_cast %73 : vector<8xi32> to vector<8x1xi32>
    %cst_18 = arith.constant dense<0> : vector<1xi32>
    %75 = vector.multi_reduction <add>, %74, %cst_18 [0] : vector<8x1xi32> to vector<1xi32>
    %76 = vector.shape_cast %75 : vector<1xi32> to vector<1x1xi32>
    %c1025_i32_19 = arith.constant 1025 : i32
    %77 = vector.broadcast %c1025_i32_19 : i32 to vector<1x1xi32>
    %78 = arith.cmpi sge, %76, %77 : vector<1x1xi32>
    %c67108864_i32 = arith.constant 67108864 : i32
    %79 = vector.broadcast %c67108864_i32 : i32 to vector<1x1xi32>
    %80 = arith.ori %67, %79 : vector<1x1xi32>
    %81 = arith.select %78, %67, %80 : vector<1x1xi1>, vector<1x1xi32>
    %c33554431_i32 = arith.constant 33554431 : i32
    %82 = vector.broadcast %c33554431_i32 : i32 to vector<1x1xi32>
    %83 = arith.ori %81, %82 : vector<1x1xi32>
    %84 = vector.broadcast %83 : vector<1x1xi32> to vector<8x256xi32>
    %85 = arith.cmpi sle, %10, %84 : vector<8x256xi32>
    %86 = arith.extui %85 : vector<8x256xi1> to vector<8x256xi32>
    %cst_20 = arith.constant dense<0> : vector<8xi32>
    %87 = vector.multi_reduction <add>, %86, %cst_20 [1] : vector<8x256xi32> to vector<8xi32>
    %88 = vector.shape_cast %87 : vector<8xi32> to vector<8x1xi32>
    %cst_21 = arith.constant dense<0> : vector<1xi32>
    %89 = vector.multi_reduction <add>, %88, %cst_21 [0] : vector<8x1xi32> to vector<1xi32>
    %90 = vector.shape_cast %89 : vector<1xi32> to vector<1x1xi32>
    %c1025_i32_22 = arith.constant 1025 : i32
    %91 = vector.broadcast %c1025_i32_22 : i32 to vector<1x1xi32>
    %92 = arith.cmpi sge, %90, %91 : vector<1x1xi32>
    %c33554432_i32 = arith.constant 33554432 : i32
    %93 = vector.broadcast %c33554432_i32 : i32 to vector<1x1xi32>
    %94 = arith.ori %81, %93 : vector<1x1xi32>
    %95 = arith.select %92, %81, %94 : vector<1x1xi1>, vector<1x1xi32>
    %c16777215_i32 = arith.constant 16777215 : i32
    %96 = vector.broadcast %c16777215_i32 : i32 to vector<1x1xi32>
    %97 = arith.ori %95, %96 : vector<1x1xi32>
    %98 = vector.broadcast %97 : vector<1x1xi32> to vector<8x256xi32>
    %99 = arith.cmpi sle, %10, %98 : vector<8x256xi32>
    %100 = arith.extui %99 : vector<8x256xi1> to vector<8x256xi32>
    %cst_23 = arith.constant dense<0> : vector<8xi32>
    %101 = vector.multi_reduction <add>, %100, %cst_23 [1] : vector<8x256xi32> to vector<8xi32>
    %102 = vector.shape_cast %101 : vector<8xi32> to vector<8x1xi32>
    %cst_24 = arith.constant dense<0> : vector<1xi32>
    %103 = vector.multi_reduction <add>, %102, %cst_24 [0] : vector<8x1xi32> to vector<1xi32>
    %104 = vector.shape_cast %103 : vector<1xi32> to vector<1x1xi32>
    %c1025_i32_25 = arith.constant 1025 : i32
    %105 = vector.broadcast %c1025_i32_25 : i32 to vector<1x1xi32>
    %106 = arith.cmpi sge, %104, %105 : vector<1x1xi32>
    %c16777216_i32 = arith.constant 16777216 : i32
    %107 = vector.broadcast %c16777216_i32 : i32 to vector<1x1xi32>
    %108 = arith.ori %95, %107 : vector<1x1xi32>
    %109 = arith.select %106, %95, %108 : vector<1x1xi1>, vector<1x1xi32>
    %c8388607_i32 = arith.constant 8388607 : i32
    %110 = vector.broadcast %c8388607_i32 : i32 to vector<1x1xi32>
    %111 = arith.ori %109, %110 : vector<1x1xi32>
    %112 = vector.broadcast %111 : vector<1x1xi32> to vector<8x256xi32>
    %113 = arith.cmpi sle, %10, %112 : vector<8x256xi32>
    %114 = arith.extui %113 : vector<8x256xi1> to vector<8x256xi32>
    %cst_26 = arith.constant dense<0> : vector<8xi32>
    %115 = vector.multi_reduction <add>, %114, %cst_26 [1] : vector<8x256xi32> to vector<8xi32>
    %116 = vector.shape_cast %115 : vector<8xi32> to vector<8x1xi32>
    %cst_27 = arith.constant dense<0> : vector<1xi32>
    %117 = vector.multi_reduction <add>, %116, %cst_27 [0] : vector<8x1xi32> to vector<1xi32>
    %118 = vector.shape_cast %117 : vector<1xi32> to vector<1x1xi32>
    %c1025_i32_28 = arith.constant 1025 : i32
    %119 = vector.broadcast %c1025_i32_28 : i32 to vector<1x1xi32>
    %120 = arith.cmpi sge, %118, %119 : vector<1x1xi32>
    %c8388608_i32 = arith.constant 8388608 : i32
    %121 = vector.broadcast %c8388608_i32 : i32 to vector<1x1xi32>
    %122 = arith.ori %109, %121 : vector<1x1xi32>
    %123 = arith.select %120, %109, %122 : vector<1x1xi1>, vector<1x1xi32>
    %c4194303_i32 = arith.constant 4194303 : i32
    %124 = vector.broadcast %c4194303_i32 : i32 to vector<1x1xi32>
    %125 = arith.ori %123, %124 : vector<1x1xi32>
    %126 = vector.broadcast %125 : vector<1x1xi32> to vector<8x256xi32>
    %127 = arith.cmpi sle, %10, %126 : vector<8x256xi32>
    %128 = arith.extui %127 : vector<8x256xi1> to vector<8x256xi32>
    %cst_29 = arith.constant dense<0> : vector<8xi32>
    %129 = vector.multi_reduction <add>, %128, %cst_29 [1] : vector<8x256xi32> to vector<8xi32>
    %130 = vector.shape_cast %129 : vector<8xi32> to vector<8x1xi32>
    %cst_30 = arith.constant dense<0> : vector<1xi32>
    %131 = vector.multi_reduction <add>, %130, %cst_30 [0] : vector<8x1xi32> to vector<1xi32>
    %132 = vector.shape_cast %131 : vector<1xi32> to vector<1x1xi32>
    %c1025_i32_31 = arith.constant 1025 : i32
    %133 = vector.broadcast %c1025_i32_31 : i32 to vector<1x1xi32>
    %134 = arith.cmpi sge, %132, %133 : vector<1x1xi32>
    %c4194304_i32 = arith.constant 4194304 : i32
    %135 = vector.broadcast %c4194304_i32 : i32 to vector<1x1xi32>
    %136 = arith.ori %123, %135 : vector<1x1xi32>
    %137 = arith.select %134, %123, %136 : vector<1x1xi1>, vector<1x1xi32>
    %c2097151_i32 = arith.constant 2097151 : i32
    %138 = vector.broadcast %c2097151_i32 : i32 to vector<1x1xi32>
    %139 = arith.ori %137, %138 : vector<1x1xi32>
    %140 = vector.broadcast %139 : vector<1x1xi32> to vector<8x256xi32>
    %141 = arith.cmpi sle, %10, %140 : vector<8x256xi32>
    %142 = arith.extui %141 : vector<8x256xi1> to vector<8x256xi32>
    %cst_32 = arith.constant dense<0> : vector<8xi32>
    %143 = vector.multi_reduction <add>, %142, %cst_32 [1] : vector<8x256xi32> to vector<8xi32>
    %144 = vector.shape_cast %143 : vector<8xi32> to vector<8x1xi32>
    %cst_33 = arith.constant dense<0> : vector<1xi32>
    %145 = vector.multi_reduction <add>, %144, %cst_33 [0] : vector<8x1xi32> to vector<1xi32>
    %146 = vector.shape_cast %145 : vector<1xi32> to vector<1x1xi32>
    %c1025_i32_34 = arith.constant 1025 : i32
    %147 = vector.broadcast %c1025_i32_34 : i32 to vector<1x1xi32>
    %148 = arith.cmpi sge, %146, %147 : vector<1x1xi32>
    %c2097152_i32 = arith.constant 2097152 : i32
    %149 = vector.broadcast %c2097152_i32 : i32 to vector<1x1xi32>
    %150 = arith.ori %137, %149 : vector<1x1xi32>
    %151 = arith.select %148, %137, %150 : vector<1x1xi1>, vector<1x1xi32>
    %c1048575_i32 = arith.constant 1048575 : i32
    %152 = vector.broadcast %c1048575_i32 : i32 to vector<1x1xi32>
    %153 = arith.ori %151, %152 : vector<1x1xi32>
    %154 = vector.broadcast %153 : vector<1x1xi32> to vector<8x256xi32>
    %155 = arith.cmpi sle, %10, %154 : vector<8x256xi32>
    %156 = arith.extui %155 : vector<8x256xi1> to vector<8x256xi32>
    %cst_35 = arith.constant dense<0> : vector<8xi32>
    %157 = vector.multi_reduction <add>, %156, %cst_35 [1] : vector<8x256xi32> to vector<8xi32>
    %158 = vector.shape_cast %157 : vector<8xi32> to vector<8x1xi32>
    %cst_36 = arith.constant dense<0> : vector<1xi32>
    %159 = vector.multi_reduction <add>, %158, %cst_36 [0] : vector<8x1xi32> to vector<1xi32>
    %160 = vector.shape_cast %159 : vector<1xi32> to vector<1x1xi32>
    %c1025_i32_37 = arith.constant 1025 : i32
    %161 = vector.broadcast %c1025_i32_37 : i32 to vector<1x1xi32>
    %162 = arith.cmpi sge, %160, %161 : vector<1x1xi32>
    %c1048576_i32 = arith.constant 1048576 : i32
    %163 = vector.broadcast %c1048576_i32 : i32 to vector<1x1xi32>
    %164 = arith.ori %151, %163 : vector<1x1xi32>
    %165 = arith.select %162, %151, %164 : vector<1x1xi1>, vector<1x1xi32>
    %c524287_i32 = arith.constant 524287 : i32
    %166 = vector.broadcast %c524287_i32 : i32 to vector<1x1xi32>
    %167 = arith.ori %165, %166 : vector<1x1xi32>
    %168 = vector.broadcast %167 : vector<1x1xi32> to vector<8x256xi32>
    %169 = arith.cmpi sle, %10, %168 : vector<8x256xi32>
    %170 = arith.extui %169 : vector<8x256xi1> to vector<8x256xi32>
    %cst_38 = arith.constant dense<0> : vector<8xi32>
    %171 = vector.multi_reduction <add>, %170, %cst_38 [1] : vector<8x256xi32> to vector<8xi32>
    %172 = vector.shape_cast %171 : vector<8xi32> to vector<8x1xi32>
    %cst_39 = arith.constant dense<0> : vector<1xi32>
    %173 = vector.multi_reduction <add>, %172, %cst_39 [0] : vector<8x1xi32> to vector<1xi32>
    %174 = vector.shape_cast %173 : vector<1xi32> to vector<1x1xi32>
    %c1025_i32_40 = arith.constant 1025 : i32
    %175 = vector.broadcast %c1025_i32_40 : i32 to vector<1x1xi32>
    %176 = arith.cmpi sge, %174, %175 : vector<1x1xi32>
    %c524288_i32 = arith.constant 524288 : i32
    %177 = vector.broadcast %c524288_i32 : i32 to vector<1x1xi32>
    %178 = arith.ori %165, %177 : vector<1x1xi32>
    %179 = arith.select %176, %165, %178 : vector<1x1xi1>, vector<1x1xi32>
    %c262143_i32 = arith.constant 262143 : i32
    %180 = vector.broadcast %c262143_i32 : i32 to vector<1x1xi32>
    %181 = arith.ori %179, %180 : vector<1x1xi32>
    %182 = vector.broadcast %181 : vector<1x1xi32> to vector<8x256xi32>
    %183 = arith.cmpi sle, %10, %182 : vector<8x256xi32>
    %184 = arith.extui %183 : vector<8x256xi1> to vector<8x256xi32>
    %cst_41 = arith.constant dense<0> : vector<8xi32>
    %185 = vector.multi_reduction <add>, %184, %cst_41 [1] : vector<8x256xi32> to vector<8xi32>
    %186 = vector.shape_cast %185 : vector<8xi32> to vector<8x1xi32>
    %cst_42 = arith.constant dense<0> : vector<1xi32>
    %187 = vector.multi_reduction <add>, %186, %cst_42 [0] : vector<8x1xi32> to vector<1xi32>
    %188 = vector.shape_cast %187 : vector<1xi32> to vector<1x1xi32>
    %c1025_i32_43 = arith.constant 1025 : i32
    %189 = vector.broadcast %c1025_i32_43 : i32 to vector<1x1xi32>
    %190 = arith.cmpi sge, %188, %189 : vector<1x1xi32>
    %c262144_i32 = arith.constant 262144 : i32
    %191 = vector.broadcast %c262144_i32 : i32 to vector<1x1xi32>
    %192 = arith.ori %179, %191 : vector<1x1xi32>
    %193 = arith.select %190, %179, %192 : vector<1x1xi1>, vector<1x1xi32>
    %c131071_i32 = arith.constant 131071 : i32
    %194 = vector.broadcast %c131071_i32 : i32 to vector<1x1xi32>
    %195 = arith.ori %193, %194 : vector<1x1xi32>
    %196 = vector.broadcast %195 : vector<1x1xi32> to vector<8x256xi32>
    %197 = arith.cmpi sle, %10, %196 : vector<8x256xi32>
    %198 = arith.extui %197 : vector<8x256xi1> to vector<8x256xi32>
    %cst_44 = arith.constant dense<0> : vector<8xi32>
    %199 = vector.multi_reduction <add>, %198, %cst_44 [1] : vector<8x256xi32> to vector<8xi32>
    %200 = vector.shape_cast %199 : vector<8xi32> to vector<8x1xi32>
    %cst_45 = arith.constant dense<0> : vector<1xi32>
    %201 = vector.multi_reduction <add>, %200, %cst_45 [0] : vector<8x1xi32> to vector<1xi32>
    %202 = vector.shape_cast %201 : vector<1xi32> to vector<1x1xi32>
    %c1025_i32_46 = arith.constant 1025 : i32
    %203 = vector.broadcast %c1025_i32_46 : i32 to vector<1x1xi32>
    %204 = arith.cmpi sge, %202, %203 : vector<1x1xi32>
    %c131072_i32 = arith.constant 131072 : i32
    %205 = vector.broadcast %c131072_i32 : i32 to vector<1x1xi32>
    %206 = arith.ori %193, %205 : vector<1x1xi32>
    %207 = arith.select %204, %193, %206 : vector<1x1xi1>, vector<1x1xi32>
    %c65535_i32 = arith.constant 65535 : i32
    %208 = vector.broadcast %c65535_i32 : i32 to vector<1x1xi32>
    %209 = arith.ori %207, %208 : vector<1x1xi32>
    %210 = vector.broadcast %209 : vector<1x1xi32> to vector<8x256xi32>
    %211 = arith.cmpi sle, %10, %210 : vector<8x256xi32>
    %212 = arith.extui %211 : vector<8x256xi1> to vector<8x256xi32>
    %cst_47 = arith.constant dense<0> : vector<8xi32>
    %213 = vector.multi_reduction <add>, %212, %cst_47 [1] : vector<8x256xi32> to vector<8xi32>
    %214 = vector.shape_cast %213 : vector<8xi32> to vector<8x1xi32>
    %cst_48 = arith.constant dense<0> : vector<1xi32>
    %215 = vector.multi_reduction <add>, %214, %cst_48 [0] : vector<8x1xi32> to vector<1xi32>
    %216 = vector.shape_cast %215 : vector<1xi32> to vector<1x1xi32>
    %c1025_i32_49 = arith.constant 1025 : i32
    %217 = vector.broadcast %c1025_i32_49 : i32 to vector<1x1xi32>
    %218 = arith.cmpi sge, %216, %217 : vector<1x1xi32>
    %c65536_i32 = arith.constant 65536 : i32
    %219 = vector.broadcast %c65536_i32 : i32 to vector<1x1xi32>
    %220 = arith.ori %207, %219 : vector<1x1xi32>
    %221 = arith.select %218, %207, %220 : vector<1x1xi1>, vector<1x1xi32>
    %c32767_i32 = arith.constant 32767 : i32
    %222 = vector.broadcast %c32767_i32 : i32 to vector<1x1xi32>
    %223 = arith.ori %221, %222 : vector<1x1xi32>
    %224 = vector.broadcast %223 : vector<1x1xi32> to vector<8x256xi32>
    %225 = arith.cmpi sle, %10, %224 : vector<8x256xi32>
    %226 = arith.extui %225 : vector<8x256xi1> to vector<8x256xi32>
    %cst_50 = arith.constant dense<0> : vector<8xi32>
    %227 = vector.multi_reduction <add>, %226, %cst_50 [1] : vector<8x256xi32> to vector<8xi32>
    %228 = vector.shape_cast %227 : vector<8xi32> to vector<8x1xi32>
    %cst_51 = arith.constant dense<0> : vector<1xi32>
    %229 = vector.multi_reduction <add>, %228, %cst_51 [0] : vector<8x1xi32> to vector<1xi32>
    %230 = vector.shape_cast %229 : vector<1xi32> to vector<1x1xi32>
    %c1025_i32_52 = arith.constant 1025 : i32
    %231 = vector.broadcast %c1025_i32_52 : i32 to vector<1x1xi32>
    %232 = arith.cmpi sge, %230, %231 : vector<1x1xi32>
    %c32768_i32 = arith.constant 32768 : i32
    %233 = vector.broadcast %c32768_i32 : i32 to vector<1x1xi32>
    %234 = arith.ori %221, %233 : vector<1x1xi32>
    %235 = arith.select %232, %221, %234 : vector<1x1xi1>, vector<1x1xi32>
    %c16383_i32 = arith.constant 16383 : i32
    %236 = vector.broadcast %c16383_i32 : i32 to vector<1x1xi32>
    %237 = arith.ori %235, %236 : vector<1x1xi32>
    %238 = vector.broadcast %237 : vector<1x1xi32> to vector<8x256xi32>
    %239 = arith.cmpi sle, %10, %238 : vector<8x256xi32>
    %240 = arith.extui %239 : vector<8x256xi1> to vector<8x256xi32>
    %cst_53 = arith.constant dense<0> : vector<8xi32>
    %241 = vector.multi_reduction <add>, %240, %cst_53 [1] : vector<8x256xi32> to vector<8xi32>
    %242 = vector.shape_cast %241 : vector<8xi32> to vector<8x1xi32>
    %cst_54 = arith.constant dense<0> : vector<1xi32>
    %243 = vector.multi_reduction <add>, %242, %cst_54 [0] : vector<8x1xi32> to vector<1xi32>
    %244 = vector.shape_cast %243 : vector<1xi32> to vector<1x1xi32>
    %c1025_i32_55 = arith.constant 1025 : i32
    %245 = vector.broadcast %c1025_i32_55 : i32 to vector<1x1xi32>
    %246 = arith.cmpi sge, %244, %245 : vector<1x1xi32>
    %c16384_i32 = arith.constant 16384 : i32
    %247 = vector.broadcast %c16384_i32 : i32 to vector<1x1xi32>
    %248 = arith.ori %235, %247 : vector<1x1xi32>
    %249 = arith.select %246, %235, %248 : vector<1x1xi1>, vector<1x1xi32>
    %c8191_i32 = arith.constant 8191 : i32
    %250 = vector.broadcast %c8191_i32 : i32 to vector<1x1xi32>
    %251 = arith.ori %249, %250 : vector<1x1xi32>
    %252 = vector.broadcast %251 : vector<1x1xi32> to vector<8x256xi32>
    %253 = arith.cmpi sle, %10, %252 : vector<8x256xi32>
    %254 = arith.extui %253 : vector<8x256xi1> to vector<8x256xi32>
    %cst_56 = arith.constant dense<0> : vector<8xi32>
    %255 = vector.multi_reduction <add>, %254, %cst_56 [1] : vector<8x256xi32> to vector<8xi32>
    %256 = vector.shape_cast %255 : vector<8xi32> to vector<8x1xi32>
    %cst_57 = arith.constant dense<0> : vector<1xi32>
    %257 = vector.multi_reduction <add>, %256, %cst_57 [0] : vector<8x1xi32> to vector<1xi32>
    %258 = vector.shape_cast %257 : vector<1xi32> to vector<1x1xi32>
    %c1025_i32_58 = arith.constant 1025 : i32
    %259 = vector.broadcast %c1025_i32_58 : i32 to vector<1x1xi32>
    %260 = arith.cmpi sge, %258, %259 : vector<1x1xi32>
    %c8192_i32 = arith.constant 8192 : i32
    %261 = vector.broadcast %c8192_i32 : i32 to vector<1x1xi32>
    %262 = arith.ori %249, %261 : vector<1x1xi32>
    %263 = arith.select %260, %249, %262 : vector<1x1xi1>, vector<1x1xi32>
    %c4095_i32 = arith.constant 4095 : i32
    %264 = vector.broadcast %c4095_i32 : i32 to vector<1x1xi32>
    %265 = arith.ori %263, %264 : vector<1x1xi32>
    %266 = vector.broadcast %265 : vector<1x1xi32> to vector<8x256xi32>
    %267 = arith.cmpi sle, %10, %266 : vector<8x256xi32>
    %268 = arith.extui %267 : vector<8x256xi1> to vector<8x256xi32>
    %cst_59 = arith.constant dense<0> : vector<8xi32>
    %269 = vector.multi_reduction <add>, %268, %cst_59 [1] : vector<8x256xi32> to vector<8xi32>
    %270 = vector.shape_cast %269 : vector<8xi32> to vector<8x1xi32>
    %cst_60 = arith.constant dense<0> : vector<1xi32>
    %271 = vector.multi_reduction <add>, %270, %cst_60 [0] : vector<8x1xi32> to vector<1xi32>
    %272 = vector.shape_cast %271 : vector<1xi32> to vector<1x1xi32>
    %c1025_i32_61 = arith.constant 1025 : i32
    %273 = vector.broadcast %c1025_i32_61 : i32 to vector<1x1xi32>
    %274 = arith.cmpi sge, %272, %273 : vector<1x1xi32>
    %c4096_i32 = arith.constant 4096 : i32
    %275 = vector.broadcast %c4096_i32 : i32 to vector<1x1xi32>
    %276 = arith.ori %263, %275 : vector<1x1xi32>
    %277 = arith.select %274, %263, %276 : vector<1x1xi1>, vector<1x1xi32>
    %c2047_i32 = arith.constant 2047 : i32
    %278 = vector.broadcast %c2047_i32 : i32 to vector<1x1xi32>
    %279 = arith.ori %277, %278 : vector<1x1xi32>
    %280 = vector.broadcast %279 : vector<1x1xi32> to vector<8x256xi32>
    %281 = arith.cmpi sle, %10, %280 : vector<8x256xi32>
    %282 = arith.extui %281 : vector<8x256xi1> to vector<8x256xi32>
    %cst_62 = arith.constant dense<0> : vector<8xi32>
    %283 = vector.multi_reduction <add>, %282, %cst_62 [1] : vector<8x256xi32> to vector<8xi32>
    %284 = vector.shape_cast %283 : vector<8xi32> to vector<8x1xi32>
    %cst_63 = arith.constant dense<0> : vector<1xi32>
    %285 = vector.multi_reduction <add>, %284, %cst_63 [0] : vector<8x1xi32> to vector<1xi32>
    %286 = vector.shape_cast %285 : vector<1xi32> to vector<1x1xi32>
    %c1025_i32_64 = arith.constant 1025 : i32
    %287 = vector.broadcast %c1025_i32_64 : i32 to vector<1x1xi32>
    %288 = arith.cmpi sge, %286, %287 : vector<1x1xi32>
    %c2048_i32 = arith.constant 2048 : i32
    %289 = vector.broadcast %c2048_i32 : i32 to vector<1x1xi32>
    %290 = arith.ori %277, %289 : vector<1x1xi32>
    %291 = arith.select %288, %277, %290 : vector<1x1xi1>, vector<1x1xi32>
    %c1023_i32 = arith.constant 1023 : i32
    %292 = vector.broadcast %c1023_i32 : i32 to vector<1x1xi32>
    %293 = arith.ori %291, %292 : vector<1x1xi32>
    %294 = vector.broadcast %293 : vector<1x1xi32> to vector<8x256xi32>
    %295 = arith.cmpi sle, %10, %294 : vector<8x256xi32>
    %296 = arith.extui %295 : vector<8x256xi1> to vector<8x256xi32>
    %cst_65 = arith.constant dense<0> : vector<8xi32>
    %297 = vector.multi_reduction <add>, %296, %cst_65 [1] : vector<8x256xi32> to vector<8xi32>
    %298 = vector.shape_cast %297 : vector<8xi32> to vector<8x1xi32>
    %cst_66 = arith.constant dense<0> : vector<1xi32>
    %299 = vector.multi_reduction <add>, %298, %cst_66 [0] : vector<8x1xi32> to vector<1xi32>
    %300 = vector.shape_cast %299 : vector<1xi32> to vector<1x1xi32>
    %c1025_i32_67 = arith.constant 1025 : i32
    %301 = vector.broadcast %c1025_i32_67 : i32 to vector<1x1xi32>
    %302 = arith.cmpi sge, %300, %301 : vector<1x1xi32>
    %c1024_i32 = arith.constant 1024 : i32
    %303 = vector.broadcast %c1024_i32 : i32 to vector<1x1xi32>
    %304 = arith.ori %291, %303 : vector<1x1xi32>
    %305 = arith.select %302, %291, %304 : vector<1x1xi1>, vector<1x1xi32>
    %c511_i32 = arith.constant 511 : i32
    %306 = vector.broadcast %c511_i32 : i32 to vector<1x1xi32>
    %307 = arith.ori %305, %306 : vector<1x1xi32>
    %308 = vector.broadcast %307 : vector<1x1xi32> to vector<8x256xi32>
    %309 = arith.cmpi sle, %10, %308 : vector<8x256xi32>
    %310 = arith.extui %309 : vector<8x256xi1> to vector<8x256xi32>
    %cst_68 = arith.constant dense<0> : vector<8xi32>
    %311 = vector.multi_reduction <add>, %310, %cst_68 [1] : vector<8x256xi32> to vector<8xi32>
    %312 = vector.shape_cast %311 : vector<8xi32> to vector<8x1xi32>
    %cst_69 = arith.constant dense<0> : vector<1xi32>
    %313 = vector.multi_reduction <add>, %312, %cst_69 [0] : vector<8x1xi32> to vector<1xi32>
    %314 = vector.shape_cast %313 : vector<1xi32> to vector<1x1xi32>
    %c1025_i32_70 = arith.constant 1025 : i32
    %315 = vector.broadcast %c1025_i32_70 : i32 to vector<1x1xi32>
    %316 = arith.cmpi sge, %314, %315 : vector<1x1xi32>
    %c512_i32 = arith.constant 512 : i32
    %317 = vector.broadcast %c512_i32 : i32 to vector<1x1xi32>
    %318 = arith.ori %305, %317 : vector<1x1xi32>
    %319 = arith.select %316, %305, %318 : vector<1x1xi1>, vector<1x1xi32>
    %c255_i32 = arith.constant 255 : i32
    %320 = vector.broadcast %c255_i32 : i32 to vector<1x1xi32>
    %321 = arith.ori %319, %320 : vector<1x1xi32>
    %322 = vector.broadcast %321 : vector<1x1xi32> to vector<8x256xi32>
    %323 = arith.cmpi sle, %10, %322 : vector<8x256xi32>
    %324 = arith.extui %323 : vector<8x256xi1> to vector<8x256xi32>
    %cst_71 = arith.constant dense<0> : vector<8xi32>
    %325 = vector.multi_reduction <add>, %324, %cst_71 [1] : vector<8x256xi32> to vector<8xi32>
    %326 = vector.shape_cast %325 : vector<8xi32> to vector<8x1xi32>
    %cst_72 = arith.constant dense<0> : vector<1xi32>
    %327 = vector.multi_reduction <add>, %326, %cst_72 [0] : vector<8x1xi32> to vector<1xi32>
    %328 = vector.shape_cast %327 : vector<1xi32> to vector<1x1xi32>
    %c1025_i32_73 = arith.constant 1025 : i32
    %329 = vector.broadcast %c1025_i32_73 : i32 to vector<1x1xi32>
    %330 = arith.cmpi sge, %328, %329 : vector<1x1xi32>
    %c256_i32 = arith.constant 256 : i32
    %331 = vector.broadcast %c256_i32 : i32 to vector<1x1xi32>
    %332 = arith.ori %319, %331 : vector<1x1xi32>
    %333 = arith.select %330, %319, %332 : vector<1x1xi1>, vector<1x1xi32>
    %c127_i32 = arith.constant 127 : i32
    %334 = vector.broadcast %c127_i32 : i32 to vector<1x1xi32>
    %335 = arith.ori %333, %334 : vector<1x1xi32>
    %336 = vector.broadcast %335 : vector<1x1xi32> to vector<8x256xi32>
    %337 = arith.cmpi sle, %10, %336 : vector<8x256xi32>
    %338 = arith.extui %337 : vector<8x256xi1> to vector<8x256xi32>
    %cst_74 = arith.constant dense<0> : vector<8xi32>
    %339 = vector.multi_reduction <add>, %338, %cst_74 [1] : vector<8x256xi32> to vector<8xi32>
    %340 = vector.shape_cast %339 : vector<8xi32> to vector<8x1xi32>
    %cst_75 = arith.constant dense<0> : vector<1xi32>
    %341 = vector.multi_reduction <add>, %340, %cst_75 [0] : vector<8x1xi32> to vector<1xi32>
    %342 = vector.shape_cast %341 : vector<1xi32> to vector<1x1xi32>
    %c1025_i32_76 = arith.constant 1025 : i32
    %343 = vector.broadcast %c1025_i32_76 : i32 to vector<1x1xi32>
    %344 = arith.cmpi sge, %342, %343 : vector<1x1xi32>
    %c128_i32 = arith.constant 128 : i32
    %345 = vector.broadcast %c128_i32 : i32 to vector<1x1xi32>
    %346 = arith.ori %333, %345 : vector<1x1xi32>
    %347 = arith.select %344, %333, %346 : vector<1x1xi1>, vector<1x1xi32>
    %c63_i32 = arith.constant 63 : i32
    %348 = vector.broadcast %c63_i32 : i32 to vector<1x1xi32>
    %349 = arith.ori %347, %348 : vector<1x1xi32>
    %350 = vector.broadcast %349 : vector<1x1xi32> to vector<8x256xi32>
    %351 = arith.cmpi sle, %10, %350 : vector<8x256xi32>
    %352 = arith.extui %351 : vector<8x256xi1> to vector<8x256xi32>
    %cst_77 = arith.constant dense<0> : vector<8xi32>
    %353 = vector.multi_reduction <add>, %352, %cst_77 [1] : vector<8x256xi32> to vector<8xi32>
    %354 = vector.shape_cast %353 : vector<8xi32> to vector<8x1xi32>
    %cst_78 = arith.constant dense<0> : vector<1xi32>
    %355 = vector.multi_reduction <add>, %354, %cst_78 [0] : vector<8x1xi32> to vector<1xi32>
    %356 = vector.shape_cast %355 : vector<1xi32> to vector<1x1xi32>
    %c1025_i32_79 = arith.constant 1025 : i32
    %357 = vector.broadcast %c1025_i32_79 : i32 to vector<1x1xi32>
    %358 = arith.cmpi sge, %356, %357 : vector<1x1xi32>
    %c64_i32 = arith.constant 64 : i32
    %359 = vector.broadcast %c64_i32 : i32 to vector<1x1xi32>
    %360 = arith.ori %347, %359 : vector<1x1xi32>
    %361 = arith.select %358, %347, %360 : vector<1x1xi1>, vector<1x1xi32>
    %c31_i32 = arith.constant 31 : i32
    %362 = vector.broadcast %c31_i32 : i32 to vector<1x1xi32>
    %363 = arith.ori %361, %362 : vector<1x1xi32>
    %364 = vector.broadcast %363 : vector<1x1xi32> to vector<8x256xi32>
    %365 = arith.cmpi sle, %10, %364 : vector<8x256xi32>
    %366 = arith.extui %365 : vector<8x256xi1> to vector<8x256xi32>
    %cst_80 = arith.constant dense<0> : vector<8xi32>
    %367 = vector.multi_reduction <add>, %366, %cst_80 [1] : vector<8x256xi32> to vector<8xi32>
    %368 = vector.shape_cast %367 : vector<8xi32> to vector<8x1xi32>
    %cst_81 = arith.constant dense<0> : vector<1xi32>
    %369 = vector.multi_reduction <add>, %368, %cst_81 [0] : vector<8x1xi32> to vector<1xi32>
    %370 = vector.shape_cast %369 : vector<1xi32> to vector<1x1xi32>
    %c1025_i32_82 = arith.constant 1025 : i32
    %371 = vector.broadcast %c1025_i32_82 : i32 to vector<1x1xi32>
    %372 = arith.cmpi sge, %370, %371 : vector<1x1xi32>
    %c32_i32 = arith.constant 32 : i32
    %373 = vector.broadcast %c32_i32 : i32 to vector<1x1xi32>
    %374 = arith.ori %361, %373 : vector<1x1xi32>
    %375 = arith.select %372, %361, %374 : vector<1x1xi1>, vector<1x1xi32>
    %c15_i32 = arith.constant 15 : i32
    %376 = vector.broadcast %c15_i32 : i32 to vector<1x1xi32>
    %377 = arith.ori %375, %376 : vector<1x1xi32>
    %378 = vector.broadcast %377 : vector<1x1xi32> to vector<8x256xi32>
    %379 = arith.cmpi sle, %10, %378 : vector<8x256xi32>
    %380 = arith.extui %379 : vector<8x256xi1> to vector<8x256xi32>
    %cst_83 = arith.constant dense<0> : vector<8xi32>
    %381 = vector.multi_reduction <add>, %380, %cst_83 [1] : vector<8x256xi32> to vector<8xi32>
    %382 = vector.shape_cast %381 : vector<8xi32> to vector<8x1xi32>
    %cst_84 = arith.constant dense<0> : vector<1xi32>
    %383 = vector.multi_reduction <add>, %382, %cst_84 [0] : vector<8x1xi32> to vector<1xi32>
    %384 = vector.shape_cast %383 : vector<1xi32> to vector<1x1xi32>
    %c1025_i32_85 = arith.constant 1025 : i32
    %385 = vector.broadcast %c1025_i32_85 : i32 to vector<1x1xi32>
    %386 = arith.cmpi sge, %384, %385 : vector<1x1xi32>
    %c16_i32 = arith.constant 16 : i32
    %387 = vector.broadcast %c16_i32 : i32 to vector<1x1xi32>
    %388 = arith.ori %375, %387 : vector<1x1xi32>
    %389 = arith.select %386, %375, %388 : vector<1x1xi1>, vector<1x1xi32>
    %c7_i32 = arith.constant 7 : i32
    %390 = vector.broadcast %c7_i32 : i32 to vector<1x1xi32>
    %391 = arith.ori %389, %390 : vector<1x1xi32>
    %392 = vector.broadcast %391 : vector<1x1xi32> to vector<8x256xi32>
    %393 = arith.cmpi sle, %10, %392 : vector<8x256xi32>
    %394 = arith.extui %393 : vector<8x256xi1> to vector<8x256xi32>
    %cst_86 = arith.constant dense<0> : vector<8xi32>
    %395 = vector.multi_reduction <add>, %394, %cst_86 [1] : vector<8x256xi32> to vector<8xi32>
    %396 = vector.shape_cast %395 : vector<8xi32> to vector<8x1xi32>
    %cst_87 = arith.constant dense<0> : vector<1xi32>
    %397 = vector.multi_reduction <add>, %396, %cst_87 [0] : vector<8x1xi32> to vector<1xi32>
    %398 = vector.shape_cast %397 : vector<1xi32> to vector<1x1xi32>
    %c1025_i32_88 = arith.constant 1025 : i32
    %399 = vector.broadcast %c1025_i32_88 : i32 to vector<1x1xi32>
    %400 = arith.cmpi sge, %398, %399 : vector<1x1xi32>
    %c8_i32 = arith.constant 8 : i32
    %401 = vector.broadcast %c8_i32 : i32 to vector<1x1xi32>
    %402 = arith.ori %389, %401 : vector<1x1xi32>
    %403 = arith.select %400, %389, %402 : vector<1x1xi1>, vector<1x1xi32>
    %c3_i32 = arith.constant 3 : i32
    %404 = vector.broadcast %c3_i32 : i32 to vector<1x1xi32>
    %405 = arith.ori %403, %404 : vector<1x1xi32>
    %406 = vector.broadcast %405 : vector<1x1xi32> to vector<8x256xi32>
    %407 = arith.cmpi sle, %10, %406 : vector<8x256xi32>
    %408 = arith.extui %407 : vector<8x256xi1> to vector<8x256xi32>
    %cst_89 = arith.constant dense<0> : vector<8xi32>
    %409 = vector.multi_reduction <add>, %408, %cst_89 [1] : vector<8x256xi32> to vector<8xi32>
    %410 = vector.shape_cast %409 : vector<8xi32> to vector<8x1xi32>
    %cst_90 = arith.constant dense<0> : vector<1xi32>
    %411 = vector.multi_reduction <add>, %410, %cst_90 [0] : vector<8x1xi32> to vector<1xi32>
    %412 = vector.shape_cast %411 : vector<1xi32> to vector<1x1xi32>
    %c1025_i32_91 = arith.constant 1025 : i32
    %413 = vector.broadcast %c1025_i32_91 : i32 to vector<1x1xi32>
    %414 = arith.cmpi sge, %412, %413 : vector<1x1xi32>
    %c4_i32 = arith.constant 4 : i32
    %415 = vector.broadcast %c4_i32 : i32 to vector<1x1xi32>
    %416 = arith.ori %403, %415 : vector<1x1xi32>
    %417 = arith.select %414, %403, %416 : vector<1x1xi1>, vector<1x1xi32>
    %c1_i32 = arith.constant 1 : i32
    %418 = vector.broadcast %c1_i32 : i32 to vector<1x1xi32>
    %419 = arith.ori %417, %418 : vector<1x1xi32>
    %420 = vector.broadcast %419 : vector<1x1xi32> to vector<8x256xi32>
    %421 = arith.cmpi sle, %10, %420 : vector<8x256xi32>
    %422 = arith.extui %421 : vector<8x256xi1> to vector<8x256xi32>
    %cst_92 = arith.constant dense<0> : vector<8xi32>
    %423 = vector.multi_reduction <add>, %422, %cst_92 [1] : vector<8x256xi32> to vector<8xi32>
    %424 = vector.shape_cast %423 : vector<8xi32> to vector<8x1xi32>
    %cst_93 = arith.constant dense<0> : vector<1xi32>
    %425 = vector.multi_reduction <add>, %424, %cst_93 [0] : vector<8x1xi32> to vector<1xi32>
    %426 = vector.shape_cast %425 : vector<1xi32> to vector<1x1xi32>
    %c1025_i32_94 = arith.constant 1025 : i32
    %427 = vector.broadcast %c1025_i32_94 : i32 to vector<1x1xi32>
    %428 = arith.cmpi sge, %426, %427 : vector<1x1xi32>
    %c2_i32 = arith.constant 2 : i32
    %429 = vector.broadcast %c2_i32 : i32 to vector<1x1xi32>
    %430 = arith.ori %417, %429 : vector<1x1xi32>
    %431 = arith.select %428, %417, %430 : vector<1x1xi1>, vector<1x1xi32>
    %c0_i32_95 = arith.constant 0 : i32
    %432 = vector.broadcast %c0_i32_95 : i32 to vector<1x1xi32>
    %433 = arith.ori %431, %432 : vector<1x1xi32>
    %434 = vector.broadcast %433 : vector<1x1xi32> to vector<8x256xi32>
    %435 = arith.cmpi sle, %10, %434 : vector<8x256xi32>
    %436 = arith.extui %435 : vector<8x256xi1> to vector<8x256xi32>
    %cst_96 = arith.constant dense<0> : vector<8xi32>
    %437 = vector.multi_reduction <add>, %436, %cst_96 [1] : vector<8x256xi32> to vector<8xi32>
    %438 = vector.shape_cast %437 : vector<8xi32> to vector<8x1xi32>
    %cst_97 = arith.constant dense<0> : vector<1xi32>
    %439 = vector.multi_reduction <add>, %438, %cst_97 [0] : vector<8x1xi32> to vector<1xi32>
    %440 = vector.shape_cast %439 : vector<1xi32> to vector<1x1xi32>
    %c1025_i32_98 = arith.constant 1025 : i32
    %441 = vector.broadcast %c1025_i32_98 : i32 to vector<1x1xi32>
    %442 = arith.cmpi sge, %440, %441 : vector<1x1xi32>
    %c1_i32_99 = arith.constant 1 : i32
    %443 = vector.broadcast %c1_i32_99 : i32 to vector<1x1xi32>
    %444 = arith.ori %431, %443 : vector<1x1xi32>
    %445 = arith.select %442, %431, %444 : vector<1x1xi1>, vector<1x1xi32>
    %446 = vector.broadcast %445 : vector<1x1xi32> to vector<8x256xi32>
    %447 = arith.cmpi sge, %10, %446 : vector<8x256xi32>
    %cst_100 = arith.constant 0.000000e+00 : f32
    %448 = vector.broadcast %cst_100 : f32 to vector<8x256xf32>
    %449 = arith.select %447, %8, %448 : vector<8x256xi1>, vector<8x256xf32>
    %450 = arith.truncf %449 : vector<8x256xf32> to vector<8x256xbf16>
    %c0_101 = arith.constant 0 : index
    %c0_102 = arith.constant 0 : index
    %451 = vector.load %arg4[%c0_101, %c0_102] : memref<256x128xbf16, #tpu.memory_space<vmem>>, vector<256x128xbf16>
    %cst_103 = arith.constant dense<0.000000e+00> : vector<8x128xf32>
    %452 = tpu.matmul %450, %451, %cst_103 {dimension_numbers = #tpu.dot_dimension_numbers<[1], [0], [0], [1], [0, 0, 1, 1], [], []>} : vector<8x256xbf16>, vector<256x128xbf16>, vector<8x128xf32> -> vector<8x128xf32>
    %c0_104 = arith.constant 0 : index
    %c0_105 = arith.constant 0 : index
    %453 = vector.load %arg5[%c0_104, %c0_105] : memref<1x128xf32, #tpu.memory_space<vmem>>, vector<1x128xf32>
    %454 = vector.broadcast %453 : vector<1x128xf32> to vector<8x128xf32>
    %455 = arith.addf %452, %454 : vector<8x128xf32>
    %cst_106 = arith.constant 0.000000e+00 : f32
    %456 = vector.broadcast %cst_106 : f32 to vector<8x128xf32>
    %457 = arith.maximumf %455, %456 : vector<8x128xf32>
    %458 = math.absf %457 : vector<8x128xf32>
    %459 = tpu.bitcast %458 : vector<8x128xf32> -> vector<8x128xi32>
    %c0_i32_107 = arith.constant 0 : i32
    %460 = vector.broadcast %c0_i32_107 : i32 to vector<1x1xi32>
    %c1073741823_i32_108 = arith.constant 1073741823 : i32
    %461 = vector.broadcast %c1073741823_i32_108 : i32 to vector<1x1xi32>
    %462 = arith.ori %460, %461 : vector<1x1xi32>
    %463 = vector.broadcast %462 : vector<1x1xi32> to vector<8x128xi32>
    %464 = arith.cmpi sle, %459, %463 : vector<8x128xi32>
    %465 = arith.extui %464 : vector<8x128xi1> to vector<8x128xi32>
    %cst_109 = arith.constant dense<0> : vector<8xi32>
    %466 = vector.multi_reduction <add>, %465, %cst_109 [1] : vector<8x128xi32> to vector<8xi32>
    %467 = vector.shape_cast %466 : vector<8xi32> to vector<8x1xi32>
    %cst_110 = arith.constant dense<0> : vector<1xi32>
    %468 = vector.multi_reduction <add>, %467, %cst_110 [0] : vector<8x1xi32> to vector<1xi32>
    %469 = vector.shape_cast %468 : vector<1xi32> to vector<1x1xi32>
    %c513_i32 = arith.constant 513 : i32
    %470 = vector.broadcast %c513_i32 : i32 to vector<1x1xi32>
    %471 = arith.cmpi sge, %469, %470 : vector<1x1xi32>
    %c1073741824_i32_111 = arith.constant 1073741824 : i32
    %472 = vector.broadcast %c1073741824_i32_111 : i32 to vector<1x1xi32>
    %473 = arith.ori %460, %472 : vector<1x1xi32>
    %474 = arith.select %471, %460, %473 : vector<1x1xi1>, vector<1x1xi32>
    %c536870911_i32_112 = arith.constant 536870911 : i32
    %475 = vector.broadcast %c536870911_i32_112 : i32 to vector<1x1xi32>
    %476 = arith.ori %474, %475 : vector<1x1xi32>
    %477 = vector.broadcast %476 : vector<1x1xi32> to vector<8x128xi32>
    %478 = arith.cmpi sle, %459, %477 : vector<8x128xi32>
    %479 = arith.extui %478 : vector<8x128xi1> to vector<8x128xi32>
    %cst_113 = arith.constant dense<0> : vector<8xi32>
    %480 = vector.multi_reduction <add>, %479, %cst_113 [1] : vector<8x128xi32> to vector<8xi32>
    %481 = vector.shape_cast %480 : vector<8xi32> to vector<8x1xi32>
    %cst_114 = arith.constant dense<0> : vector<1xi32>
    %482 = vector.multi_reduction <add>, %481, %cst_114 [0] : vector<8x1xi32> to vector<1xi32>
    %483 = vector.shape_cast %482 : vector<1xi32> to vector<1x1xi32>
    %c513_i32_115 = arith.constant 513 : i32
    %484 = vector.broadcast %c513_i32_115 : i32 to vector<1x1xi32>
    %485 = arith.cmpi sge, %483, %484 : vector<1x1xi32>
    %c536870912_i32_116 = arith.constant 536870912 : i32
    %486 = vector.broadcast %c536870912_i32_116 : i32 to vector<1x1xi32>
    %487 = arith.ori %474, %486 : vector<1x1xi32>
    %488 = arith.select %485, %474, %487 : vector<1x1xi1>, vector<1x1xi32>
    %c268435455_i32_117 = arith.constant 268435455 : i32
    %489 = vector.broadcast %c268435455_i32_117 : i32 to vector<1x1xi32>
    %490 = arith.ori %488, %489 : vector<1x1xi32>
    %491 = vector.broadcast %490 : vector<1x1xi32> to vector<8x128xi32>
    %492 = arith.cmpi sle, %459, %491 : vector<8x128xi32>
    %493 = arith.extui %492 : vector<8x128xi1> to vector<8x128xi32>
    %cst_118 = arith.constant dense<0> : vector<8xi32>
    %494 = vector.multi_reduction <add>, %493, %cst_118 [1] : vector<8x128xi32> to vector<8xi32>
    %495 = vector.shape_cast %494 : vector<8xi32> to vector<8x1xi32>
    %cst_119 = arith.constant dense<0> : vector<1xi32>
    %496 = vector.multi_reduction <add>, %495, %cst_119 [0] : vector<8x1xi32> to vector<1xi32>
    %497 = vector.shape_cast %496 : vector<1xi32> to vector<1x1xi32>
    %c513_i32_120 = arith.constant 513 : i32
    %498 = vector.broadcast %c513_i32_120 : i32 to vector<1x1xi32>
    %499 = arith.cmpi sge, %497, %498 : vector<1x1xi32>
    %c268435456_i32_121 = arith.constant 268435456 : i32
    %500 = vector.broadcast %c268435456_i32_121 : i32 to vector<1x1xi32>
    %501 = arith.ori %488, %500 : vector<1x1xi32>
    %502 = arith.select %499, %488, %501 : vector<1x1xi1>, vector<1x1xi32>
    %c134217727_i32_122 = arith.constant 134217727 : i32
    %503 = vector.broadcast %c134217727_i32_122 : i32 to vector<1x1xi32>
    %504 = arith.ori %502, %503 : vector<1x1xi32>
    %505 = vector.broadcast %504 : vector<1x1xi32> to vector<8x128xi32>
    %506 = arith.cmpi sle, %459, %505 : vector<8x128xi32>
    %507 = arith.extui %506 : vector<8x128xi1> to vector<8x128xi32>
    %cst_123 = arith.constant dense<0> : vector<8xi32>
    %508 = vector.multi_reduction <add>, %507, %cst_123 [1] : vector<8x128xi32> to vector<8xi32>
    %509 = vector.shape_cast %508 : vector<8xi32> to vector<8x1xi32>
    %cst_124 = arith.constant dense<0> : vector<1xi32>
    %510 = vector.multi_reduction <add>, %509, %cst_124 [0] : vector<8x1xi32> to vector<1xi32>
    %511 = vector.shape_cast %510 : vector<1xi32> to vector<1x1xi32>
    %c513_i32_125 = arith.constant 513 : i32
    %512 = vector.broadcast %c513_i32_125 : i32 to vector<1x1xi32>
    %513 = arith.cmpi sge, %511, %512 : vector<1x1xi32>
    %c134217728_i32_126 = arith.constant 134217728 : i32
    %514 = vector.broadcast %c134217728_i32_126 : i32 to vector<1x1xi32>
    %515 = arith.ori %502, %514 : vector<1x1xi32>
    %516 = arith.select %513, %502, %515 : vector<1x1xi1>, vector<1x1xi32>
    %c67108863_i32_127 = arith.constant 67108863 : i32
    %517 = vector.broadcast %c67108863_i32_127 : i32 to vector<1x1xi32>
    %518 = arith.ori %516, %517 : vector<1x1xi32>
    %519 = vector.broadcast %518 : vector<1x1xi32> to vector<8x128xi32>
    %520 = arith.cmpi sle, %459, %519 : vector<8x128xi32>
    %521 = arith.extui %520 : vector<8x128xi1> to vector<8x128xi32>
    %cst_128 = arith.constant dense<0> : vector<8xi32>
    %522 = vector.multi_reduction <add>, %521, %cst_128 [1] : vector<8x128xi32> to vector<8xi32>
    %523 = vector.shape_cast %522 : vector<8xi32> to vector<8x1xi32>
    %cst_129 = arith.constant dense<0> : vector<1xi32>
    %524 = vector.multi_reduction <add>, %523, %cst_129 [0] : vector<8x1xi32> to vector<1xi32>
    %525 = vector.shape_cast %524 : vector<1xi32> to vector<1x1xi32>
    %c513_i32_130 = arith.constant 513 : i32
    %526 = vector.broadcast %c513_i32_130 : i32 to vector<1x1xi32>
    %527 = arith.cmpi sge, %525, %526 : vector<1x1xi32>
    %c67108864_i32_131 = arith.constant 67108864 : i32
    %528 = vector.broadcast %c67108864_i32_131 : i32 to vector<1x1xi32>
    %529 = arith.ori %516, %528 : vector<1x1xi32>
    %530 = arith.select %527, %516, %529 : vector<1x1xi1>, vector<1x1xi32>
    %c33554431_i32_132 = arith.constant 33554431 : i32
    %531 = vector.broadcast %c33554431_i32_132 : i32 to vector<1x1xi32>
    %532 = arith.ori %530, %531 : vector<1x1xi32>
    %533 = vector.broadcast %532 : vector<1x1xi32> to vector<8x128xi32>
    %534 = arith.cmpi sle, %459, %533 : vector<8x128xi32>
    %535 = arith.extui %534 : vector<8x128xi1> to vector<8x128xi32>
    %cst_133 = arith.constant dense<0> : vector<8xi32>
    %536 = vector.multi_reduction <add>, %535, %cst_133 [1] : vector<8x128xi32> to vector<8xi32>
    %537 = vector.shape_cast %536 : vector<8xi32> to vector<8x1xi32>
    %cst_134 = arith.constant dense<0> : vector<1xi32>
    %538 = vector.multi_reduction <add>, %537, %cst_134 [0] : vector<8x1xi32> to vector<1xi32>
    %539 = vector.shape_cast %538 : vector<1xi32> to vector<1x1xi32>
    %c513_i32_135 = arith.constant 513 : i32
    %540 = vector.broadcast %c513_i32_135 : i32 to vector<1x1xi32>
    %541 = arith.cmpi sge, %539, %540 : vector<1x1xi32>
    %c33554432_i32_136 = arith.constant 33554432 : i32
    %542 = vector.broadcast %c33554432_i32_136 : i32 to vector<1x1xi32>
    %543 = arith.ori %530, %542 : vector<1x1xi32>
    %544 = arith.select %541, %530, %543 : vector<1x1xi1>, vector<1x1xi32>
    %c16777215_i32_137 = arith.constant 16777215 : i32
    %545 = vector.broadcast %c16777215_i32_137 : i32 to vector<1x1xi32>
    %546 = arith.ori %544, %545 : vector<1x1xi32>
    %547 = vector.broadcast %546 : vector<1x1xi32> to vector<8x128xi32>
    %548 = arith.cmpi sle, %459, %547 : vector<8x128xi32>
    %549 = arith.extui %548 : vector<8x128xi1> to vector<8x128xi32>
    %cst_138 = arith.constant dense<0> : vector<8xi32>
    %550 = vector.multi_reduction <add>, %549, %cst_138 [1] : vector<8x128xi32> to vector<8xi32>
    %551 = vector.shape_cast %550 : vector<8xi32> to vector<8x1xi32>
    %cst_139 = arith.constant dense<0> : vector<1xi32>
    %552 = vector.multi_reduction <add>, %551, %cst_139 [0] : vector<8x1xi32> to vector<1xi32>
    %553 = vector.shape_cast %552 : vector<1xi32> to vector<1x1xi32>
    %c513_i32_140 = arith.constant 513 : i32
    %554 = vector.broadcast %c513_i32_140 : i32 to vector<1x1xi32>
    %555 = arith.cmpi sge, %553, %554 : vector<1x1xi32>
    %c16777216_i32_141 = arith.constant 16777216 : i32
    %556 = vector.broadcast %c16777216_i32_141 : i32 to vector<1x1xi32>
    %557 = arith.ori %544, %556 : vector<1x1xi32>
    %558 = arith.select %555, %544, %557 : vector<1x1xi1>, vector<1x1xi32>
    %c8388607_i32_142 = arith.constant 8388607 : i32
    %559 = vector.broadcast %c8388607_i32_142 : i32 to vector<1x1xi32>
    %560 = arith.ori %558, %559 : vector<1x1xi32>
    %561 = vector.broadcast %560 : vector<1x1xi32> to vector<8x128xi32>
    %562 = arith.cmpi sle, %459, %561 : vector<8x128xi32>
    %563 = arith.extui %562 : vector<8x128xi1> to vector<8x128xi32>
    %cst_143 = arith.constant dense<0> : vector<8xi32>
    %564 = vector.multi_reduction <add>, %563, %cst_143 [1] : vector<8x128xi32> to vector<8xi32>
    %565 = vector.shape_cast %564 : vector<8xi32> to vector<8x1xi32>
    %cst_144 = arith.constant dense<0> : vector<1xi32>
    %566 = vector.multi_reduction <add>, %565, %cst_144 [0] : vector<8x1xi32> to vector<1xi32>
    %567 = vector.shape_cast %566 : vector<1xi32> to vector<1x1xi32>
    %c513_i32_145 = arith.constant 513 : i32
    %568 = vector.broadcast %c513_i32_145 : i32 to vector<1x1xi32>
    %569 = arith.cmpi sge, %567, %568 : vector<1x1xi32>
    %c8388608_i32_146 = arith.constant 8388608 : i32
    %570 = vector.broadcast %c8388608_i32_146 : i32 to vector<1x1xi32>
    %571 = arith.ori %558, %570 : vector<1x1xi32>
    %572 = arith.select %569, %558, %571 : vector<1x1xi1>, vector<1x1xi32>
    %c4194303_i32_147 = arith.constant 4194303 : i32
    %573 = vector.broadcast %c4194303_i32_147 : i32 to vector<1x1xi32>
    %574 = arith.ori %572, %573 : vector<1x1xi32>
    %575 = vector.broadcast %574 : vector<1x1xi32> to vector<8x128xi32>
    %576 = arith.cmpi sle, %459, %575 : vector<8x128xi32>
    %577 = arith.extui %576 : vector<8x128xi1> to vector<8x128xi32>
    %cst_148 = arith.constant dense<0> : vector<8xi32>
    %578 = vector.multi_reduction <add>, %577, %cst_148 [1] : vector<8x128xi32> to vector<8xi32>
    %579 = vector.shape_cast %578 : vector<8xi32> to vector<8x1xi32>
    %cst_149 = arith.constant dense<0> : vector<1xi32>
    %580 = vector.multi_reduction <add>, %579, %cst_149 [0] : vector<8x1xi32> to vector<1xi32>
    %581 = vector.shape_cast %580 : vector<1xi32> to vector<1x1xi32>
    %c513_i32_150 = arith.constant 513 : i32
    %582 = vector.broadcast %c513_i32_150 : i32 to vector<1x1xi32>
    %583 = arith.cmpi sge, %581, %582 : vector<1x1xi32>
    %c4194304_i32_151 = arith.constant 4194304 : i32
    %584 = vector.broadcast %c4194304_i32_151 : i32 to vector<1x1xi32>
    %585 = arith.ori %572, %584 : vector<1x1xi32>
    %586 = arith.select %583, %572, %585 : vector<1x1xi1>, vector<1x1xi32>
    %c2097151_i32_152 = arith.constant 2097151 : i32
    %587 = vector.broadcast %c2097151_i32_152 : i32 to vector<1x1xi32>
    %588 = arith.ori %586, %587 : vector<1x1xi32>
    %589 = vector.broadcast %588 : vector<1x1xi32> to vector<8x128xi32>
    %590 = arith.cmpi sle, %459, %589 : vector<8x128xi32>
    %591 = arith.extui %590 : vector<8x128xi1> to vector<8x128xi32>
    %cst_153 = arith.constant dense<0> : vector<8xi32>
    %592 = vector.multi_reduction <add>, %591, %cst_153 [1] : vector<8x128xi32> to vector<8xi32>
    %593 = vector.shape_cast %592 : vector<8xi32> to vector<8x1xi32>
    %cst_154 = arith.constant dense<0> : vector<1xi32>
    %594 = vector.multi_reduction <add>, %593, %cst_154 [0] : vector<8x1xi32> to vector<1xi32>
    %595 = vector.shape_cast %594 : vector<1xi32> to vector<1x1xi32>
    %c513_i32_155 = arith.constant 513 : i32
    %596 = vector.broadcast %c513_i32_155 : i32 to vector<1x1xi32>
    %597 = arith.cmpi sge, %595, %596 : vector<1x1xi32>
    %c2097152_i32_156 = arith.constant 2097152 : i32
    %598 = vector.broadcast %c2097152_i32_156 : i32 to vector<1x1xi32>
    %599 = arith.ori %586, %598 : vector<1x1xi32>
    %600 = arith.select %597, %586, %599 : vector<1x1xi1>, vector<1x1xi32>
    %c1048575_i32_157 = arith.constant 1048575 : i32
    %601 = vector.broadcast %c1048575_i32_157 : i32 to vector<1x1xi32>
    %602 = arith.ori %600, %601 : vector<1x1xi32>
    %603 = vector.broadcast %602 : vector<1x1xi32> to vector<8x128xi32>
    %604 = arith.cmpi sle, %459, %603 : vector<8x128xi32>
    %605 = arith.extui %604 : vector<8x128xi1> to vector<8x128xi32>
    %cst_158 = arith.constant dense<0> : vector<8xi32>
    %606 = vector.multi_reduction <add>, %605, %cst_158 [1] : vector<8x128xi32> to vector<8xi32>
    %607 = vector.shape_cast %606 : vector<8xi32> to vector<8x1xi32>
    %cst_159 = arith.constant dense<0> : vector<1xi32>
    %608 = vector.multi_reduction <add>, %607, %cst_159 [0] : vector<8x1xi32> to vector<1xi32>
    %609 = vector.shape_cast %608 : vector<1xi32> to vector<1x1xi32>
    %c513_i32_160 = arith.constant 513 : i32
    %610 = vector.broadcast %c513_i32_160 : i32 to vector<1x1xi32>
    %611 = arith.cmpi sge, %609, %610 : vector<1x1xi32>
    %c1048576_i32_161 = arith.constant 1048576 : i32
    %612 = vector.broadcast %c1048576_i32_161 : i32 to vector<1x1xi32>
    %613 = arith.ori %600, %612 : vector<1x1xi32>
    %614 = arith.select %611, %600, %613 : vector<1x1xi1>, vector<1x1xi32>
    %c524287_i32_162 = arith.constant 524287 : i32
    %615 = vector.broadcast %c524287_i32_162 : i32 to vector<1x1xi32>
    %616 = arith.ori %614, %615 : vector<1x1xi32>
    %617 = vector.broadcast %616 : vector<1x1xi32> to vector<8x128xi32>
    %618 = arith.cmpi sle, %459, %617 : vector<8x128xi32>
    %619 = arith.extui %618 : vector<8x128xi1> to vector<8x128xi32>
    %cst_163 = arith.constant dense<0> : vector<8xi32>
    %620 = vector.multi_reduction <add>, %619, %cst_163 [1] : vector<8x128xi32> to vector<8xi32>
    %621 = vector.shape_cast %620 : vector<8xi32> to vector<8x1xi32>
    %cst_164 = arith.constant dense<0> : vector<1xi32>
    %622 = vector.multi_reduction <add>, %621, %cst_164 [0] : vector<8x1xi32> to vector<1xi32>
    %623 = vector.shape_cast %622 : vector<1xi32> to vector<1x1xi32>
    %c513_i32_165 = arith.constant 513 : i32
    %624 = vector.broadcast %c513_i32_165 : i32 to vector<1x1xi32>
    %625 = arith.cmpi sge, %623, %624 : vector<1x1xi32>
    %c524288_i32_166 = arith.constant 524288 : i32
    %626 = vector.broadcast %c524288_i32_166 : i32 to vector<1x1xi32>
    %627 = arith.ori %614, %626 : vector<1x1xi32>
    %628 = arith.select %625, %614, %627 : vector<1x1xi1>, vector<1x1xi32>
    %c262143_i32_167 = arith.constant 262143 : i32
    %629 = vector.broadcast %c262143_i32_167 : i32 to vector<1x1xi32>
    %630 = arith.ori %628, %629 : vector<1x1xi32>
    %631 = vector.broadcast %630 : vector<1x1xi32> to vector<8x128xi32>
    %632 = arith.cmpi sle, %459, %631 : vector<8x128xi32>
    %633 = arith.extui %632 : vector<8x128xi1> to vector<8x128xi32>
    %cst_168 = arith.constant dense<0> : vector<8xi32>
    %634 = vector.multi_reduction <add>, %633, %cst_168 [1] : vector<8x128xi32> to vector<8xi32>
    %635 = vector.shape_cast %634 : vector<8xi32> to vector<8x1xi32>
    %cst_169 = arith.constant dense<0> : vector<1xi32>
    %636 = vector.multi_reduction <add>, %635, %cst_169 [0] : vector<8x1xi32> to vector<1xi32>
    %637 = vector.shape_cast %636 : vector<1xi32> to vector<1x1xi32>
    %c513_i32_170 = arith.constant 513 : i32
    %638 = vector.broadcast %c513_i32_170 : i32 to vector<1x1xi32>
    %639 = arith.cmpi sge, %637, %638 : vector<1x1xi32>
    %c262144_i32_171 = arith.constant 262144 : i32
    %640 = vector.broadcast %c262144_i32_171 : i32 to vector<1x1xi32>
    %641 = arith.ori %628, %640 : vector<1x1xi32>
    %642 = arith.select %639, %628, %641 : vector<1x1xi1>, vector<1x1xi32>
    %c131071_i32_172 = arith.constant 131071 : i32
    %643 = vector.broadcast %c131071_i32_172 : i32 to vector<1x1xi32>
    %644 = arith.ori %642, %643 : vector<1x1xi32>
    %645 = vector.broadcast %644 : vector<1x1xi32> to vector<8x128xi32>
    %646 = arith.cmpi sle, %459, %645 : vector<8x128xi32>
    %647 = arith.extui %646 : vector<8x128xi1> to vector<8x128xi32>
    %cst_173 = arith.constant dense<0> : vector<8xi32>
    %648 = vector.multi_reduction <add>, %647, %cst_173 [1] : vector<8x128xi32> to vector<8xi32>
    %649 = vector.shape_cast %648 : vector<8xi32> to vector<8x1xi32>
    %cst_174 = arith.constant dense<0> : vector<1xi32>
    %650 = vector.multi_reduction <add>, %649, %cst_174 [0] : vector<8x1xi32> to vector<1xi32>
    %651 = vector.shape_cast %650 : vector<1xi32> to vector<1x1xi32>
    %c513_i32_175 = arith.constant 513 : i32
    %652 = vector.broadcast %c513_i32_175 : i32 to vector<1x1xi32>
    %653 = arith.cmpi sge, %651, %652 : vector<1x1xi32>
    %c131072_i32_176 = arith.constant 131072 : i32
    %654 = vector.broadcast %c131072_i32_176 : i32 to vector<1x1xi32>
    %655 = arith.ori %642, %654 : vector<1x1xi32>
    %656 = arith.select %653, %642, %655 : vector<1x1xi1>, vector<1x1xi32>
    %c65535_i32_177 = arith.constant 65535 : i32
    %657 = vector.broadcast %c65535_i32_177 : i32 to vector<1x1xi32>
    %658 = arith.ori %656, %657 : vector<1x1xi32>
    %659 = vector.broadcast %658 : vector<1x1xi32> to vector<8x128xi32>
    %660 = arith.cmpi sle, %459, %659 : vector<8x128xi32>
    %661 = arith.extui %660 : vector<8x128xi1> to vector<8x128xi32>
    %cst_178 = arith.constant dense<0> : vector<8xi32>
    %662 = vector.multi_reduction <add>, %661, %cst_178 [1] : vector<8x128xi32> to vector<8xi32>
    %663 = vector.shape_cast %662 : vector<8xi32> to vector<8x1xi32>
    %cst_179 = arith.constant dense<0> : vector<1xi32>
    %664 = vector.multi_reduction <add>, %663, %cst_179 [0] : vector<8x1xi32> to vector<1xi32>
    %665 = vector.shape_cast %664 : vector<1xi32> to vector<1x1xi32>
    %c513_i32_180 = arith.constant 513 : i32
    %666 = vector.broadcast %c513_i32_180 : i32 to vector<1x1xi32>
    %667 = arith.cmpi sge, %665, %666 : vector<1x1xi32>
    %c65536_i32_181 = arith.constant 65536 : i32
    %668 = vector.broadcast %c65536_i32_181 : i32 to vector<1x1xi32>
    %669 = arith.ori %656, %668 : vector<1x1xi32>
    %670 = arith.select %667, %656, %669 : vector<1x1xi1>, vector<1x1xi32>
    %c32767_i32_182 = arith.constant 32767 : i32
    %671 = vector.broadcast %c32767_i32_182 : i32 to vector<1x1xi32>
    %672 = arith.ori %670, %671 : vector<1x1xi32>
    %673 = vector.broadcast %672 : vector<1x1xi32> to vector<8x128xi32>
    %674 = arith.cmpi sle, %459, %673 : vector<8x128xi32>
    %675 = arith.extui %674 : vector<8x128xi1> to vector<8x128xi32>
    %cst_183 = arith.constant dense<0> : vector<8xi32>
    %676 = vector.multi_reduction <add>, %675, %cst_183 [1] : vector<8x128xi32> to vector<8xi32>
    %677 = vector.shape_cast %676 : vector<8xi32> to vector<8x1xi32>
    %cst_184 = arith.constant dense<0> : vector<1xi32>
    %678 = vector.multi_reduction <add>, %677, %cst_184 [0] : vector<8x1xi32> to vector<1xi32>
    %679 = vector.shape_cast %678 : vector<1xi32> to vector<1x1xi32>
    %c513_i32_185 = arith.constant 513 : i32
    %680 = vector.broadcast %c513_i32_185 : i32 to vector<1x1xi32>
    %681 = arith.cmpi sge, %679, %680 : vector<1x1xi32>
    %c32768_i32_186 = arith.constant 32768 : i32
    %682 = vector.broadcast %c32768_i32_186 : i32 to vector<1x1xi32>
    %683 = arith.ori %670, %682 : vector<1x1xi32>
    %684 = arith.select %681, %670, %683 : vector<1x1xi1>, vector<1x1xi32>
    %c16383_i32_187 = arith.constant 16383 : i32
    %685 = vector.broadcast %c16383_i32_187 : i32 to vector<1x1xi32>
    %686 = arith.ori %684, %685 : vector<1x1xi32>
    %687 = vector.broadcast %686 : vector<1x1xi32> to vector<8x128xi32>
    %688 = arith.cmpi sle, %459, %687 : vector<8x128xi32>
    %689 = arith.extui %688 : vector<8x128xi1> to vector<8x128xi32>
    %cst_188 = arith.constant dense<0> : vector<8xi32>
    %690 = vector.multi_reduction <add>, %689, %cst_188 [1] : vector<8x128xi32> to vector<8xi32>
    %691 = vector.shape_cast %690 : vector<8xi32> to vector<8x1xi32>
    %cst_189 = arith.constant dense<0> : vector<1xi32>
    %692 = vector.multi_reduction <add>, %691, %cst_189 [0] : vector<8x1xi32> to vector<1xi32>
    %693 = vector.shape_cast %692 : vector<1xi32> to vector<1x1xi32>
    %c513_i32_190 = arith.constant 513 : i32
    %694 = vector.broadcast %c513_i32_190 : i32 to vector<1x1xi32>
    %695 = arith.cmpi sge, %693, %694 : vector<1x1xi32>
    %c16384_i32_191 = arith.constant 16384 : i32
    %696 = vector.broadcast %c16384_i32_191 : i32 to vector<1x1xi32>
    %697 = arith.ori %684, %696 : vector<1x1xi32>
    %698 = arith.select %695, %684, %697 : vector<1x1xi1>, vector<1x1xi32>
    %c8191_i32_192 = arith.constant 8191 : i32
    %699 = vector.broadcast %c8191_i32_192 : i32 to vector<1x1xi32>
    %700 = arith.ori %698, %699 : vector<1x1xi32>
    %701 = vector.broadcast %700 : vector<1x1xi32> to vector<8x128xi32>
    %702 = arith.cmpi sle, %459, %701 : vector<8x128xi32>
    %703 = arith.extui %702 : vector<8x128xi1> to vector<8x128xi32>
    %cst_193 = arith.constant dense<0> : vector<8xi32>
    %704 = vector.multi_reduction <add>, %703, %cst_193 [1] : vector<8x128xi32> to vector<8xi32>
    %705 = vector.shape_cast %704 : vector<8xi32> to vector<8x1xi32>
    %cst_194 = arith.constant dense<0> : vector<1xi32>
    %706 = vector.multi_reduction <add>, %705, %cst_194 [0] : vector<8x1xi32> to vector<1xi32>
    %707 = vector.shape_cast %706 : vector<1xi32> to vector<1x1xi32>
    %c513_i32_195 = arith.constant 513 : i32
    %708 = vector.broadcast %c513_i32_195 : i32 to vector<1x1xi32>
    %709 = arith.cmpi sge, %707, %708 : vector<1x1xi32>
    %c8192_i32_196 = arith.constant 8192 : i32
    %710 = vector.broadcast %c8192_i32_196 : i32 to vector<1x1xi32>
    %711 = arith.ori %698, %710 : vector<1x1xi32>
    %712 = arith.select %709, %698, %711 : vector<1x1xi1>, vector<1x1xi32>
    %c4095_i32_197 = arith.constant 4095 : i32
    %713 = vector.broadcast %c4095_i32_197 : i32 to vector<1x1xi32>
    %714 = arith.ori %712, %713 : vector<1x1xi32>
    %715 = vector.broadcast %714 : vector<1x1xi32> to vector<8x128xi32>
    %716 = arith.cmpi sle, %459, %715 : vector<8x128xi32>
    %717 = arith.extui %716 : vector<8x128xi1> to vector<8x128xi32>
    %cst_198 = arith.constant dense<0> : vector<8xi32>
    %718 = vector.multi_reduction <add>, %717, %cst_198 [1] : vector<8x128xi32> to vector<8xi32>
    %719 = vector.shape_cast %718 : vector<8xi32> to vector<8x1xi32>
    %cst_199 = arith.constant dense<0> : vector<1xi32>
    %720 = vector.multi_reduction <add>, %719, %cst_199 [0] : vector<8x1xi32> to vector<1xi32>
    %721 = vector.shape_cast %720 : vector<1xi32> to vector<1x1xi32>
    %c513_i32_200 = arith.constant 513 : i32
    %722 = vector.broadcast %c513_i32_200 : i32 to vector<1x1xi32>
    %723 = arith.cmpi sge, %721, %722 : vector<1x1xi32>
    %c4096_i32_201 = arith.constant 4096 : i32
    %724 = vector.broadcast %c4096_i32_201 : i32 to vector<1x1xi32>
    %725 = arith.ori %712, %724 : vector<1x1xi32>
    %726 = arith.select %723, %712, %725 : vector<1x1xi1>, vector<1x1xi32>
    %c2047_i32_202 = arith.constant 2047 : i32
    %727 = vector.broadcast %c2047_i32_202 : i32 to vector<1x1xi32>
    %728 = arith.ori %726, %727 : vector<1x1xi32>
    %729 = vector.broadcast %728 : vector<1x1xi32> to vector<8x128xi32>
    %730 = arith.cmpi sle, %459, %729 : vector<8x128xi32>
    %731 = arith.extui %730 : vector<8x128xi1> to vector<8x128xi32>
    %cst_203 = arith.constant dense<0> : vector<8xi32>
    %732 = vector.multi_reduction <add>, %731, %cst_203 [1] : vector<8x128xi32> to vector<8xi32>
    %733 = vector.shape_cast %732 : vector<8xi32> to vector<8x1xi32>
    %cst_204 = arith.constant dense<0> : vector<1xi32>
    %734 = vector.multi_reduction <add>, %733, %cst_204 [0] : vector<8x1xi32> to vector<1xi32>
    %735 = vector.shape_cast %734 : vector<1xi32> to vector<1x1xi32>
    %c513_i32_205 = arith.constant 513 : i32
    %736 = vector.broadcast %c513_i32_205 : i32 to vector<1x1xi32>
    %737 = arith.cmpi sge, %735, %736 : vector<1x1xi32>
    %c2048_i32_206 = arith.constant 2048 : i32
    %738 = vector.broadcast %c2048_i32_206 : i32 to vector<1x1xi32>
    %739 = arith.ori %726, %738 : vector<1x1xi32>
    %740 = arith.select %737, %726, %739 : vector<1x1xi1>, vector<1x1xi32>
    %c1023_i32_207 = arith.constant 1023 : i32
    %741 = vector.broadcast %c1023_i32_207 : i32 to vector<1x1xi32>
    %742 = arith.ori %740, %741 : vector<1x1xi32>
    %743 = vector.broadcast %742 : vector<1x1xi32> to vector<8x128xi32>
    %744 = arith.cmpi sle, %459, %743 : vector<8x128xi32>
    %745 = arith.extui %744 : vector<8x128xi1> to vector<8x128xi32>
    %cst_208 = arith.constant dense<0> : vector<8xi32>
    %746 = vector.multi_reduction <add>, %745, %cst_208 [1] : vector<8x128xi32> to vector<8xi32>
    %747 = vector.shape_cast %746 : vector<8xi32> to vector<8x1xi32>
    %cst_209 = arith.constant dense<0> : vector<1xi32>
    %748 = vector.multi_reduction <add>, %747, %cst_209 [0] : vector<8x1xi32> to vector<1xi32>
    %749 = vector.shape_cast %748 : vector<1xi32> to vector<1x1xi32>
    %c513_i32_210 = arith.constant 513 : i32
    %750 = vector.broadcast %c513_i32_210 : i32 to vector<1x1xi32>
    %751 = arith.cmpi sge, %749, %750 : vector<1x1xi32>
    %c1024_i32_211 = arith.constant 1024 : i32
    %752 = vector.broadcast %c1024_i32_211 : i32 to vector<1x1xi32>
    %753 = arith.ori %740, %752 : vector<1x1xi32>
    %754 = arith.select %751, %740, %753 : vector<1x1xi1>, vector<1x1xi32>
    %c511_i32_212 = arith.constant 511 : i32
    %755 = vector.broadcast %c511_i32_212 : i32 to vector<1x1xi32>
    %756 = arith.ori %754, %755 : vector<1x1xi32>
    %757 = vector.broadcast %756 : vector<1x1xi32> to vector<8x128xi32>
    %758 = arith.cmpi sle, %459, %757 : vector<8x128xi32>
    %759 = arith.extui %758 : vector<8x128xi1> to vector<8x128xi32>
    %cst_213 = arith.constant dense<0> : vector<8xi32>
    %760 = vector.multi_reduction <add>, %759, %cst_213 [1] : vector<8x128xi32> to vector<8xi32>
    %761 = vector.shape_cast %760 : vector<8xi32> to vector<8x1xi32>
    %cst_214 = arith.constant dense<0> : vector<1xi32>
    %762 = vector.multi_reduction <add>, %761, %cst_214 [0] : vector<8x1xi32> to vector<1xi32>
    %763 = vector.shape_cast %762 : vector<1xi32> to vector<1x1xi32>
    %c513_i32_215 = arith.constant 513 : i32
    %764 = vector.broadcast %c513_i32_215 : i32 to vector<1x1xi32>
    %765 = arith.cmpi sge, %763, %764 : vector<1x1xi32>
    %c512_i32_216 = arith.constant 512 : i32
    %766 = vector.broadcast %c512_i32_216 : i32 to vector<1x1xi32>
    %767 = arith.ori %754, %766 : vector<1x1xi32>
    %768 = arith.select %765, %754, %767 : vector<1x1xi1>, vector<1x1xi32>
    %c255_i32_217 = arith.constant 255 : i32
    %769 = vector.broadcast %c255_i32_217 : i32 to vector<1x1xi32>
    %770 = arith.ori %768, %769 : vector<1x1xi32>
    %771 = vector.broadcast %770 : vector<1x1xi32> to vector<8x128xi32>
    %772 = arith.cmpi sle, %459, %771 : vector<8x128xi32>
    %773 = arith.extui %772 : vector<8x128xi1> to vector<8x128xi32>
    %cst_218 = arith.constant dense<0> : vector<8xi32>
    %774 = vector.multi_reduction <add>, %773, %cst_218 [1] : vector<8x128xi32> to vector<8xi32>
    %775 = vector.shape_cast %774 : vector<8xi32> to vector<8x1xi32>
    %cst_219 = arith.constant dense<0> : vector<1xi32>
    %776 = vector.multi_reduction <add>, %775, %cst_219 [0] : vector<8x1xi32> to vector<1xi32>
    %777 = vector.shape_cast %776 : vector<1xi32> to vector<1x1xi32>
    %c513_i32_220 = arith.constant 513 : i32
    %778 = vector.broadcast %c513_i32_220 : i32 to vector<1x1xi32>
    %779 = arith.cmpi sge, %777, %778 : vector<1x1xi32>
    %c256_i32_221 = arith.constant 256 : i32
    %780 = vector.broadcast %c256_i32_221 : i32 to vector<1x1xi32>
    %781 = arith.ori %768, %780 : vector<1x1xi32>
    %782 = arith.select %779, %768, %781 : vector<1x1xi1>, vector<1x1xi32>
    %c127_i32_222 = arith.constant 127 : i32
    %783 = vector.broadcast %c127_i32_222 : i32 to vector<1x1xi32>
    %784 = arith.ori %782, %783 : vector<1x1xi32>
    %785 = vector.broadcast %784 : vector<1x1xi32> to vector<8x128xi32>
    %786 = arith.cmpi sle, %459, %785 : vector<8x128xi32>
    %787 = arith.extui %786 : vector<8x128xi1> to vector<8x128xi32>
    %cst_223 = arith.constant dense<0> : vector<8xi32>
    %788 = vector.multi_reduction <add>, %787, %cst_223 [1] : vector<8x128xi32> to vector<8xi32>
    %789 = vector.shape_cast %788 : vector<8xi32> to vector<8x1xi32>
    %cst_224 = arith.constant dense<0> : vector<1xi32>
    %790 = vector.multi_reduction <add>, %789, %cst_224 [0] : vector<8x1xi32> to vector<1xi32>
    %791 = vector.shape_cast %790 : vector<1xi32> to vector<1x1xi32>
    %c513_i32_225 = arith.constant 513 : i32
    %792 = vector.broadcast %c513_i32_225 : i32 to vector<1x1xi32>
    %793 = arith.cmpi sge, %791, %792 : vector<1x1xi32>
    %c128_i32_226 = arith.constant 128 : i32
    %794 = vector.broadcast %c128_i32_226 : i32 to vector<1x1xi32>
    %795 = arith.ori %782, %794 : vector<1x1xi32>
    %796 = arith.select %793, %782, %795 : vector<1x1xi1>, vector<1x1xi32>
    %c63_i32_227 = arith.constant 63 : i32
    %797 = vector.broadcast %c63_i32_227 : i32 to vector<1x1xi32>
    %798 = arith.ori %796, %797 : vector<1x1xi32>
    %799 = vector.broadcast %798 : vector<1x1xi32> to vector<8x128xi32>
    %800 = arith.cmpi sle, %459, %799 : vector<8x128xi32>
    %801 = arith.extui %800 : vector<8x128xi1> to vector<8x128xi32>
    %cst_228 = arith.constant dense<0> : vector<8xi32>
    %802 = vector.multi_reduction <add>, %801, %cst_228 [1] : vector<8x128xi32> to vector<8xi32>
    %803 = vector.shape_cast %802 : vector<8xi32> to vector<8x1xi32>
    %cst_229 = arith.constant dense<0> : vector<1xi32>
    %804 = vector.multi_reduction <add>, %803, %cst_229 [0] : vector<8x1xi32> to vector<1xi32>
    %805 = vector.shape_cast %804 : vector<1xi32> to vector<1x1xi32>
    %c513_i32_230 = arith.constant 513 : i32
    %806 = vector.broadcast %c513_i32_230 : i32 to vector<1x1xi32>
    %807 = arith.cmpi sge, %805, %806 : vector<1x1xi32>
    %c64_i32_231 = arith.constant 64 : i32
    %808 = vector.broadcast %c64_i32_231 : i32 to vector<1x1xi32>
    %809 = arith.ori %796, %808 : vector<1x1xi32>
    %810 = arith.select %807, %796, %809 : vector<1x1xi1>, vector<1x1xi32>
    %c31_i32_232 = arith.constant 31 : i32
    %811 = vector.broadcast %c31_i32_232 : i32 to vector<1x1xi32>
    %812 = arith.ori %810, %811 : vector<1x1xi32>
    %813 = vector.broadcast %812 : vector<1x1xi32> to vector<8x128xi32>
    %814 = arith.cmpi sle, %459, %813 : vector<8x128xi32>
    %815 = arith.extui %814 : vector<8x128xi1> to vector<8x128xi32>
    %cst_233 = arith.constant dense<0> : vector<8xi32>
    %816 = vector.multi_reduction <add>, %815, %cst_233 [1] : vector<8x128xi32> to vector<8xi32>
    %817 = vector.shape_cast %816 : vector<8xi32> to vector<8x1xi32>
    %cst_234 = arith.constant dense<0> : vector<1xi32>
    %818 = vector.multi_reduction <add>, %817, %cst_234 [0] : vector<8x1xi32> to vector<1xi32>
    %819 = vector.shape_cast %818 : vector<1xi32> to vector<1x1xi32>
    %c513_i32_235 = arith.constant 513 : i32
    %820 = vector.broadcast %c513_i32_235 : i32 to vector<1x1xi32>
    %821 = arith.cmpi sge, %819, %820 : vector<1x1xi32>
    %c32_i32_236 = arith.constant 32 : i32
    %822 = vector.broadcast %c32_i32_236 : i32 to vector<1x1xi32>
    %823 = arith.ori %810, %822 : vector<1x1xi32>
    %824 = arith.select %821, %810, %823 : vector<1x1xi1>, vector<1x1xi32>
    %c15_i32_237 = arith.constant 15 : i32
    %825 = vector.broadcast %c15_i32_237 : i32 to vector<1x1xi32>
    %826 = arith.ori %824, %825 : vector<1x1xi32>
    %827 = vector.broadcast %826 : vector<1x1xi32> to vector<8x128xi32>
    %828 = arith.cmpi sle, %459, %827 : vector<8x128xi32>
    %829 = arith.extui %828 : vector<8x128xi1> to vector<8x128xi32>
    %cst_238 = arith.constant dense<0> : vector<8xi32>
    %830 = vector.multi_reduction <add>, %829, %cst_238 [1] : vector<8x128xi32> to vector<8xi32>
    %831 = vector.shape_cast %830 : vector<8xi32> to vector<8x1xi32>
    %cst_239 = arith.constant dense<0> : vector<1xi32>
    %832 = vector.multi_reduction <add>, %831, %cst_239 [0] : vector<8x1xi32> to vector<1xi32>
    %833 = vector.shape_cast %832 : vector<1xi32> to vector<1x1xi32>
    %c513_i32_240 = arith.constant 513 : i32
    %834 = vector.broadcast %c513_i32_240 : i32 to vector<1x1xi32>
    %835 = arith.cmpi sge, %833, %834 : vector<1x1xi32>
    %c16_i32_241 = arith.constant 16 : i32
    %836 = vector.broadcast %c16_i32_241 : i32 to vector<1x1xi32>
    %837 = arith.ori %824, %836 : vector<1x1xi32>
    %838 = arith.select %835, %824, %837 : vector<1x1xi1>, vector<1x1xi32>
    %c7_i32_242 = arith.constant 7 : i32
    %839 = vector.broadcast %c7_i32_242 : i32 to vector<1x1xi32>
    %840 = arith.ori %838, %839 : vector<1x1xi32>
    %841 = vector.broadcast %840 : vector<1x1xi32> to vector<8x128xi32>
    %842 = arith.cmpi sle, %459, %841 : vector<8x128xi32>
    %843 = arith.extui %842 : vector<8x128xi1> to vector<8x128xi32>
    %cst_243 = arith.constant dense<0> : vector<8xi32>
    %844 = vector.multi_reduction <add>, %843, %cst_243 [1] : vector<8x128xi32> to vector<8xi32>
    %845 = vector.shape_cast %844 : vector<8xi32> to vector<8x1xi32>
    %cst_244 = arith.constant dense<0> : vector<1xi32>
    %846 = vector.multi_reduction <add>, %845, %cst_244 [0] : vector<8x1xi32> to vector<1xi32>
    %847 = vector.shape_cast %846 : vector<1xi32> to vector<1x1xi32>
    %c513_i32_245 = arith.constant 513 : i32
    %848 = vector.broadcast %c513_i32_245 : i32 to vector<1x1xi32>
    %849 = arith.cmpi sge, %847, %848 : vector<1x1xi32>
    %c8_i32_246 = arith.constant 8 : i32
    %850 = vector.broadcast %c8_i32_246 : i32 to vector<1x1xi32>
    %851 = arith.ori %838, %850 : vector<1x1xi32>
    %852 = arith.select %849, %838, %851 : vector<1x1xi1>, vector<1x1xi32>
    %c3_i32_247 = arith.constant 3 : i32
    %853 = vector.broadcast %c3_i32_247 : i32 to vector<1x1xi32>
    %854 = arith.ori %852, %853 : vector<1x1xi32>
    %855 = vector.broadcast %854 : vector<1x1xi32> to vector<8x128xi32>
    %856 = arith.cmpi sle, %459, %855 : vector<8x128xi32>
    %857 = arith.extui %856 : vector<8x128xi1> to vector<8x128xi32>
    %cst_248 = arith.constant dense<0> : vector<8xi32>
    %858 = vector.multi_reduction <add>, %857, %cst_248 [1] : vector<8x128xi32> to vector<8xi32>
    %859 = vector.shape_cast %858 : vector<8xi32> to vector<8x1xi32>
    %cst_249 = arith.constant dense<0> : vector<1xi32>
    %860 = vector.multi_reduction <add>, %859, %cst_249 [0] : vector<8x1xi32> to vector<1xi32>
    %861 = vector.shape_cast %860 : vector<1xi32> to vector<1x1xi32>
    %c513_i32_250 = arith.constant 513 : i32
    %862 = vector.broadcast %c513_i32_250 : i32 to vector<1x1xi32>
    %863 = arith.cmpi sge, %861, %862 : vector<1x1xi32>
    %c4_i32_251 = arith.constant 4 : i32
    %864 = vector.broadcast %c4_i32_251 : i32 to vector<1x1xi32>
    %865 = arith.ori %852, %864 : vector<1x1xi32>
    %866 = arith.select %863, %852, %865 : vector<1x1xi1>, vector<1x1xi32>
    %c1_i32_252 = arith.constant 1 : i32
    %867 = vector.broadcast %c1_i32_252 : i32 to vector<1x1xi32>
    %868 = arith.ori %866, %867 : vector<1x1xi32>
    %869 = vector.broadcast %868 : vector<1x1xi32> to vector<8x128xi32>
    %870 = arith.cmpi sle, %459, %869 : vector<8x128xi32>
    %871 = arith.extui %870 : vector<8x128xi1> to vector<8x128xi32>
    %cst_253 = arith.constant dense<0> : vector<8xi32>
    %872 = vector.multi_reduction <add>, %871, %cst_253 [1] : vector<8x128xi32> to vector<8xi32>
    %873 = vector.shape_cast %872 : vector<8xi32> to vector<8x1xi32>
    %cst_254 = arith.constant dense<0> : vector<1xi32>
    %874 = vector.multi_reduction <add>, %873, %cst_254 [0] : vector<8x1xi32> to vector<1xi32>
    %875 = vector.shape_cast %874 : vector<1xi32> to vector<1x1xi32>
    %c513_i32_255 = arith.constant 513 : i32
    %876 = vector.broadcast %c513_i32_255 : i32 to vector<1x1xi32>
    %877 = arith.cmpi sge, %875, %876 : vector<1x1xi32>
    %c2_i32_256 = arith.constant 2 : i32
    %878 = vector.broadcast %c2_i32_256 : i32 to vector<1x1xi32>
    %879 = arith.ori %866, %878 : vector<1x1xi32>
    %880 = arith.select %877, %866, %879 : vector<1x1xi1>, vector<1x1xi32>
    %c0_i32_257 = arith.constant 0 : i32
    %881 = vector.broadcast %c0_i32_257 : i32 to vector<1x1xi32>
    %882 = arith.ori %880, %881 : vector<1x1xi32>
    %883 = vector.broadcast %882 : vector<1x1xi32> to vector<8x128xi32>
    %884 = arith.cmpi sle, %459, %883 : vector<8x128xi32>
    %885 = arith.extui %884 : vector<8x128xi1> to vector<8x128xi32>
    %cst_258 = arith.constant dense<0> : vector<8xi32>
    %886 = vector.multi_reduction <add>, %885, %cst_258 [1] : vector<8x128xi32> to vector<8xi32>
    %887 = vector.shape_cast %886 : vector<8xi32> to vector<8x1xi32>
    %cst_259 = arith.constant dense<0> : vector<1xi32>
    %888 = vector.multi_reduction <add>, %887, %cst_259 [0] : vector<8x1xi32> to vector<1xi32>
    %889 = vector.shape_cast %888 : vector<1xi32> to vector<1x1xi32>
    %c513_i32_260 = arith.constant 513 : i32
    %890 = vector.broadcast %c513_i32_260 : i32 to vector<1x1xi32>
    %891 = arith.cmpi sge, %889, %890 : vector<1x1xi32>
    %c1_i32_261 = arith.constant 1 : i32
    %892 = vector.broadcast %c1_i32_261 : i32 to vector<1x1xi32>
    %893 = arith.ori %880, %892 : vector<1x1xi32>
    %894 = arith.select %891, %880, %893 : vector<1x1xi1>, vector<1x1xi32>
    %895 = vector.broadcast %894 : vector<1x1xi32> to vector<8x128xi32>
    %896 = arith.cmpi sge, %459, %895 : vector<8x128xi32>
    %cst_262 = arith.constant 0.000000e+00 : f32
    %897 = vector.broadcast %cst_262 : f32 to vector<8x128xf32>
    %898 = arith.select %896, %457, %897 : vector<8x128xi1>, vector<8x128xf32>
    %899 = arith.truncf %898 : vector<8x128xf32> to vector<8x128xbf16>
    %c0_263 = arith.constant 0 : index
    %c0_264 = arith.constant 0 : index
    %900 = vector.load %arg6[%c0_263, %c0_264] : memref<128x128xbf16, #tpu.memory_space<vmem>>, vector<128x128xbf16>
    %cst_265 = arith.constant dense<0.000000e+00> : vector<8x128xf32>
    %901 = tpu.matmul %899, %900, %cst_265 {dimension_numbers = #tpu.dot_dimension_numbers<[1], [0], [0], [1], [0, 0, 1, 1], [], []>} : vector<8x128xbf16>, vector<128x128xbf16>, vector<8x128xf32> -> vector<8x128xf32>
    %c0_266 = arith.constant 0 : index
    %c0_267 = arith.constant 0 : index
    %902 = vector.load %arg7[%c0_266, %c0_267] : memref<1x128xf32, #tpu.memory_space<vmem>>, vector<1x128xf32>
    %903 = vector.broadcast %902 : vector<1x128xf32> to vector<8x128xf32>
    %904 = arith.addf %901, %903 : vector<8x128xf32>
    %c0_268 = arith.constant 0 : index
    %c0_269 = arith.constant 0 : index
    %905 = vector.load %arg8[%c0_268, %c0_269] : memref<8x128xf32, #tpu.memory_space<vmem>>, vector<8x128xf32>
    tpu.vector_store %arg8[%c0_268, %c0_269], %904 {strides = array<i32>} : memref<8x128xf32, #tpu.memory_space<vmem>>, vector<8x128xf32>,
    return
  }
  func.func @transform_0(%arg0: i32) -> (i32, i32) {
    %c0_i32 = arith.constant 0 : i32
    %c0_i32_0 = arith.constant 0 : i32
    %c0_i32_1 = arith.constant 0 : i32
    return %c0_i32, %c0_i32_0 : i32, i32
  }
  func.func @transform_1(%arg0: i32) -> (i32, i32) {
    %c0_i32 = arith.constant 0 : i32
    %c0_i32_0 = arith.constant 0 : i32
    %c0_i32_1 = arith.constant 0 : i32
    return %c0_i32, %c0_i32_0 : i32, i32
  }
  func.func @transform_2(%arg0: i32) -> (i32, i32) {
    %c0_i32 = arith.constant 0 : i32
    %c0_i32_0 = arith.constant 0 : i32
    %c0_i32_1 = arith.constant 0 : i32
    return %c0_i32, %c0_i32_0 : i32, i32
  }
  func.func @transform_3(%arg0: i32) -> (i32, i32) {
    %c0_i32 = arith.constant 0 : i32
    %c0_i32_0 = arith.constant 0 : i32
    %c0_i32_1 = arith.constant 0 : i32
    return %c0_i32, %c0_i32_0 : i32, i32
  }
  func.func @transform_4(%arg0: i32) -> (i32, i32) {
    %c0_i32 = arith.constant 0 : i32
    %c0_i32_0 = arith.constant 0 : i32
    %c0_i32_1 = arith.constant 0 : i32
    return %c0_i32, %c0_i32_0 : i32, i32
  }
  func.func @transform_5(%arg0: i32) -> (i32, i32) {
    %c0_i32 = arith.constant 0 : i32
    %c0_i32_0 = arith.constant 0 : i32
    %c0_i32_1 = arith.constant 0 : i32
    return %c0_i32, %c0_i32_0 : i32, i32
  }
  func.func @transform_6(%arg0: i32) -> (i32, i32) {
    %c0_i32 = arith.constant 0 : i32
    %c0_i32_0 = arith.constant 0 : i32
    %c0_i32_1 = arith.constant 0 : i32
    return %c0_i32, %c0_i32_0 : i32, i32
  }
  func.func @transform_7(%arg0: i32) -> (i32, i32) {
    %c0_i32 = arith.constant 0 : i32
    %c0_i32_0 = arith.constant 0 : i32
    %c0_i32_1 = arith.constant 0 : i32
    return %c0_i32, %c0_i32_0 : i32, i32
  }
}

</mosaic_0001>

<llo_original>
// kernel: graph_embedding_forward.1
$region0: #{graph_embedding_forward.1}
  #allocation0 [shape = 'u32[]', space=smem, size = 0x4, offset = 0x4, fixed_abs, tag = 'smem constant byte address 0x4 - core index']
  #allocation1 [shape = 'u32[144,128]{1,0:T(1,128)}', space=vmem, size = 0x12000, scoped, tag = 'internal scratch']
  %s0 = inlined_call_operand.vmem [shape: f32[8,128], index: 0, kind: input, shape index: {}]
  %s1 = inlined_call_operand.vmem [shape: bf16[128,256], index: 1, kind: input, shape index: {}]
  %s2 = inlined_call_operand.vmem [shape: f32[1,256], index: 2, kind: input, shape index: {}]
  %s3 = inlined_call_operand.vmem [shape: bf16[256,128], index: 3, kind: input, shape index: {}]
  %s4 = inlined_call_operand.vmem [shape: f32[1,128], index: 4, kind: input, shape index: {}]
  %s5 = inlined_call_operand.vmem [shape: bf16[128,128], index: 5, kind: input, shape index: {}]
  %s6 = inlined_call_operand.vmem [shape: f32[1,128], index: 6, kind: input, shape index: {}]
  %s7 = inlined_call_operand.hbm [shape: f32[8,128], index: 7, kind: output, shape index: {}]
  %s8 = sld [smem:[#allocation0]]
  $region38: #{graph_embedding_forward.1} parent=0
    _
  %s10 = ssub.s32 1, %s8
  %s11 = scalar_select 0, %s10, %s8
  $region1: #{graph_embedding_forward.1} parent=0
    #allocation2 [shape = 'u8[4096]{0}', space=vmem, size = 0x1000, scoped, tag = 'output window, operand 0, single buffered']
    #allocation3 [shape = 's32[1]{0}', space=sflag, size = 0x4, scoped, tag = 'scoped memory for graph_embedding_forward.1']
    %12 = vsyncpa [#allocation3], 0
    // Predicated region
    $region2: #{graph_embedding_forward.1} parent=1 // pred_check
      _
    $region3: #{graph_embedding_forward.1} parent=1 // pred_check_branch
      %14 = sbr.rel (0) target = $region5
    $region4: #{graph_embedding_forward.1} parent=1 // pred_region
      _
    $region5: #{graph_embedding_forward.1} parent=1 // pred_fallthru
      _
    // Predicated region
    $region6: #{graph_embedding_forward.1} parent=1 // pred_check
      _
    $region7: #{graph_embedding_forward.1} parent=1 // pred_check_branch
      %16 = sbr.rel (0) target = $region9
    $region8: #{graph_embedding_forward.1} parent=1 // pred_region
      _
    $region9: #{graph_embedding_forward.1} parent=1 // pred_fallthru
      _
    // Predicated region
    $region10: #{graph_embedding_forward.1} parent=1 // pred_check
      _
    $region11: #{graph_embedding_forward.1} parent=1 // pred_check_branch
      %18 = sbr.rel (0) target = $region13
    $region12: #{graph_embedding_forward.1} parent=1 // pred_region
      _
    $region13: #{graph_embedding_forward.1} parent=1 // pred_fallthru
      _
    // Predicated region
    $region14: #{graph_embedding_forward.1} parent=1 // pred_check
      _
    $region15: #{graph_embedding_forward.1} parent=1 // pred_check_branch
      %20 = sbr.rel (0) target = $region17
    $region16: #{graph_embedding_forward.1} parent=1 // pred_region
      _
    $region17: #{graph_embedding_forward.1} parent=1 // pred_fallthru
      _
    // Predicated region
    $region18: #{graph_embedding_forward.1} parent=1 // pred_check
      _
    $region19: #{graph_embedding_forward.1} parent=1 // pred_check_branch
      %22 = sbr.rel (0) target = $region21
    $region20: #{graph_embedding_forward.1} parent=1 // pred_region
      _
    $region21: #{graph_embedding_forward.1} parent=1 // pred_fallthru
      _
    // Predicated region
    $region22: #{graph_embedding_forward.1} parent=1 // pred_check
      _
    $region23: #{graph_embedding_forward.1} parent=1 // pred_check_branch
      %24 = sbr.rel (0) target = $region25
    $region24: #{graph_embedding_forward.1} parent=1 // pred_region
      _
    $region25: #{graph_embedding_forward.1} parent=1 // pred_fallthru
      _
    // Predicated region
    $region26: #{graph_embedding_forward.1} parent=1 // pred_check
      _
    $region27: #{graph_embedding_forward.1} parent=1 // pred_check_branch
      %26 = sbr.rel (0) target = $region29
    $region28: #{graph_embedding_forward.1} parent=1 // pred_region
      _
    $region29: #{graph_embedding_forward.1} parent=1 // pred_fallthru
      _
    %v28 = vld [vmem:[%s0] sm:$0xff]
    %v29 = vpack.c.bf16 %v28, %v28
    %v30 = vld [vmem:[%s1] sm:$0xff]
    %v31 = vld [vmem:[%s1 + $0x8] sm:$0xff]
    %v32 = vld [vmem:[%s1 + $0x10] sm:$0xff]
    %v33 = vld [vmem:[%s1 + $0x18] sm:$0xff]
    %v34 = vld [vmem:[%s1 + $0x20] sm:$0xff]
    %v35 = vld [vmem:[%s1 + $0x28] sm:$0xff]
    %v36 = vld [vmem:[%s1 + $0x30] sm:$0xff]
    %v37 = vld [vmem:[%s1 + $0x38] sm:$0xff]
    %v38 = vld [vmem:[%s1 + $0x40] sm:$0xff]
    %v39 = vld [vmem:[%s1 + $0x48] sm:$0xff]
    %v40 = vld [vmem:[%s1 + $0x50] sm:$0xff]
    %v41 = vld [vmem:[%s1 + $0x58] sm:$0xff]
    %v42 = vld [vmem:[%s1 + $0x60] sm:$0xff]
    %v43 = vld [vmem:[%s1 + $0x68] sm:$0xff]
    %v44 = vld [vmem:[%s1 + $0x70] sm:$0xff]
    %v45 = vld [vmem:[%s1 + $0x78] sm:$0xff]
    %v46 = vld [vmem:[%s2] sm:$0x3]
    %v48 = vlaneseq
    %v49 = vshrl.u32 %v48, 7
    %v50 = vsub.s32 0, %v49
    %v51 = vrot.slane %v46, %v50
    %v52 = vlaneseq
    %v53 = vshrl.u32 %v52, 7
    %v54 = vsub.s32 1, %v53
    %v55 = vrot.slane %v46, %v54
    %v74 = vunpack.c.l.b16 %v30
    %v75 = vunpack.c.h.b16 %v30
    %v76 = vunpack.c.l.b16 %v31
    %v77 = vunpack.c.h.b16 %v31
    %v78 = vunpack.c.l.b16 %v32
    %v79 = vunpack.c.h.b16 %v32
    %v80 = vunpack.c.l.b16 %v33
    %v81 = vunpack.c.h.b16 %v33
    %v82 = vunpack.c.l.b16 %v34
    %v83 = vunpack.c.h.b16 %v34
    %v84 = vunpack.c.l.b16 %v35
    %v85 = vunpack.c.h.b16 %v35
    %v86 = vunpack.c.l.b16 %v36
    %v87 = vunpack.c.h.b16 %v36
    %v88 = vunpack.c.l.b16 %v37
    %v89 = vunpack.c.h.b16 %v37
    %v90 = vunpack.c.l.b16 %v38
    %v91 = vunpack.c.h.b16 %v38
    %v92 = vunpack.c.l.b16 %v39
    %v93 = vunpack.c.h.b16 %v39
    %v94 = vunpack.c.l.b16 %v40
    %v95 = vunpack.c.h.b16 %v40
    %v96 = vunpack.c.l.b16 %v41
    %v97 = vunpack.c.h.b16 %v41
    %v98 = vunpack.c.l.b16 %v42
    %v99 = vunpack.c.h.b16 %v42
    %v100 = vunpack.c.l.b16 %v43
    %v101 = vunpack.c.h.b16 %v43
    %v102 = vunpack.c.l.b16 %v44
    %v103 = vunpack.c.h.b16 %v44
    %v104 = vunpack.c.l.b16 %v45
    %v105 = vunpack.c.h.b16 %v45
    %v106 = vpack.c.b16 %v76, %v74
    %v107 = vpack.c.b16 %v77, %v75
    %v108 = vpack.c.b16 %v80, %v78
    %v109 = vpack.c.b16 %v81, %v79
    %v110 = vpack.c.b16 %v84, %v82
    %v111 = vpack.c.b16 %v85, %v83
    %v112 = vpack.c.b16 %v88, %v86
    %v113 = vpack.c.b16 %v89, %v87
    %v114 = vpack.c.b16 %v92, %v90
    %v115 = vpack.c.b16 %v93, %v91
    %v116 = vpack.c.b16 %v96, %v94
    %v117 = vpack.c.b16 %v97, %v95
    %v118 = vpack.c.b16 %v100, %v98
    %v119 = vpack.c.b16 %v101, %v99
    %v120 = vpack.c.b16 %v104, %v102
    %v121 = vpack.c.b16 %v105, %v103
    %138 = vmatprep.subr.bf16.mxu0 %v121
    %139 = vmatpush1.bf16.msra.mxu0 %v120
    %140 = vmatprep.subr.bf16.mxu0 %v119
    %141 = vmatpush1.bf16.msra.mxu0 %v118
    %142 = vmatprep.subr.bf16.mxu0 %v117
    %143 = vmatpush1.bf16.msra.mxu0 %v116
    %144 = vmatprep.subr.bf16.mxu0 %v115
    %145 = vmatpush1.bf16.msra.mxu0 %v114
    %146 = vmatprep.subr.bf16.mxu0 %v113
    %147 = vmatpush1.bf16.msra.mxu0 %v112
    %148 = vmatprep.subr.bf16.mxu0 %v111
    %149 = vmatpush1.bf16.msra.mxu0 %v110
    %150 = vmatprep.subr.bf16.mxu0 %v109
    %151 = vmatpush1.bf16.msra.mxu0 %v108
    %152 = vmatprep.subr.bf16.mxu0 %v107
    %153 = vmatpush1.bf16.msra.mxu0 %v106
    %154 = vmatprep.subr.bf16.mxu0 0
    %155 = vmatpush2.bf16.msra.mxu0 0
    %156 = vmatprep.subr.bf16.mxu0 0
    %157 = vmatpush2.bf16.msra.mxu0 0
    %158 = vmatprep.subr.bf16.mxu0 0
    %159 = vmatpush2.bf16.msra.mxu0 0
    %160 = vmatprep.subr.bf16.mxu0 0
    %161 = vmatpush2.bf16.msra.mxu0 0
    %162 = vmatprep.subr.bf16.mxu0 0
    %163 = vmatpush2.bf16.msra.mxu0 0
    %164 = vmatprep.subr.bf16.mxu0 0
    %165 = vmatpush2.bf16.msra.mxu0 0
    %166 = vmatprep.subr.bf16.mxu0 0
    %167 = vmatpush2.bf16.msra.mxu0 0
    %168 = vmatprep.subr.bf16.mxu0 0
    %169 = vmatpush2.bf16.msra.mxu0 0
    %170 = vmatprep.mubr.bf16.mxu0 0
    %171 = vmatmul.mubr.bf16.gmra.mxu0 %v29
    %v172 = vpop.f32.mrf.mxu0
    %v173 = vadd.f32 %v51, %v172
    %v174 = vpop.f32.mrf.mxu0
    %v175 = vadd.f32 %v55, %v174
    %v176 = vpop.f32.mrf.mxu0
    %v177 = vpop.f32.mrf.mxu0
    %178 = vdwg.mxu0
    %v179 = vmax.f32 %v173, 0.0
    %v180 = vmax.f32 %v175, 0.0
    %v181 = vand.u32 2147483647, %v179
    %v182 = vand.u32 2147483647, %v180
    %vm185 = vcmp.le.s32.totalorder %v181, 1073741823
    %vm186 = vcmp.le.s32.totalorder %v182, 1073741823
    %v187 = vsel %vm185, 1, 0
    %v188 = vsel %vm186, 1, 0
    %v189 = vadd.s32 %v187, %v188
    %v190 = vand.u32 %v189, 65535
    %v191 = vshrl.u32 %v189, 16
    %v192 = vcvt.s32.f32 %v190
    %v193 = vcvt.s32.f32 %v191
    %194 = vadd.xlane.f32.xlu0 %v192
    %v195 = vpop.xlane.xlu0 %194
    %196 = vadd.xlane.f32.xlu0 %v193
    %v197 = vpop.xlane.xlu0 %196
    %v198 = vcvt.f32.s32 %v195
    %v199 = vcvt.f32.s32 %v197
    %v200 = vshll.u32 %v199, 16
    %v201 = vadd.s32 %v200, %v198
    %v202 = vrot.slane %v201, 4
    %v203 = vadd.s32 %v201, %v202
    %v204 = vrot.slane %v203, 2
    %v205 = vadd.s32 %v203, %v204
    %v206 = vrot.slane %v205, 1
    %v207 = vadd.s32 %v205, %v206
    %vm208 = vcmp.ge.s32.totalorder %v207, 1025
    %v209 = vsel %vm208, 0, 1073741824
    %v210 = vor.u32 %v209, 536870911
    %vm211 = vcmp.le.s32.totalorder %v181, %v210
    %vm212 = vcmp.le.s32.totalorder %v182, %v210
    %v213 = vsel %vm211, 1, 0
    %v214 = vsel %vm212, 1, 0
    %v215 = vadd.s32 %v213, %v214
    %v216 = vand.u32 %v215, 65535
    %v217 = vshrl.u32 %v215, 16
    %v218 = vcvt.s32.f32 %v216
    %v219 = vcvt.s32.f32 %v217
    %220 = vadd.xlane.f32.xlu0 %v218
    %v221 = vpop.xlane.xlu0 %220
    %222 = vadd.xlane.f32.xlu0 %v219
    %v223 = vpop.xlane.xlu0 %222
    %v224 = vcvt.f32.s32 %v221
    %v225 = vcvt.f32.s32 %v223
    %v226 = vshll.u32 %v225, 16
    %v227 = vadd.s32 %v226, %v224
    %v228 = vrot.slane %v227, 4
    %v229 = vadd.s32 %v227, %v228
    %v230 = vrot.slane %v229, 2
    %v231 = vadd.s32 %v229, %v230
    %v232 = vrot.slane %v231, 1
    %v233 = vadd.s32 %v231, %v232
    %vm234 = vcmp.ge.s32.totalorder %v233, 1025
    %v235 = vor.u32 %v209, 536870912
    %v236 = vsel %vm234, %v209, %v235
    %v237 = vor.u32 %v236, 268435455
    %vm238 = vcmp.le.s32.totalorder %v181, %v237
    %vm239 = vcmp.le.s32.totalorder %v182, %v237
    %v240 = vsel %vm238, 1, 0
    %v241 = vsel %vm239, 1, 0
    %v242 = vadd.s32 %v240, %v241
    %v243 = vand.u32 %v242, 65535
    %v244 = vshrl.u32 %v242, 16
    %v245 = vcvt.s32.f32 %v243
    %v246 = vcvt.s32.f32 %v244
    %247 = vadd.xlane.f32.xlu0 %v245
    %v248 = vpop.xlane.xlu0 %247
    %249 = vadd.xlane.f32.xlu0 %v246
    %v250 = vpop.xlane.xlu0 %249
    %v251 = vcvt.f32.s32 %v248
    %v252 = vcvt.f32.s32 %v250
    %v253 = vshll.u32 %v252, 16
    %v254 = vadd.s32 %v253, %v251
    %v255 = vrot.slane %v254, 4
    %v256 = vadd.s32 %v254, %v255
    %v257 = vrot.slane %v256, 2
    %v258 = vadd.s32 %v256, %v257
    %v259 = vrot.slane %v258, 1
    %v260 = vadd.s32 %v258, %v259
    %vm261 = vcmp.ge.s32.totalorder %v260, 1025
    %v262 = vor.u32 %v236, 268435456
    %v263 = vsel %vm261, %v236, %v262
    %v264 = vor.u32 %v263, 134217727
    %vm265 = vcmp.le.s32.totalorder %v181, %v264
    %vm266 = vcmp.le.s32.totalorder %v182, %v264
    %v267 = vsel %vm265, 1, 0
    %v268 = vsel %vm266, 1, 0
    %v269 = vadd.s32 %v267, %v268
    %v270 = vand.u32 %v269, 65535
    %v271 = vshrl.u32 %v269, 16
    %v272 = vcvt.s32.f32 %v270
    %v273 = vcvt.s32.f32 %v271
    %274 = vadd.xlane.f32.xlu0 %v272
    %v275 = vpop.xlane.xlu0 %274
    %276 = vadd.xlane.f32.xlu0 %v273
    %v277 = vpop.xlane.xlu0 %276
    %v278 = vcvt.f32.s32 %v275
    %v279 = vcvt.f32.s32 %v277
    %v280 = vshll.u32 %v279, 16
    %v281 = vadd.s32 %v280, %v278
    %v282 = vrot.slane %v281, 4
    %v283 = vadd.s32 %v281, %v282
    %v284 = vrot.slane %v283, 2
    %v285 = vadd.s32 %v283, %v284
    %v286 = vrot.slane %v285, 1
    %v287 = vadd.s32 %v285, %v286
    %vm288 = vcmp.ge.s32.totalorder %v287, 1025
    %v289 = vor.u32 %v263, 134217728
    %v290 = vsel %vm288, %v263, %v289
    %v291 = vor.u32 %v290, 67108863
    %vm292 = vcmp.le.s32.totalorder %v181, %v291
    %vm293 = vcmp.le.s32.totalorder %v182, %v291
    %v294 = vsel %vm292, 1, 0
    %v295 = vsel %vm293, 1, 0
    %v296 = vadd.s32 %v294, %v295
    %v297 = vand.u32 %v296, 65535
    %v298 = vshrl.u32 %v296, 16
    %v299 = vcvt.s32.f32 %v297
    %v300 = vcvt.s32.f32 %v298
    %301 = vadd.xlane.f32.xlu0 %v299
    %v302 = vpop.xlane.xlu0 %301
    %303 = vadd.xlane.f32.xlu0 %v300
    %v304 = vpop.xlane.xlu0 %303
    %v305 = vcvt.f32.s32 %v302
    %v306 = vcvt.f32.s32 %v304
    %v307 = vshll.u32 %v306, 16
    %v308 = vadd.s32 %v307, %v305
    %v309 = vrot.slane %v308, 4
    %v310 = vadd.s32 %v308, %v309
    %v311 = vrot.slane %v310, 2
    %v312 = vadd.s32 %v310, %v311
    %v313 = vrot.slane %v312, 1
    %v314 = vadd.s32 %v312, %v313
    %vm315 = vcmp.ge.s32.totalorder %v314, 1025
    %v316 = vor.u32 %v290, 67108864
    %v317 = vsel %vm315, %v290, %v316
    %v318 = vor.u32 %v317, 33554431
    %vm319 = vcmp.le.s32.totalorder %v181, %v318
    %vm320 = vcmp.le.s32.totalorder %v182, %v318
    %v321 = vsel %vm319, 1, 0
    %v322 = vsel %vm320, 1, 0
    %v323 = vadd.s32 %v321, %v322
    %v324 = vand.u32 %v323, 65535
    %v325 = vshrl.u32 %v323, 16
    %v326 = vcvt.s32.f32 %v324
    %v327 = vcvt.s32.f32 %v325
    %328 = vadd.xlane.f32.xlu0 %v326
    %v329 = vpop.xlane.xlu0 %328
    %330 = vadd.xlane.f32.xlu0 %v327
    %v331 = vpop.xlane.xlu0 %330
    %v332 = vcvt.f32.s32 %v329
    %v333 = vcvt.f32.s32 %v331
    %v334 = vshll.u32 %v333, 16
    %v335 = vadd.s32 %v334, %v332
    %v336 = vrot.slane %v335, 4
    %v337 = vadd.s32 %v335, %v336
    %v338 = vrot.slane %v337, 2
    %v339 = vadd.s32 %v337, %v338
    %v340 = vrot.slane %v339, 1
    %v341 = vadd.s32 %v339, %v340
    %vm342 = vcmp.ge.s32.totalorder %v341, 1025
    %v343 = vor.u32 %v317, 33554432
    %v344 = vsel %vm342, %v317, %v343
    %v345 = vor.u32 %v344, 16777215
    %vm346 = vcmp.le.s32.totalorder %v181, %v345
    %vm347 = vcmp.le.s32.totalorder %v182, %v345
    %v348 = vsel %vm346, 1, 0
    %v349 = vsel %vm347, 1, 0
    %v350 = vadd.s32 %v348, %v349
    %v351 = vand.u32 %v350, 65535
    %v352 = vshrl.u32 %v350, 16
    %v353 = vcvt.s32.f32 %v351
    %v354 = vcvt.s32.f32 %v352
    %355 = vadd.xlane.f32.xlu0 %v353
    %v356 = vpop.xlane.xlu0 %355
    %357 = vadd.xlane.f32.xlu0 %v354
    %v358 = vpop.xlane.xlu0 %357
    %v359 = vcvt.f32.s32 %v356
    %v360 = vcvt.f32.s32 %v358
    %v361 = vshll.u32 %v360, 16
    %v362 = vadd.s32 %v361, %v359
    %v363 = vrot.slane %v362, 4
    %v364 = vadd.s32 %v362, %v363
    %v365 = vrot.slane %v364, 2
    %v366 = vadd.s32 %v364, %v365
    %v367 = vrot.slane %v366, 1
    %v368 = vadd.s32 %v366, %v367
    %vm369 = vcmp.ge.s32.totalorder %v368, 1025
    %v370 = vor.u32 %v344, 16777216
    %v371 = vsel %vm369, %v344, %v370
    %v372 = vor.u32 %v371, 8388607
    %vm373 = vcmp.le.s32.totalorder %v181, %v372
    %vm374 = vcmp.le.s32.totalorder %v182, %v372
    %v375 = vsel %vm373, 1, 0
    %v376 = vsel %vm374, 1, 0
    %v377 = vadd.s32 %v375, %v376
    %v378 = vand.u32 %v377, 65535
    %v379 = vshrl.u32 %v377, 16
    %v380 = vcvt.s32.f32 %v378
    %v381 = vcvt.s32.f32 %v379
    %382 = vadd.xlane.f32.xlu0 %v380
    %v383 = vpop.xlane.xlu0 %382
    %384 = vadd.xlane.f32.xlu0 %v381
    %v385 = vpop.xlane.xlu0 %384
    %v386 = vcvt.f32.s32 %v383
    %v387 = vcvt.f32.s32 %v385
    %v388 = vshll.u32 %v387, 16
    %v389 = vadd.s32 %v388, %v386
    %v390 = vrot.slane %v389, 4
    %v391 = vadd.s32 %v389, %v390
    %v392 = vrot.slane %v391, 2
    %v393 = vadd.s32 %v391, %v392
    %v394 = vrot.slane %v393, 1
    %v395 = vadd.s32 %v393, %v394
    %vm396 = vcmp.ge.s32.totalorder %v395, 1025
    %v397 = vor.u32 %v371, 8388608
    %v398 = vsel %vm396, %v371, %v397
    %v399 = vor.u32 %v398, 4194303
    %vm400 = vcmp.le.s32.totalorder %v181, %v399
    %vm401 = vcmp.le.s32.totalorder %v182, %v399
    %v402 = vsel %vm400, 1, 0
    %v403 = vsel %vm401, 1, 0
    %v404 = vadd.s32 %v402, %v403
    %v405 = vand.u32 %v404, 65535
    %v406 = vshrl.u32 %v404, 16
    %v407 = vcvt.s32.f32 %v405
    %v408 = vcvt.s32.f32 %v406
    %409 = vadd.xlane.f32.xlu0 %v407
    %v410 = vpop.xlane.xlu0 %409
    %411 = vadd.xlane.f32.xlu0 %v408
    %v412 = vpop.xlane.xlu0 %411
    %v413 = vcvt.f32.s32 %v410
    %v414 = vcvt.f32.s32 %v412
    %v415 = vshll.u32 %v414, 16
    %v416 = vadd.s32 %v415, %v413
    %v417 = vrot.slane %v416, 4
    %v418 = vadd.s32 %v416, %v417
    %v419 = vrot.slane %v418, 2
    %v420 = vadd.s32 %v418, %v419
    %v421 = vrot.slane %v420, 1
    %v422 = vadd.s32 %v420, %v421
    %vm423 = vcmp.ge.s32.totalorder %v422, 1025
    %v424 = vor.u32 %v398, 4194304
    %v425 = vsel %vm423, %v398, %v424
    %v426 = vor.u32 %v425, 2097151
    %vm427 = vcmp.le.s32.totalorder %v181, %v426
    %vm428 = vcmp.le.s32.totalorder %v182, %v426
    %v429 = vsel %vm427, 1, 0
    %v430 = vsel %vm428, 1, 0
    %v431 = vadd.s32 %v429, %v430
    %v432 = vand.u32 %v431, 65535
    %v433 = vshrl.u32 %v431, 16
    %v434 = vcvt.s32.f32 %v432
    %v435 = vcvt.s32.f32 %v433
    %436 = vadd.xlane.f32.xlu0 %v434
    %v437 = vpop.xlane.xlu0 %436
    %438 = vadd.xlane.f32.xlu0 %v435
    %v439 = vpop.xlane.xlu0 %438
    %v440 = vcvt.f32.s32 %v437
    %v441 = vcvt.f32.s32 %v439
    %v442 = vshll.u32 %v441, 16
    %v443 = vadd.s32 %v442, %v440
    %v444 = vrot.slane %v443, 4
    %v445 = vadd.s32 %v443, %v444
    %v446 = vrot.slane %v445, 2
    %v447 = vadd.s32 %v445, %v446
    %v448 = vrot.slane %v447, 1
    %v449 = vadd.s32 %v447, %v448
    %vm450 = vcmp.ge.s32.totalorder %v449, 1025
    %v451 = vor.u32 %v425, 2097152
    %v452 = vsel %vm450, %v425, %v451
    %v453 = vor.u32 %v452, 1048575
    %vm454 = vcmp.le.s32.totalorder %v181, %v453
    %vm455 = vcmp.le.s32.totalorder %v182, %v453
    %v456 = vsel %vm454, 1, 0
    %v457 = vsel %vm455, 1, 0
    %v458 = vadd.s32 %v456, %v457
    %v459 = vand.u32 %v458, 65535
    %v460 = vshrl.u32 %v458, 16
    %v461 = vcvt.s32.f32 %v459
    %v462 = vcvt.s32.f32 %v460
    %463 = vadd.xlane.f32.xlu0 %v461
    %v464 = vpop.xlane.xlu0 %463
    %465 = vadd.xlane.f32.xlu0 %v462
    %v466 = vpop.xlane.xlu0 %465
    %v467 = vcvt.f32.s32 %v464
    %v468 = vcvt.f32.s32 %v466
    %v469 = vshll.u32 %v468, 16
    %v470 = vadd.s32 %v469, %v467
    %v471 = vrot.slane %v470, 4
    %v472 = vadd.s32 %v470, %v471
    %v473 = vrot.slane %v472, 2
    %v474 = vadd.s32 %v472, %v473
    %v475 = vrot.slane %v474, 1
    %v476 = vadd.s32 %v474, %v475
    %vm477 = vcmp.ge.s32.totalorder %v476, 1025
    %v478 = vor.u32 %v452, 1048576
    %v479 = vsel %vm477, %v452, %v478
    %v480 = vor.u32 %v479, 524287
    %vm481 = vcmp.le.s32.totalorder %v181, %v480
    %vm482 = vcmp.le.s32.totalorder %v182, %v480
    %v483 = vsel %vm481, 1, 0
    %v484 = vsel %vm482, 1, 0
    %v485 = vadd.s32 %v483, %v484
    %v486 = vand.u32 %v485, 65535
    %v487 = vshrl.u32 %v485, 16
    %v488 = vcvt.s32.f32 %v486
    %v489 = vcvt.s32.f32 %v487
    %490 = vadd.xlane.f32.xlu0 %v488
    %v491 = vpop.xlane.xlu0 %490
    %492 = vadd.xlane.f32.xlu0 %v489
    %v493 = vpop.xlane.xlu0 %492
    %v494 = vcvt.f32.s32 %v491
    %v495 = vcvt.f32.s32 %v493
    %v496 = vshll.u32 %v495, 16
    %v497 = vadd.s32 %v496, %v494
    %v498 = vrot.slane %v497, 4
    %v499 = vadd.s32 %v497, %v498
    %v500 = vrot.slane %v499, 2
    %v501 = vadd.s32 %v499, %v500
    %v502 = vrot.slane %v501, 1
    %v503 = vadd.s32 %v501, %v502
    %vm504 = vcmp.ge.s32.totalorder %v503, 1025
    %v505 = vor.u32 %v479, 524288
    %v506 = vsel %vm504, %v479, %v505
    %v507 = vor.u32 %v506, 262143
    %vm508 = vcmp.le.s32.totalorder %v181, %v507
    %vm509 = vcmp.le.s32.totalorder %v182, %v507
    %v510 = vsel %vm508, 1, 0
    %v511 = vsel %vm509, 1, 0
    %v512 = vadd.s32 %v510, %v511
    %v513 = vand.u32 %v512, 65535
    %v514 = vshrl.u32 %v512, 16
    %v515 = vcvt.s32.f32 %v513
    %v516 = vcvt.s32.f32 %v514
    %517 = vadd.xlane.f32.xlu0 %v515
    %v518 = vpop.xlane.xlu0 %517
    %519 = vadd.xlane.f32.xlu0 %v516
    %v520 = vpop.xlane.xlu0 %519
    %v521 = vcvt.f32.s32 %v518
    %v522 = vcvt.f32.s32 %v520
    %v523 = vshll.u32 %v522, 16
    %v524 = vadd.s32 %v523, %v521
    %v525 = vrot.slane %v524, 4
    %v526 = vadd.s32 %v524, %v525
    %v527 = vrot.slane %v526, 2
    %v528 = vadd.s32 %v526, %v527
    %v529 = vrot.slane %v528, 1
    %v530 = vadd.s32 %v528, %v529
    %vm531 = vcmp.ge.s32.totalorder %v530, 1025
    %v532 = vor.u32 %v506, 262144
    %v533 = vsel %vm531, %v506, %v532
    %v534 = vor.u32 %v533, 131071
    %vm535 = vcmp.le.s32.totalorder %v181, %v534
    %vm536 = vcmp.le.s32.totalorder %v182, %v534
    %v537 = vsel %vm535, 1, 0
    %v538 = vsel %vm536, 1, 0
    %v539 = vadd.s32 %v537, %v538
    %v540 = vand.u32 %v539, 65535
    %v541 = vshrl.u32 %v539, 16
    %v542 = vcvt.s32.f32 %v540
    %v543 = vcvt.s32.f32 %v541
    %544 = vadd.xlane.f32.xlu0 %v542
    %v545 = vpop.xlane.xlu0 %544
    %546 = vadd.xlane.f32.xlu0 %v543
    %v547 = vpop.xlane.xlu0 %546
    %v548 = vcvt.f32.s32 %v545
    %v549 = vcvt.f32.s32 %v547
    %v550 = vshll.u32 %v549, 16
    %v551 = vadd.s32 %v550, %v548
    %v552 = vrot.slane %v551, 4
    %v553 = vadd.s32 %v551, %v552
    %v554 = vrot.slane %v553, 2
    %v555 = vadd.s32 %v553, %v554
    %v556 = vrot.slane %v555, 1
    %v557 = vadd.s32 %v555, %v556
    %vm558 = vcmp.ge.s32.totalorder %v557, 1025
    %v559 = vor.u32 %v533, 131072
    %v560 = vsel %vm558, %v533, %v559
    %v561 = vor.u32 %v560, 65535
    %vm562 = vcmp.le.s32.totalorder %v181, %v561
    %vm563 = vcmp.le.s32.totalorder %v182, %v561
    %v564 = vsel %vm562, 1, 0
    %v565 = vsel %vm563, 1, 0
    %v566 = vadd.s32 %v564, %v565
    %v567 = vand.u32 %v566, 65535
    %v568 = vshrl.u32 %v566, 16
    %v569 = vcvt.s32.f32 %v567
    %v570 = vcvt.s32.f32 %v568
    %571 = vadd.xlane.f32.xlu0 %v569
    %v572 = vpop.xlane.xlu0 %571
    %573 = vadd.xlane.f32.xlu0 %v570
    %v574 = vpop.xlane.xlu0 %573
    %v575 = vcvt.f32.s32 %v572
    %v576 = vcvt.f32.s32 %v574
    %v577 = vshll.u32 %v576, 16
    %v578 = vadd.s32 %v577, %v575
    %v579 = vrot.slane %v578, 4
    %v580 = vadd.s32 %v578, %v579
    %v581 = vrot.slane %v580, 2
    %v582 = vadd.s32 %v580, %v581
    %v583 = vrot.slane %v582, 1
    %v584 = vadd.s32 %v582, %v583
    %vm585 = vcmp.ge.s32.totalorder %v584, 1025
    %v586 = vor.u32 %v560, 65536
    %v587 = vsel %vm585, %v560, %v586
    %v588 = vor.u32 %v587, 32767
    %vm589 = vcmp.le.s32.totalorder %v181, %v588
    %vm590 = vcmp.le.s32.totalorder %v182, %v588
    %v591 = vsel %vm589, 1, 0
    %v592 = vsel %vm590, 1, 0
    %v593 = vadd.s32 %v591, %v592
    %v594 = vand.u32 %v593, 65535
    %v595 = vshrl.u32 %v593, 16
    %v596 = vcvt.s32.f32 %v594
    %v597 = vcvt.s32.f32 %v595
    %598 = vadd.xlane.f32.xlu0 %v596
    %v599 = vpop.xlane.xlu0 %598
    %600 = vadd.xlane.f32.xlu0 %v597
    %v601 = vpop.xlane.xlu0 %600
    %v602 = vcvt.f32.s32 %v599
    %v603 = vcvt.f32.s32 %v601
    %v604 = vshll.u32 %v603, 16
    %v605 = vadd.s32 %v604, %v602
    %v606 = vrot.slane %v605, 4
    %v607 = vadd.s32 %v605, %v606
    %v608 = vrot.slane %v607, 2
    %v609 = vadd.s32 %v607, %v608
    %v610 = vrot.slane %v609, 1
    %v611 = vadd.s32 %v609, %v610
    %vm612 = vcmp.ge.s32.totalorder %v611, 1025
    %v613 = vor.u32 %v587, 32768
    %v614 = vsel %vm612, %v587, %v613
    %v615 = vor.u32 %v614, 16383
    %vm616 = vcmp.le.s32.totalorder %v181, %v615
    %vm617 = vcmp.le.s32.totalorder %v182, %v615
    %v618 = vsel %vm616, 1, 0
    %v619 = vsel %vm617, 1, 0
    %v620 = vadd.s32 %v618, %v619
    %v621 = vand.u32 %v620, 65535
    %v622 = vshrl.u32 %v620, 16
    %v623 = vcvt.s32.f32 %v621
    %v624 = vcvt.s32.f32 %v622
    %625 = vadd.xlane.f32.xlu0 %v623
    %v626 = vpop.xlane.xlu0 %625
    %627 = vadd.xlane.f32.xlu0 %v624
    %v628 = vpop.xlane.xlu0 %627
    %v629 = vcvt.f32.s32 %v626
    %v630 = vcvt.f32.s32 %v628
    %v631 = vshll.u32 %v630, 16
    %v632 = vadd.s32 %v631, %v629
    %v633 = vrot.slane %v632, 4
    %v634 = vadd.s32 %v632, %v633
    %v635 = vrot.slane %v634, 2
    %v636 = vadd.s32 %v634, %v635
    %v637 = vrot.slane %v636, 1
    %v638 = vadd.s32 %v636, %v637
    %vm639 = vcmp.ge.s32.totalorder %v638, 1025
    %v640 = vor.u32 %v614, 16384
    %v641 = vsel %vm639, %v614, %v640
    %v642 = vor.u32 %v641, 8191
    %vm643 = vcmp.le.s32.totalorder %v181, %v642
    %vm644 = vcmp.le.s32.totalorder %v182, %v642
    %v645 = vsel %vm643, 1, 0
    %v646 = vsel %vm644, 1, 0
    %v647 = vadd.s32 %v645, %v646
    %v648 = vand.u32 %v647, 65535
    %v649 = vshrl.u32 %v647, 16
    %v650 = vcvt.s32.f32 %v648
    %v651 = vcvt.s32.f32 %v649
    %652 = vadd.xlane.f32.xlu0 %v650
    %v653 = vpop.xlane.xlu0 %652
    %654 = vadd.xlane.f32.xlu0 %v651
    %v655 = vpop.xlane.xlu0 %654
    %v656 = vcvt.f32.s32 %v653
    %v657 = vcvt.f32.s32 %v655
    %v658 = vshll.u32 %v657, 16
    %v659 = vadd.s32 %v658, %v656
    %v660 = vrot.slane %v659, 4
    %v661 = vadd.s32 %v659, %v660
    %v662 = vrot.slane %v661, 2
    %v663 = vadd.s32 %v661, %v662
    %v664 = vrot.slane %v663, 1
    %v665 = vadd.s32 %v663, %v664
    %vm666 = vcmp.ge.s32.totalorder %v665, 1025
    %v667 = vor.u32 %v641, 8192
    %v668 = vsel %vm666, %v641, %v667
    %v669 = vor.u32 %v668, 4095
    %vm670 = vcmp.le.s32.totalorder %v181, %v669
    %vm671 = vcmp.le.s32.totalorder %v182, %v669
    %v672 = vsel %vm670, 1, 0
    %v673 = vsel %vm671, 1, 0
    %v674 = vadd.s32 %v672, %v673
    %v675 = vand.u32 %v674, 65535
    %v676 = vshrl.u32 %v674, 16
    %v677 = vcvt.s32.f32 %v675
    %v678 = vcvt.s32.f32 %v676
    %679 = vadd.xlane.f32.xlu0 %v677
    %v680 = vpop.xlane.xlu0 %679
    %681 = vadd.xlane.f32.xlu0 %v678
    %v682 = vpop.xlane.xlu0 %681
    %v683 = vcvt.f32.s32 %v680
    %v684 = vcvt.f32.s32 %v682
    %v685 = vshll.u32 %v684, 16
    %v686 = vadd.s32 %v685, %v683
    %v687 = vrot.slane %v686, 4
    %v688 = vadd.s32 %v686, %v687
    %v689 = vrot.slane %v688, 2
    %v690 = vadd.s32 %v688, %v689
    %v691 = vrot.slane %v690, 1
    %v692 = vadd.s32 %v690, %v691
    %vm693 = vcmp.ge.s32.totalorder %v692, 1025
    %v694 = vor.u32 %v668, 4096
    %v695 = vsel %vm693, %v668, %v694
    %v696 = vor.u32 %v695, 2047
    %vm697 = vcmp.le.s32.totalorder %v181, %v696
    %vm698 = vcmp.le.s32.totalorder %v182, %v696
    %v699 = vsel %vm697, 1, 0
    %v700 = vsel %vm698, 1, 0
    %v701 = vadd.s32 %v699, %v700
    %v702 = vand.u32 %v701, 65535
    %v703 = vshrl.u32 %v701, 16
    %v704 = vcvt.s32.f32 %v702
    %v705 = vcvt.s32.f32 %v703
    %706 = vadd.xlane.f32.xlu0 %v704
    %v707 = vpop.xlane.xlu0 %706
    %708 = vadd.xlane.f32.xlu0 %v705
    %v709 = vpop.xlane.xlu0 %708
    %v710 = vcvt.f32.s32 %v707
    %v711 = vcvt.f32.s32 %v709
    %v712 = vshll.u32 %v711, 16
    %v713 = vadd.s32 %v712, %v710
    %v714 = vrot.slane %v713, 4
    %v715 = vadd.s32 %v713, %v714
    %v716 = vrot.slane %v715, 2
    %v717 = vadd.s32 %v715, %v716
    %v718 = vrot.slane %v717, 1
    %v719 = vadd.s32 %v717, %v718
    %vm720 = vcmp.ge.s32.totalorder %v719, 1025
    %v721 = vor.u32 %v695, 2048
    %v722 = vsel %vm720, %v695, %v721
    %v723 = vor.u32 %v722, 1023
    %vm724 = vcmp.le.s32.totalorder %v181, %v723
    %vm725 = vcmp.le.s32.totalorder %v182, %v723
    %v726 = vsel %vm724, 1, 0
    %v727 = vsel %vm725, 1, 0
    %v728 = vadd.s32 %v726, %v727
    %v729 = vand.u32 %v728, 65535
    %v730 = vshrl.u32 %v728, 16
    %v731 = vcvt.s32.f32 %v729
    %v732 = vcvt.s32.f32 %v730
    %733 = vadd.xlane.f32.xlu0 %v731
    %v734 = vpop.xlane.xlu0 %733
    %735 = vadd.xlane.f32.xlu0 %v732
    %v736 = vpop.xlane.xlu0 %735
    %v737 = vcvt.f32.s32 %v734
    %v738 = vcvt.f32.s32 %v736
    %v739 = vshll.u32 %v738, 16
    %v740 = vadd.s32 %v739, %v737
    %v741 = vrot.slane %v740, 4
    %v742 = vadd.s32 %v740, %v741
    %v743 = vrot.slane %v742, 2
    %v744 = vadd.s32 %v742, %v743
    %v745 = vrot.slane %v744, 1
    %v746 = vadd.s32 %v744, %v745
    %vm747 = vcmp.ge.s32.totalorder %v746, 1025
    %v748 = vor.u32 %v722, 1024
    %v749 = vsel %vm747, %v722, %v748
    %v750 = vor.u32 %v749, 511
    %vm751 = vcmp.le.s32.totalorder %v181, %v750
    %vm752 = vcmp.le.s32.totalorder %v182, %v750
    %v753 = vsel %vm751, 1, 0
    %v754 = vsel %vm752, 1, 0
    %v755 = vadd.s32 %v753, %v754
    %v756 = vand.u32 %v755, 65535
    %v757 = vshrl.u32 %v755, 16
    %v758 = vcvt.s32.f32 %v756
    %v759 = vcvt.s32.f32 %v757
    %760 = vadd.xlane.f32.xlu0 %v758
    %v761 = vpop.xlane.xlu0 %760
    %762 = vadd.xlane.f32.xlu0 %v759
    %v763 = vpop.xlane.xlu0 %762
    %v764 = vcvt.f32.s32 %v761
    %v765 = vcvt.f32.s32 %v763
    %v766 = vshll.u32 %v765, 16
    %v767 = vadd.s32 %v766, %v764
    %v768 = vrot.slane %v767, 4
    %v769 = vadd.s32 %v767, %v768
    %v770 = vrot.slane %v769, 2
    %v771 = vadd.s32 %v769, %v770
    %v772 = vrot.slane %v771, 1
    %v773 = vadd.s32 %v771, %v772
    %vm774 = vcmp.ge.s32.totalorder %v773, 1025
    %v775 = vor.u32 %v749, 512
    %v776 = vsel %vm774, %v749, %v775
    %v777 = vor.u32 %v776, 255
    %vm778 = vcmp.le.s32.totalorder %v181, %v777
    %vm779 = vcmp.le.s32.totalorder %v182, %v777
    %v780 = vsel %vm778, 1, 0
    %v781 = vsel %vm779, 1, 0
    %v782 = vadd.s32 %v780, %v781
    %v783 = vand.u32 %v782, 65535
    %v784 = vshrl.u32 %v782, 16
    %v785 = vcvt.s32.f32 %v783
    %v786 = vcvt.s32.f32 %v784
    %787 = vadd.xlane.f32.xlu0 %v785
    %v788 = vpop.xlane.xlu0 %787
    %789 = vadd.xlane.f32.xlu0 %v786
    %v790 = vpop.xlane.xlu0 %789
    %v791 = vcvt.f32.s32 %v788
    %v792 = vcvt.f32.s32 %v790
    %v793 = vshll.u32 %v792, 16
    %v794 = vadd.s32 %v793, %v791
    %v795 = vrot.slane %v794, 4
    %v796 = vadd.s32 %v794, %v795
    %v797 = vrot.slane %v796, 2
    %v798 = vadd.s32 %v796, %v797
    %v799 = vrot.slane %v798, 1
    %v800 = vadd.s32 %v798, %v799
    %vm801 = vcmp.ge.s32.totalorder %v800, 1025
    %v802 = vor.u32 %v776, 256
    %v803 = vsel %vm801, %v776, %v802
    %v804 = vor.u32 %v803, 127
    %vm805 = vcmp.le.s32.totalorder %v181, %v804
    %vm806 = vcmp.le.s32.totalorder %v182, %v804
    %v807 = vsel %vm805, 1, 0
    %v808 = vsel %vm806, 1, 0
    %v809 = vadd.s32 %v807, %v808
    %v810 = vand.u32 %v809, 65535
    %v811 = vshrl.u32 %v809, 16
    %v812 = vcvt.s32.f32 %v810
    %v813 = vcvt.s32.f32 %v811
    %814 = vadd.xlane.f32.xlu0 %v812
    %v815 = vpop.xlane.xlu0 %814
    %816 = vadd.xlane.f32.xlu0 %v813
    %v817 = vpop.xlane.xlu0 %816
    %v818 = vcvt.f32.s32 %v815
    %v819 = vcvt.f32.s32 %v817
    %v820 = vshll.u32 %v819, 16
    %v821 = vadd.s32 %v820, %v818
    %v822 = vrot.slane %v821, 4
    %v823 = vadd.s32 %v821, %v822
    %v824 = vrot.slane %v823, 2
    %v825 = vadd.s32 %v823, %v824
    %v826 = vrot.slane %v825, 1
    %v827 = vadd.s32 %v825, %v826
    %vm828 = vcmp.ge.s32.totalorder %v827, 1025
    %v829 = vor.u32 %v803, 128
    %v830 = vsel %vm828, %v803, %v829
    %v831 = vor.u32 %v830, 63
    %vm832 = vcmp.le.s32.totalorder %v181, %v831
    %vm833 = vcmp.le.s32.totalorder %v182, %v831
    %v834 = vsel %vm832, 1, 0
    %v835 = vsel %vm833, 1, 0
    %v836 = vadd.s32 %v834, %v835
    %v837 = vand.u32 %v836, 65535
    %v838 = vshrl.u32 %v836, 16
    %v839 = vcvt.s32.f32 %v837
    %v840 = vcvt.s32.f32 %v838
    %841 = vadd.xlane.f32.xlu0 %v839
    %v842 = vpop.xlane.xlu0 %841
    %843 = vadd.xlane.f32.xlu0 %v840
    %v844 = vpop.xlane.xlu0 %843
    %v845 = vcvt.f32.s32 %v842
    %v846 = vcvt.f32.s32 %v844
    %v847 = vshll.u32 %v846, 16
    %v848 = vadd.s32 %v847, %v845
    %v849 = vrot.slane %v848, 4
    %v850 = vadd.s32 %v848, %v849
    %v851 = vrot.slane %v850, 2
    %v852 = vadd.s32 %v850, %v851
    %v853 = vrot.slane %v852, 1
    %v854 = vadd.s32 %v852, %v853
    %vm855 = vcmp.ge.s32.totalorder %v854, 1025
    %v856 = vor.u32 %v830, 64
    %v857 = vsel %vm855, %v830, %v856
    %v858 = vor.u32 %v857, 31
    %vm859 = vcmp.le.s32.totalorder %v181, %v858
    %vm860 = vcmp.le.s32.totalorder %v182, %v858
    %v861 = vsel %vm859, 1, 0
    %v862 = vsel %vm860, 1, 0
    %v863 = vadd.s32 %v861, %v862
    %v864 = vand.u32 %v863, 65535
    %v865 = vshrl.u32 %v863, 16
    %v866 = vcvt.s32.f32 %v864
    %v867 = vcvt.s32.f32 %v865
    %868 = vadd.xlane.f32.xlu0 %v866
    %v869 = vpop.xlane.xlu0 %868
    %870 = vadd.xlane.f32.xlu0 %v867
    %v871 = vpop.xlane.xlu0 %870
    %v872 = vcvt.f32.s32 %v869
    %v873 = vcvt.f32.s32 %v871
    %v874 = vshll.u32 %v873, 16
    %v875 = vadd.s32 %v874, %v872
    %v876 = vrot.slane %v875, 4
    %v877 = vadd.s32 %v875, %v876
    %v878 = vrot.slane %v877, 2
    %v879 = vadd.s32 %v877, %v878
    %v880 = vrot.slane %v879, 1
    %v881 = vadd.s32 %v879, %v880
    %vm882 = vcmp.ge.s32.totalorder %v881, 1025
    %v883 = vor.u32 %v857, 32
    %v884 = vsel %vm882, %v857, %v883
    %v885 = vor.u32 %v884, 15
    %vm886 = vcmp.le.s32.totalorder %v181, %v885
    %vm887 = vcmp.le.s32.totalorder %v182, %v885
    %v888 = vsel %vm886, 1, 0
    %v889 = vsel %vm887, 1, 0
    %v890 = vadd.s32 %v888, %v889
    %v891 = vand.u32 %v890, 65535
    %v892 = vshrl.u32 %v890, 16
    %v893 = vcvt.s32.f32 %v891
    %v894 = vcvt.s32.f32 %v892
    %895 = vadd.xlane.f32.xlu0 %v893
    %v896 = vpop.xlane.xlu0 %895
    %897 = vadd.xlane.f32.xlu0 %v894
    %v898 = vpop.xlane.xlu0 %897
    %v899 = vcvt.f32.s32 %v896
    %v900 = vcvt.f32.s32 %v898
    %v901 = vshll.u32 %v900, 16
    %v902 = vadd.s32 %v901, %v899
    %v903 = vrot.slane %v902, 4
    %v904 = vadd.s32 %v902, %v903
    %v905 = vrot.slane %v904, 2
    %v906 = vadd.s32 %v904, %v905
    %v907 = vrot.slane %v906, 1
    %v908 = vadd.s32 %v906, %v907
    %vm909 = vcmp.ge.s32.totalorder %v908, 1025
    %v910 = vor.u32 %v884, 16
    %v911 = vsel %vm909, %v884, %v910
    %v912 = vor.u32 %v911, 7
    %vm913 = vcmp.le.s32.totalorder %v181, %v912
    %vm914 = vcmp.le.s32.totalorder %v182, %v912
    %v915 = vsel %vm913, 1, 0
    %v916 = vsel %vm914, 1, 0
    %v917 = vadd.s32 %v915, %v916
    %v918 = vand.u32 %v917, 65535
    %v919 = vshrl.u32 %v917, 16
    %v920 = vcvt.s32.f32 %v918
    %v921 = vcvt.s32.f32 %v919
    %922 = vadd.xlane.f32.xlu0 %v920
    %v923 = vpop.xlane.xlu0 %922
    %924 = vadd.xlane.f32.xlu0 %v921
    %v925 = vpop.xlane.xlu0 %924
    %v926 = vcvt.f32.s32 %v923
    %v927 = vcvt.f32.s32 %v925
    %v928 = vshll.u32 %v927, 16
    %v929 = vadd.s32 %v928, %v926
    %v930 = vrot.slane %v929, 4
    %v931 = vadd.s32 %v929, %v930
    %v932 = vrot.slane %v931, 2
    %v933 = vadd.s32 %v931, %v932
    %v934 = vrot.slane %v933, 1
    %v935 = vadd.s32 %v933, %v934
    %vm936 = vcmp.ge.s32.totalorder %v935, 1025
    %v937 = vor.u32 %v911, 8
    %v938 = vsel %vm936, %v911, %v937
    %v939 = vor.u32 %v938, 3
    %vm940 = vcmp.le.s32.totalorder %v181, %v939
    %vm941 = vcmp.le.s32.totalorder %v182, %v939
    %v942 = vsel %vm940, 1, 0
    %v943 = vsel %vm941, 1, 0
    %v944 = vadd.s32 %v942, %v943
    %v945 = vand.u32 %v944, 65535
    %v946 = vshrl.u32 %v944, 16
    %v947 = vcvt.s32.f32 %v945
    %v948 = vcvt.s32.f32 %v946
    %949 = vadd.xlane.f32.xlu0 %v947
    %v950 = vpop.xlane.xlu0 %949
    %951 = vadd.xlane.f32.xlu0 %v948
    %v952 = vpop.xlane.xlu0 %951
    %v953 = vcvt.f32.s32 %v950
    %v954 = vcvt.f32.s32 %v952
    %v955 = vshll.u32 %v954, 16
    %v956 = vadd.s32 %v955, %v953
    %v957 = vrot.slane %v956, 4
    %v958 = vadd.s32 %v956, %v957
    %v959 = vrot.slane %v958, 2
    %v960 = vadd.s32 %v958, %v959
    %v961 = vrot.slane %v960, 1
    %v962 = vadd.s32 %v960, %v961
    %vm963 = vcmp.ge.s32.totalorder %v962, 1025
    %v964 = vor.u32 %v938, 4
    %v965 = vsel %vm963, %v938, %v964
    %v966 = vor.u32 %v965, 1
    %vm967 = vcmp.le.s32.totalorder %v181, %v966
    %vm968 = vcmp.le.s32.totalorder %v182, %v966
    %v969 = vsel %vm967, 1, 0
    %v970 = vsel %vm968, 1, 0
    %v971 = vadd.s32 %v969, %v970
    %v972 = vand.u32 %v971, 65535
    %v973 = vshrl.u32 %v971, 16
    %v974 = vcvt.s32.f32 %v972
    %v975 = vcvt.s32.f32 %v973
    %976 = vadd.xlane.f32.xlu0 %v974
    %v977 = vpop.xlane.xlu0 %976
    %978 = vadd.xlane.f32.xlu0 %v975
    %v979 = vpop.xlane.xlu0 %978
    %v980 = vcvt.f32.s32 %v977
    %v981 = vcvt.f32.s32 %v979
    %v982 = vshll.u32 %v981, 16
    %v983 = vadd.s32 %v982, %v980
    %v984 = vrot.slane %v983, 4
    %v985 = vadd.s32 %v983, %v984
    %v986 = vrot.slane %v985, 2
    %v987 = vadd.s32 %v985, %v986
    %v988 = vrot.slane %v987, 1
    %v989 = vadd.s32 %v987, %v988
    %vm990 = vcmp.ge.s32.totalorder %v989, 1025
    %v991 = vor.u32 %v965, 2
    %v992 = vsel %vm990, %v965, %v991
    %vm993 = vcmp.le.s32.totalorder %v181, %v992
    %vm994 = vcmp.le.s32.totalorder %v182, %v992
    %v995 = vsel %vm993, 1, 0
    %v996 = vsel %vm994, 1, 0
    %v997 = vadd.s32 %v995, %v996
    %v998 = vand.u32 %v997, 65535
    %v999 = vshrl.u32 %v997, 16
    %v1000 = vcvt.s32.f32 %v998
    %v1001 = vcvt.s32.f32 %v999
    %1002 = vadd.xlane.f32.xlu0 %v1000
    %v1003 = vpop.xlane.xlu0 %1002
    %1004 = vadd.xlane.f32.xlu0 %v1001
    %v1005 = vpop.xlane.xlu0 %1004
    %v1006 = vcvt.f32.s32 %v1003
    %v1007 = vcvt.f32.s32 %v1005
    %v1008 = vshll.u32 %v1007, 16
    %v1009 = vadd.s32 %v1008, %v1006
    %v1010 = vrot.slane %v1009, 4
    %v1011 = vadd.s32 %v1009, %v1010
    %v1012 = vrot.slane %v1011, 2
    %v1013 = vadd.s32 %v1011, %v1012
    %v1014 = vrot.slane %v1013, 1
    %v1015 = vadd.s32 %v1013, %v1014
    %vm1016 = vcmp.ge.s32.totalorder %v1015, 1025
    %v1017 = vor.u32 %v992, 1
    %v1018 = vsel %vm1016, %v992, %v1017
    %vm1019 = vcmp.ge.s32.totalorder %v181, %v1018
    %vm1020 = vcmp.ge.s32.totalorder %v182, %v1018
    %v1021 = vsel %vm1019, %v179, 0.0
    %v1022 = vsel %vm1020, %v180, 0.0
    %v1023 = vpack.c.bf16 %v1021, %v1021
    %v1024 = vpack.c.bf16 %v1022, %v1022
    %v1025 = vld [vmem:[%s3] sm:$0xf]
    %v1026 = vld [vmem:[%s3 + $0x4] sm:$0xf]
    %v1027 = vld [vmem:[%s3 + $0x8] sm:$0xf]
    %v1028 = vld [vmem:[%s3 + $0xc] sm:$0xf]
    %v1029 = vld [vmem:[%s3 + $0x10] sm:$0xf]
    %v1030 = vld [vmem:[%s3 + $0x14] sm:$0xf]
    %v1031 = vld [vmem:[%s3 + $0x18] sm:$0xf]
    %v1032 = vld [vmem:[%s3 + $0x1c] sm:$0xf]
    %v1033 = vld [vmem:[%s3 + $0x20] sm:$0xf]
    %v1034 = vld [vmem:[%s3 + $0x24] sm:$0xf]
    %v1035 = vld [vmem:[%s3 + $0x28] sm:$0xf]
    %v1036 = vld [vmem:[%s3 + $0x2c] sm:$0xf]
    %v1037 = vld [vmem:[%s3 + $0x30] sm:$0xf]
    %v1038 = vld [vmem:[%s3 + $0x34] sm:$0xf]
    %v1039 = vld [vmem:[%s3 + $0x38] sm:$0xf]
    %v1040 = vld [vmem:[%s3 + $0x3c] sm:$0xf]
    %v1041 = vld [vmem:[%s3 + $0x40] sm:$0xf]
    %v1042 = vld [vmem:[%s3 + $0x44] sm:$0xf]
    %v1043 = vld [vmem:[%s3 + $0x48] sm:$0xf]
    %v1044 = vld [vmem:[%s3 + $0x4c] sm:$0xf]
    %v1045 = vld [vmem:[%s3 + $0x50] sm:$0xf]
    %v1046 = vld [vmem:[%s3 + $0x54] sm:$0xf]
    %v1047 = vld [vmem:[%s3 + $0x58] sm:$0xf]
    %v1048 = vld [vmem:[%s3 + $0x5c] sm:$0xf]
    %v1049 = vld [vmem:[%s3 + $0x60] sm:$0xf]
    %v1050 = vld [vmem:[%s3 + $0x64] sm:$0xf]
    %v1051 = vld [vmem:[%s3 + $0x68] sm:$0xf]
    %v1052 = vld [vmem:[%s3 + $0x6c] sm:$0xf]
    %v1053 = vld [vmem:[%s3 + $0x70] sm:$0xf]
    %v1054 = vld [vmem:[%s3 + $0x74] sm:$0xf]
    %v1055 = vld [vmem:[%s3 + $0x78] sm:$0xf]
    %v1056 = vld [vmem:[%s3 + $0x7c] sm:$0xf]
    %v1057 = vld [vmem:[%s4] sm:$0x1]
    %v1059 = vlaneseq
    %v1060 = vshrl.u32 %v1059, 7
    %v1061 = vsub.s32 0, %v1060
    %v1062 = vrot.slane %v1057, %v1061
    %v1096 = vunpack.c.l.b16 %v1025
    %v1097 = vunpack.c.l.b16 %v1026
    %v1098 = vunpack.c.l.b16 %v1027
    %v1099 = vunpack.c.l.b16 %v1028
    %v1100 = vunpack.c.l.b16 %v1029
    %v1101 = vunpack.c.l.b16 %v1030
    %v1102 = vunpack.c.l.b16 %v1031
    %v1103 = vunpack.c.l.b16 %v1032
    %v1104 = vunpack.c.l.b16 %v1033
    %v1105 = vunpack.c.l.b16 %v1034
    %v1106 = vunpack.c.l.b16 %v1035
    %v1107 = vunpack.c.l.b16 %v1036
    %v1108 = vunpack.c.l.b16 %v1037
    %v1109 = vunpack.c.l.b16 %v1038
    %v1110 = vunpack.c.l.b16 %v1039
    %v1111 = vunpack.c.l.b16 %v1040
    %v1112 = vunpack.c.l.b16 %v1041
    %v1113 = vunpack.c.l.b16 %v1042
    %v1114 = vunpack.c.l.b16 %v1043
    %v1115 = vunpack.c.l.b16 %v1044
    %v1116 = vunpack.c.l.b16 %v1045
    %v1117 = vunpack.c.l.b16 %v1046
    %v1118 = vunpack.c.l.b16 %v1047
    %v1119 = vunpack.c.l.b16 %v1048
    %v1120 = vunpack.c.l.b16 %v1049
    %v1121 = vunpack.c.l.b16 %v1050
    %v1122 = vunpack.c.l.b16 %v1051
    %v1123 = vunpack.c.l.b16 %v1052
    %v1124 = vunpack.c.l.b16 %v1053
    %v1125 = vunpack.c.l.b16 %v1054
    %v1126 = vunpack.c.l.b16 %v1055
    %v1127 = vunpack.c.l.b16 %v1056
    %v1128 = vpack.c.b16 %v1097, %v1096
    %v1129 = vpack.c.b16 %v1099, %v1098
    %v1130 = vpack.c.b16 %v1101, %v1100
    %v1131 = vpack.c.b16 %v1103, %v1102
    %v1132 = vpack.c.b16 %v1105, %v1104
    %v1133 = vpack.c.b16 %v1107, %v1106
    %v1134 = vpack.c.b16 %v1109, %v1108
    %v1135 = vpack.c.b16 %v1111, %v1110
    %v1136 = vpack.c.b16 %v1113, %v1112
    %v1137 = vpack.c.b16 %v1115, %v1114
    %v1138 = vpack.c.b16 %v1117, %v1116
    %v1139 = vpack.c.b16 %v1119, %v1118
    %v1140 = vpack.c.b16 %v1121, %v1120
    %v1141 = vpack.c.b16 %v1123, %v1122
    %v1142 = vpack.c.b16 %v1125, %v1124
    %v1143 = vpack.c.b16 %v1127, %v1126
    %1160 = vmatprep.subr.bf16.mxu0 0
    %1161 = vmatpush1.bf16.msra.mxu0 %v1135
    %1162 = vmatprep.subr.bf16.mxu0 0
    %1163 = vmatpush1.bf16.msra.mxu0 %v1134
    %1164 = vmatprep.subr.bf16.mxu0 0
    %1165 = vmatpush1.bf16.msra.mxu0 %v1133
    %1166 = vmatprep.subr.bf16.mxu0 0
    %1167 = vmatpush1.bf16.msra.mxu0 %v1132
    %1168 = vmatprep.subr.bf16.mxu0 0
    %1169 = vmatpush1.bf16.msra.mxu0 %v1131
    %1170 = vmatprep.subr.bf16.mxu0 0
    %1171 = vmatpush1.bf16.msra.mxu0 %v1130
    %1172 = vmatprep.subr.bf16.mxu0 0
    %1173 = vmatpush1.bf16.msra.mxu0 %v1129
    %1174 = vmatprep.subr.bf16.mxu0 0
    %1175 = vmatpush1.bf16.msra.mxu0 %v1128
    %1176 = vmatprep.subr.bf16.mxu0 0
    %1177 = vmatpush2.bf16.msra.mxu0 %v1143
    %1178 = vmatprep.subr.bf16.mxu0 0
    %1179 = vmatpush2.bf16.msra.mxu0 %v1142
    %1180 = vmatprep.subr.bf16.mxu0 0
    %1181 = vmatpush2.bf16.msra.mxu0 %v1141
    %1182 = vmatprep.subr.bf16.mxu0 0
    %1183 = vmatpush2.bf16.msra.mxu0 %v1140
    %1184 = vmatprep.subr.bf16.mxu0 0
    %1185 = vmatpush2.bf16.msra.mxu0 %v1139
    %1186 = vmatprep.subr.bf16.mxu0 0
    %1187 = vmatpush2.bf16.msra.mxu0 %v1138
    %1188 = vmatprep.subr.bf16.mxu0 0
    %1189 = vmatpush2.bf16.msra.mxu0 %v1137
    %1190 = vmatprep.subr.bf16.mxu0 0
    %1191 = vmatpush2.bf16.msra.mxu0 %v1136
    %1192 = vmatprep.mubr.bf16.mxu0 %v1024
    %1193 = vmatmul.mubr.bf16.gmra.mxu0 %v1023
    %v1194 = vpop.f32.mrf.mxu0
    %v1195 = vadd.f32 %v1062, %v1194
    %v1196 = vpop.f32.mrf.mxu0
    %v1197 = vpop.f32.mrf.mxu0
    %v1198 = vpop.f32.mrf.mxu0
    %1199 = vdwg.mxu0
    %v1200 = vmax.f32 %v1195, 0.0
    %v1201 = vand.u32 2147483647, %v1200
    %vm1203 = vcmp.le.s32.totalorder %v1201, 1073741823
    %v1204 = vsel %vm1203, 1, 0
    %v1205 = vand.u32 %v1204, 65535
    %v1206 = vshrl.u32 %v1204, 16
    %v1207 = vcvt.s32.f32 %v1205
    %v1208 = vcvt.s32.f32 %v1206
    %1209 = vadd.xlane.f32.xlu0 %v1207
    %v1210 = vpop.xlane.xlu0 %1209
    %1211 = vadd.xlane.f32.xlu0 %v1208
    %v1212 = vpop.xlane.xlu0 %1211
    %v1213 = vcvt.f32.s32 %v1210
    %v1214 = vcvt.f32.s32 %v1212
    %v1215 = vshll.u32 %v1214, 16
    %v1216 = vadd.s32 %v1215, %v1213
    %v1217 = vrot.slane %v1216, 4
    %v1218 = vadd.s32 %v1216, %v1217
    %v1219 = vrot.slane %v1218, 2
    %v1220 = vadd.s32 %v1218, %v1219
    %v1221 = vrot.slane %v1220, 1
    %v1222 = vadd.s32 %v1220, %v1221
    %vm1223 = vcmp.ge.s32.totalorder %v1222, 513
    %v1224 = vsel %vm1223, 0, 1073741824
    %v1225 = vor.u32 %v1224, 536870911
    %vm1226 = vcmp.le.s32.totalorder %v1201, %v1225
    %v1227 = vsel %vm1226, 1, 0
    %v1228 = vand.u32 %v1227, 65535
    %v1229 = vshrl.u32 %v1227, 16
    %v1230 = vcvt.s32.f32 %v1228
    %v1231 = vcvt.s32.f32 %v1229
    %1232 = vadd.xlane.f32.xlu0 %v1230
    %v1233 = vpop.xlane.xlu0 %1232
    %1234 = vadd.xlane.f32.xlu0 %v1231
    %v1235 = vpop.xlane.xlu0 %1234
    %v1236 = vcvt.f32.s32 %v1233
    %v1237 = vcvt.f32.s32 %v1235
    %v1238 = vshll.u32 %v1237, 16
    %v1239 = vadd.s32 %v1238, %v1236
    %v1240 = vrot.slane %v1239, 4
    %v1241 = vadd.s32 %v1239, %v1240
    %v1242 = vrot.slane %v1241, 2
    %v1243 = vadd.s32 %v1241, %v1242
    %v1244 = vrot.slane %v1243, 1
    %v1245 = vadd.s32 %v1243, %v1244
    %vm1246 = vcmp.ge.s32.totalorder %v1245, 513
    %v1247 = vor.u32 %v1224, 536870912
    %v1248 = vsel %vm1246, %v1224, %v1247
    %v1249 = vor.u32 %v1248, 268435455
    %vm1250 = vcmp.le.s32.totalorder %v1201, %v1249
    %v1251 = vsel %vm1250, 1, 0
    %v1252 = vand.u32 %v1251, 65535
    %v1253 = vshrl.u32 %v1251, 16
    %v1254 = vcvt.s32.f32 %v1252
    %v1255 = vcvt.s32.f32 %v1253
    %1256 = vadd.xlane.f32.xlu0 %v1254
    %v1257 = vpop.xlane.xlu0 %1256
    %1258 = vadd.xlane.f32.xlu0 %v1255
    %v1259 = vpop.xlane.xlu0 %1258
    %v1260 = vcvt.f32.s32 %v1257
    %v1261 = vcvt.f32.s32 %v1259
    %v1262 = vshll.u32 %v1261, 16
    %v1263 = vadd.s32 %v1262, %v1260
    %v1264 = vrot.slane %v1263, 4
    %v1265 = vadd.s32 %v1263, %v1264
    %v1266 = vrot.slane %v1265, 2
    %v1267 = vadd.s32 %v1265, %v1266
    %v1268 = vrot.slane %v1267, 1
    %v1269 = vadd.s32 %v1267, %v1268
    %vm1270 = vcmp.ge.s32.totalorder %v1269, 513
    %v1271 = vor.u32 %v1248, 268435456
    %v1272 = vsel %vm1270, %v1248, %v1271
    %v1273 = vor.u32 %v1272, 134217727
    %vm1274 = vcmp.le.s32.totalorder %v1201, %v1273
    %v1275 = vsel %vm1274, 1, 0
    %v1276 = vand.u32 %v1275, 65535
    %v1277 = vshrl.u32 %v1275, 16
    %v1278 = vcvt.s32.f32 %v1276
    %v1279 = vcvt.s32.f32 %v1277
    %1280 = vadd.xlane.f32.xlu0 %v1278
    %v1281 = vpop.xlane.xlu0 %1280
    %1282 = vadd.xlane.f32.xlu0 %v1279
    %v1283 = vpop.xlane.xlu0 %1282
    %v1284 = vcvt.f32.s32 %v1281
    %v1285 = vcvt.f32.s32 %v1283
    %v1286 = vshll.u32 %v1285, 16
    %v1287 = vadd.s32 %v1286, %v1284
    %v1288 = vrot.slane %v1287, 4
    %v1289 = vadd.s32 %v1287, %v1288
    %v1290 = vrot.slane %v1289, 2
    %v1291 = vadd.s32 %v1289, %v1290
    %v1292 = vrot.slane %v1291, 1
    %v1293 = vadd.s32 %v1291, %v1292
    %vm1294 = vcmp.ge.s32.totalorder %v1293, 513
    %v1295 = vor.u32 %v1272, 134217728
    %v1296 = vsel %vm1294, %v1272, %v1295
    %v1297 = vor.u32 %v1296, 67108863
    %vm1298 = vcmp.le.s32.totalorder %v1201, %v1297
    %v1299 = vsel %vm1298, 1, 0
    %v1300 = vand.u32 %v1299, 65535
    %v1301 = vshrl.u32 %v1299, 16
    %v1302 = vcvt.s32.f32 %v1300
    %v1303 = vcvt.s32.f32 %v1301
    %1304 = vadd.xlane.f32.xlu0 %v1302
    %v1305 = vpop.xlane.xlu0 %1304
    %1306 = vadd.xlane.f32.xlu0 %v1303
    %v1307 = vpop.xlane.xlu0 %1306
    %v1308 = vcvt.f32.s32 %v1305
    %v1309 = vcvt.f32.s32 %v1307
    %v1310 = vshll.u32 %v1309, 16
    %v1311 = vadd.s32 %v1310, %v1308
    %v1312 = vrot.slane %v1311, 4
    %v1313 = vadd.s32 %v1311, %v1312
    %v1314 = vrot.slane %v1313, 2
    %v1315 = vadd.s32 %v1313, %v1314
    %v1316 = vrot.slane %v1315, 1
    %v1317 = vadd.s32 %v1315, %v1316
    %vm1318 = vcmp.ge.s32.totalorder %v1317, 513
    %v1319 = vor.u32 %v1296, 67108864
    %v1320 = vsel %vm1318, %v1296, %v1319
    %v1321 = vor.u32 %v1320, 33554431
    %vm1322 = vcmp.le.s32.totalorder %v1201, %v1321
    %v1323 = vsel %vm1322, 1, 0
    %v1324 = vand.u32 %v1323, 65535
    %v1325 = vshrl.u32 %v1323, 16
    %v1326 = vcvt.s32.f32 %v1324
    %v1327 = vcvt.s32.f32 %v1325
    %1328 = vadd.xlane.f32.xlu0 %v1326
    %v1329 = vpop.xlane.xlu0 %1328
    %1330 = vadd.xlane.f32.xlu0 %v1327
    %v1331 = vpop.xlane.xlu0 %1330
    %v1332 = vcvt.f32.s32 %v1329
    %v1333 = vcvt.f32.s32 %v1331
    %v1334 = vshll.u32 %v1333, 16
    %v1335 = vadd.s32 %v1334, %v1332
    %v1336 = vrot.slane %v1335, 4
    %v1337 = vadd.s32 %v1335, %v1336
    %v1338 = vrot.slane %v1337, 2
    %v1339 = vadd.s32 %v1337, %v1338
    %v1340 = vrot.slane %v1339, 1
    %v1341 = vadd.s32 %v1339, %v1340
    %vm1342 = vcmp.ge.s32.totalorder %v1341, 513
    %v1343 = vor.u32 %v1320, 33554432
    %v1344 = vsel %vm1342, %v1320, %v1343
    %v1345 = vor.u32 %v1344, 16777215
    %vm1346 = vcmp.le.s32.totalorder %v1201, %v1345
    %v1347 = vsel %vm1346, 1, 0
    %v1348 = vand.u32 %v1347, 65535
    %v1349 = vshrl.u32 %v1347, 16
    %v1350 = vcvt.s32.f32 %v1348
    %v1351 = vcvt.s32.f32 %v1349
    %1352 = vadd.xlane.f32.xlu0 %v1350
    %v1353 = vpop.xlane.xlu0 %1352
    %1354 = vadd.xlane.f32.xlu0 %v1351
    %v1355 = vpop.xlane.xlu0 %1354
    %v1356 = vcvt.f32.s32 %v1353
    %v1357 = vcvt.f32.s32 %v1355
    %v1358 = vshll.u32 %v1357, 16
    %v1359 = vadd.s32 %v1358, %v1356
    %v1360 = vrot.slane %v1359, 4
    %v1361 = vadd.s32 %v1359, %v1360
    %v1362 = vrot.slane %v1361, 2
    %v1363 = vadd.s32 %v1361, %v1362
    %v1364 = vrot.slane %v1363, 1
    %v1365 = vadd.s32 %v1363, %v1364
    %vm1366 = vcmp.ge.s32.totalorder %v1365, 513
    %v1367 = vor.u32 %v1344, 16777216
    %v1368 = vsel %vm1366, %v1344, %v1367
    %v1369 = vor.u32 %v1368, 8388607
    %vm1370 = vcmp.le.s32.totalorder %v1201, %v1369
    %v1371 = vsel %vm1370, 1, 0
    %v1372 = vand.u32 %v1371, 65535
    %v1373 = vshrl.u32 %v1371, 16
    %v1374 = vcvt.s32.f32 %v1372
    %v1375 = vcvt.s32.f32 %v1373
    %1376 = vadd.xlane.f32.xlu0 %v1374
    %v1377 = vpop.xlane.xlu0 %1376
    %1378 = vadd.xlane.f32.xlu0 %v1375
    %v1379 = vpop.xlane.xlu0 %1378
    %v1380 = vcvt.f32.s32 %v1377
    %v1381 = vcvt.f32.s32 %v1379
    %v1382 = vshll.u32 %v1381, 16
    %v1383 = vadd.s32 %v1382, %v1380
    %v1384 = vrot.slane %v1383, 4
    %v1385 = vadd.s32 %v1383, %v1384
    %v1386 = vrot.slane %v1385, 2
    %v1387 = vadd.s32 %v1385, %v1386
    %v1388 = vrot.slane %v1387, 1
    %v1389 = vadd.s32 %v1387, %v1388
    %vm1390 = vcmp.ge.s32.totalorder %v1389, 513
    %v1391 = vor.u32 %v1368, 8388608
    %v1392 = vsel %vm1390, %v1368, %v1391
    %v1393 = vor.u32 %v1392, 4194303
    %vm1394 = vcmp.le.s32.totalorder %v1201, %v1393
    %v1395 = vsel %vm1394, 1, 0
    %v1396 = vand.u32 %v1395, 65535
    %v1397 = vshrl.u32 %v1395, 16
    %v1398 = vcvt.s32.f32 %v1396
    %v1399 = vcvt.s32.f32 %v1397
    %1400 = vadd.xlane.f32.xlu0 %v1398
    %v1401 = vpop.xlane.xlu0 %1400
    %1402 = vadd.xlane.f32.xlu0 %v1399
    %v1403 = vpop.xlane.xlu0 %1402
    %v1404 = vcvt.f32.s32 %v1401
    %v1405 = vcvt.f32.s32 %v1403
    %v1406 = vshll.u32 %v1405, 16
    %v1407 = vadd.s32 %v1406, %v1404
    %v1408 = vrot.slane %v1407, 4
    %v1409 = vadd.s32 %v1407, %v1408
    %v1410 = vrot.slane %v1409, 2
    %v1411 = vadd.s32 %v1409, %v1410
    %v1412 = vrot.slane %v1411, 1
    %v1413 = vadd.s32 %v1411, %v1412
    %vm1414 = vcmp.ge.s32.totalorder %v1413, 513
    %v1415 = vor.u32 %v1392, 4194304
    %v1416 = vsel %vm1414, %v1392, %v1415
    %v1417 = vor.u32 %v1416, 2097151
    %vm1418 = vcmp.le.s32.totalorder %v1201, %v1417
    %v1419 = vsel %vm1418, 1, 0
    %v1420 = vand.u32 %v1419, 65535
    %v1421 = vshrl.u32 %v1419, 16
    %v1422 = vcvt.s32.f32 %v1420
    %v1423 = vcvt.s32.f32 %v1421
    %1424 = vadd.xlane.f32.xlu0 %v1422
    %v1425 = vpop.xlane.xlu0 %1424
    %1426 = vadd.xlane.f32.xlu0 %v1423
    %v1427 = vpop.xlane.xlu0 %1426
    %v1428 = vcvt.f32.s32 %v1425
    %v1429 = vcvt.f32.s32 %v1427
    %v1430 = vshll.u32 %v1429, 16
    %v1431 = vadd.s32 %v1430, %v1428
    %v1432 = vrot.slane %v1431, 4
    %v1433 = vadd.s32 %v1431, %v1432
    %v1434 = vrot.slane %v1433, 2
    %v1435 = vadd.s32 %v1433, %v1434
    %v1436 = vrot.slane %v1435, 1
    %v1437 = vadd.s32 %v1435, %v1436
    %vm1438 = vcmp.ge.s32.totalorder %v1437, 513
    %v1439 = vor.u32 %v1416, 2097152
    %v1440 = vsel %vm1438, %v1416, %v1439
    %v1441 = vor.u32 %v1440, 1048575
    %vm1442 = vcmp.le.s32.totalorder %v1201, %v1441
    %v1443 = vsel %vm1442, 1, 0
    %v1444 = vand.u32 %v1443, 65535
    %v1445 = vshrl.u32 %v1443, 16
    %v1446 = vcvt.s32.f32 %v1444
    %v1447 = vcvt.s32.f32 %v1445
    %1448 = vadd.xlane.f32.xlu0 %v1446
    %v1449 = vpop.xlane.xlu0 %1448
    %1450 = vadd.xlane.f32.xlu0 %v1447
    %v1451 = vpop.xlane.xlu0 %1450
    %v1452 = vcvt.f32.s32 %v1449
    %v1453 = vcvt.f32.s32 %v1451
    %v1454 = vshll.u32 %v1453, 16
    %v1455 = vadd.s32 %v1454, %v1452
    %v1456 = vrot.slane %v1455, 4
    %v1457 = vadd.s32 %v1455, %v1456
    %v1458 = vrot.slane %v1457, 2
    %v1459 = vadd.s32 %v1457, %v1458
    %v1460 = vrot.slane %v1459, 1
    %v1461 = vadd.s32 %v1459, %v1460
    %vm1462 = vcmp.ge.s32.totalorder %v1461, 513
    %v1463 = vor.u32 %v1440, 1048576
    %v1464 = vsel %vm1462, %v1440, %v1463
    %v1465 = vor.u32 %v1464, 524287
    %vm1466 = vcmp.le.s32.totalorder %v1201, %v1465
    %v1467 = vsel %vm1466, 1, 0
    %v1468 = vand.u32 %v1467, 65535
    %v1469 = vshrl.u32 %v1467, 16
    %v1470 = vcvt.s32.f32 %v1468
    %v1471 = vcvt.s32.f32 %v1469
    %1472 = vadd.xlane.f32.xlu0 %v1470
    %v1473 = vpop.xlane.xlu0 %1472
    %1474 = vadd.xlane.f32.xlu0 %v1471
    %v1475 = vpop.xlane.xlu0 %1474
    %v1476 = vcvt.f32.s32 %v1473
    %v1477 = vcvt.f32.s32 %v1475
    %v1478 = vshll.u32 %v1477, 16
    %v1479 = vadd.s32 %v1478, %v1476
    %v1480 = vrot.slane %v1479, 4
    %v1481 = vadd.s32 %v1479, %v1480
    %v1482 = vrot.slane %v1481, 2
    %v1483 = vadd.s32 %v1481, %v1482
    %v1484 = vrot.slane %v1483, 1
    %v1485 = vadd.s32 %v1483, %v1484
    %vm1486 = vcmp.ge.s32.totalorder %v1485, 513
    %v1487 = vor.u32 %v1464, 524288
    %v1488 = vsel %vm1486, %v1464, %v1487
    %v1489 = vor.u32 %v1488, 262143
    %vm1490 = vcmp.le.s32.totalorder %v1201, %v1489
    %v1491 = vsel %vm1490, 1, 0
    %v1492 = vand.u32 %v1491, 65535
    %v1493 = vshrl.u32 %v1491, 16
    %v1494 = vcvt.s32.f32 %v1492
    %v1495 = vcvt.s32.f32 %v1493
    %1496 = vadd.xlane.f32.xlu0 %v1494
    %v1497 = vpop.xlane.xlu0 %1496
    %1498 = vadd.xlane.f32.xlu0 %v1495
    %v1499 = vpop.xlane.xlu0 %1498
    %v1500 = vcvt.f32.s32 %v1497
    %v1501 = vcvt.f32.s32 %v1499
    %v1502 = vshll.u32 %v1501, 16
    %v1503 = vadd.s32 %v1502, %v1500
    %v1504 = vrot.slane %v1503, 4
    %v1505 = vadd.s32 %v1503, %v1504
    %v1506 = vrot.slane %v1505, 2
    %v1507 = vadd.s32 %v1505, %v1506
    %v1508 = vrot.slane %v1507, 1
    %v1509 = vadd.s32 %v1507, %v1508
    %vm1510 = vcmp.ge.s32.totalorder %v1509, 513
    %v1511 = vor.u32 %v1488, 262144
    %v1512 = vsel %vm1510, %v1488, %v1511
    %v1513 = vor.u32 %v1512, 131071
    %vm1514 = vcmp.le.s32.totalorder %v1201, %v1513
    %v1515 = vsel %vm1514, 1, 0
    %v1516 = vand.u32 %v1515, 65535
    %v1517 = vshrl.u32 %v1515, 16
    %v1518 = vcvt.s32.f32 %v1516
    %v1519 = vcvt.s32.f32 %v1517
    %1520 = vadd.xlane.f32.xlu0 %v1518
    %v1521 = vpop.xlane.xlu0 %1520
    %1522 = vadd.xlane.f32.xlu0 %v1519
    %v1523 = vpop.xlane.xlu0 %1522
    %v1524 = vcvt.f32.s32 %v1521
    %v1525 = vcvt.f32.s32 %v1523
    %v1526 = vshll.u32 %v1525, 16
    %v1527 = vadd.s32 %v1526, %v1524
    %v1528 = vrot.slane %v1527, 4
    %v1529 = vadd.s32 %v1527, %v1528
    %v1530 = vrot.slane %v1529, 2
    %v1531 = vadd.s32 %v1529, %v1530
    %v1532 = vrot.slane %v1531, 1
    %v1533 = vadd.s32 %v1531, %v1532
    %vm1534 = vcmp.ge.s32.totalorder %v1533, 513
    %v1535 = vor.u32 %v1512, 131072
    %v1536 = vsel %vm1534, %v1512, %v1535
    %v1537 = vor.u32 %v1536, 65535
    %vm1538 = vcmp.le.s32.totalorder %v1201, %v1537
    %v1539 = vsel %vm1538, 1, 0
    %v1540 = vand.u32 %v1539, 65535
    %v1541 = vshrl.u32 %v1539, 16
    %v1542 = vcvt.s32.f32 %v1540
    %v1543 = vcvt.s32.f32 %v1541
    %1544 = vadd.xlane.f32.xlu0 %v1542
    %v1545 = vpop.xlane.xlu0 %1544
    %1546 = vadd.xlane.f32.xlu0 %v1543
    %v1547 = vpop.xlane.xlu0 %1546
    %v1548 = vcvt.f32.s32 %v1545
    %v1549 = vcvt.f32.s32 %v1547
    %v1550 = vshll.u32 %v1549, 16
    %v1551 = vadd.s32 %v1550, %v1548
    %v1552 = vrot.slane %v1551, 4
    %v1553 = vadd.s32 %v1551, %v1552
    %v1554 = vrot.slane %v1553, 2
    %v1555 = vadd.s32 %v1553, %v1554
    %v1556 = vrot.slane %v1555, 1
    %v1557 = vadd.s32 %v1555, %v1556
    %vm1558 = vcmp.ge.s32.totalorder %v1557, 513
    %v1559 = vor.u32 %v1536, 65536
    %v1560 = vsel %vm1558, %v1536, %v1559
    %v1561 = vor.u32 %v1560, 32767
    %vm1562 = vcmp.le.s32.totalorder %v1201, %v1561
    %v1563 = vsel %vm1562, 1, 0
    %v1564 = vand.u32 %v1563, 65535
    %v1565 = vshrl.u32 %v1563, 16
    %v1566 = vcvt.s32.f32 %v1564
    %v1567 = vcvt.s32.f32 %v1565
    %1568 = vadd.xlane.f32.xlu0 %v1566
    %v1569 = vpop.xlane.xlu0 %1568
    %1570 = vadd.xlane.f32.xlu0 %v1567
    %v1571 = vpop.xlane.xlu0 %1570
    %v1572 = vcvt.f32.s32 %v1569
    %v1573 = vcvt.f32.s32 %v1571
    %v1574 = vshll.u32 %v1573, 16
    %v1575 = vadd.s32 %v1574, %v1572
    %v1576 = vrot.slane %v1575, 4
    %v1577 = vadd.s32 %v1575, %v1576
    %v1578 = vrot.slane %v1577, 2
    %v1579 = vadd.s32 %v1577, %v1578
    %v1580 = vrot.slane %v1579, 1
    %v1581 = vadd.s32 %v1579, %v1580
    %vm1582 = vcmp.ge.s32.totalorder %v1581, 513
    %v1583 = vor.u32 %v1560, 32768
    %v1584 = vsel %vm1582, %v1560, %v1583
    %v1585 = vor.u32 %v1584, 16383
    %vm1586 = vcmp.le.s32.totalorder %v1201, %v1585
    %v1587 = vsel %vm1586, 1, 0
    %v1588 = vand.u32 %v1587, 65535
    %v1589 = vshrl.u32 %v1587, 16
    %v1590 = vcvt.s32.f32 %v1588
    %v1591 = vcvt.s32.f32 %v1589
    %1592 = vadd.xlane.f32.xlu0 %v1590
    %v1593 = vpop.xlane.xlu0 %1592
    %1594 = vadd.xlane.f32.xlu0 %v1591
    %v1595 = vpop.xlane.xlu0 %1594
    %v1596 = vcvt.f32.s32 %v1593
    %v1597 = vcvt.f32.s32 %v1595
    %v1598 = vshll.u32 %v1597, 16
    %v1599 = vadd.s32 %v1598, %v1596
    %v1600 = vrot.slane %v1599, 4
    %v1601 = vadd.s32 %v1599, %v1600
    %v1602 = vrot.slane %v1601, 2
    %v1603 = vadd.s32 %v1601, %v1602
    %v1604 = vrot.slane %v1603, 1
    %v1605 = vadd.s32 %v1603, %v1604
    %vm1606 = vcmp.ge.s32.totalorder %v1605, 513
    %v1607 = vor.u32 %v1584, 16384
    %v1608 = vsel %vm1606, %v1584, %v1607
    %v1609 = vor.u32 %v1608, 8191
    %vm1610 = vcmp.le.s32.totalorder %v1201, %v1609
    %v1611 = vsel %vm1610, 1, 0
    %v1612 = vand.u32 %v1611, 65535
    %v1613 = vshrl.u32 %v1611, 16
    %v1614 = vcvt.s32.f32 %v1612
    %v1615 = vcvt.s32.f32 %v1613
    %1616 = vadd.xlane.f32.xlu0 %v1614
    %v1617 = vpop.xlane.xlu0 %1616
    %1618 = vadd.xlane.f32.xlu0 %v1615
    %v1619 = vpop.xlane.xlu0 %1618
    %v1620 = vcvt.f32.s32 %v1617
    %v1621 = vcvt.f32.s32 %v1619
    %v1622 = vshll.u32 %v1621, 16
    %v1623 = vadd.s32 %v1622, %v1620
    %v1624 = vrot.slane %v1623, 4
    %v1625 = vadd.s32 %v1623, %v1624
    %v1626 = vrot.slane %v1625, 2
    %v1627 = vadd.s32 %v1625, %v1626
    %v1628 = vrot.slane %v1627, 1
    %v1629 = vadd.s32 %v1627, %v1628
    %vm1630 = vcmp.ge.s32.totalorder %v1629, 513
    %v1631 = vor.u32 %v1608, 8192
    %v1632 = vsel %vm1630, %v1608, %v1631
    %v1633 = vor.u32 %v1632, 4095
    %vm1634 = vcmp.le.s32.totalorder %v1201, %v1633
    %v1635 = vsel %vm1634, 1, 0
    %v1636 = vand.u32 %v1635, 65535
    %v1637 = vshrl.u32 %v1635, 16
    %v1638 = vcvt.s32.f32 %v1636
    %v1639 = vcvt.s32.f32 %v1637
    %1640 = vadd.xlane.f32.xlu0 %v1638
    %v1641 = vpop.xlane.xlu0 %1640
    %1642 = vadd.xlane.f32.xlu0 %v1639
    %v1643 = vpop.xlane.xlu0 %1642
    %v1644 = vcvt.f32.s32 %v1641
    %v1645 = vcvt.f32.s32 %v1643
    %v1646 = vshll.u32 %v1645, 16
    %v1647 = vadd.s32 %v1646, %v1644
    %v1648 = vrot.slane %v1647, 4
    %v1649 = vadd.s32 %v1647, %v1648
    %v1650 = vrot.slane %v1649, 2
    %v1651 = vadd.s32 %v1649, %v1650
    %v1652 = vrot.slane %v1651, 1
    %v1653 = vadd.s32 %v1651, %v1652
    %vm1654 = vcmp.ge.s32.totalorder %v1653, 513
    %v1655 = vor.u32 %v1632, 4096
    %v1656 = vsel %vm1654, %v1632, %v1655
    %v1657 = vor.u32 %v1656, 2047
    %vm1658 = vcmp.le.s32.totalorder %v1201, %v1657
    %v1659 = vsel %vm1658, 1, 0
    %v1660 = vand.u32 %v1659, 65535
    %v1661 = vshrl.u32 %v1659, 16
    %v1662 = vcvt.s32.f32 %v1660
    %v1663 = vcvt.s32.f32 %v1661
    %1664 = vadd.xlane.f32.xlu0 %v1662
    %v1665 = vpop.xlane.xlu0 %1664
    %1666 = vadd.xlane.f32.xlu0 %v1663
    %v1667 = vpop.xlane.xlu0 %1666
    %v1668 = vcvt.f32.s32 %v1665
    %v1669 = vcvt.f32.s32 %v1667
    %v1670 = vshll.u32 %v1669, 16
    %v1671 = vadd.s32 %v1670, %v1668
    %v1672 = vrot.slane %v1671, 4
    %v1673 = vadd.s32 %v1671, %v1672
    %v1674 = vrot.slane %v1673, 2
    %v1675 = vadd.s32 %v1673, %v1674
    %v1676 = vrot.slane %v1675, 1
    %v1677 = vadd.s32 %v1675, %v1676
    %vm1678 = vcmp.ge.s32.totalorder %v1677, 513
    %v1679 = vor.u32 %v1656, 2048
    %v1680 = vsel %vm1678, %v1656, %v1679
    %v1681 = vor.u32 %v1680, 1023
    %vm1682 = vcmp.le.s32.totalorder %v1201, %v1681
    %v1683 = vsel %vm1682, 1, 0
    %v1684 = vand.u32 %v1683, 65535
    %v1685 = vshrl.u32 %v1683, 16
    %v1686 = vcvt.s32.f32 %v1684
    %v1687 = vcvt.s32.f32 %v1685
    %1688 = vadd.xlane.f32.xlu0 %v1686
    %v1689 = vpop.xlane.xlu0 %1688
    %1690 = vadd.xlane.f32.xlu0 %v1687
    %v1691 = vpop.xlane.xlu0 %1690
    %v1692 = vcvt.f32.s32 %v1689
    %v1693 = vcvt.f32.s32 %v1691
    %v1694 = vshll.u32 %v1693, 16
    %v1695 = vadd.s32 %v1694, %v1692
    %v1696 = vrot.slane %v1695, 4
    %v1697 = vadd.s32 %v1695, %v1696
    %v1698 = vrot.slane %v1697, 2
    %v1699 = vadd.s32 %v1697, %v1698
    %v1700 = vrot.slane %v1699, 1
    %v1701 = vadd.s32 %v1699, %v1700
    %vm1702 = vcmp.ge.s32.totalorder %v1701, 513
    %v1703 = vor.u32 %v1680, 1024
    %v1704 = vsel %vm1702, %v1680, %v1703
    %v1705 = vor.u32 %v1704, 511
    %vm1706 = vcmp.le.s32.totalorder %v1201, %v1705
    %v1707 = vsel %vm1706, 1, 0
    %v1708 = vand.u32 %v1707, 65535
    %v1709 = vshrl.u32 %v1707, 16
    %v1710 = vcvt.s32.f32 %v1708
    %v1711 = vcvt.s32.f32 %v1709
    %1712 = vadd.xlane.f32.xlu0 %v1710
    %v1713 = vpop.xlane.xlu0 %1712
    %1714 = vadd.xlane.f32.xlu0 %v1711
    %v1715 = vpop.xlane.xlu0 %1714
    %v1716 = vcvt.f32.s32 %v1713
    %v1717 = vcvt.f32.s32 %v1715
    %v1718 = vshll.u32 %v1717, 16
    %v1719 = vadd.s32 %v1718, %v1716
    %v1720 = vrot.slane %v1719, 4
    %v1721 = vadd.s32 %v1719, %v1720
    %v1722 = vrot.slane %v1721, 2
    %v1723 = vadd.s32 %v1721, %v1722
    %v1724 = vrot.slane %v1723, 1
    %v1725 = vadd.s32 %v1723, %v1724
    %vm1726 = vcmp.ge.s32.totalorder %v1725, 513
    %v1727 = vor.u32 %v1704, 512
    %v1728 = vsel %vm1726, %v1704, %v1727
    %v1729 = vor.u32 %v1728, 255
    %vm1730 = vcmp.le.s32.totalorder %v1201, %v1729
    %v1731 = vsel %vm1730, 1, 0
    %v1732 = vand.u32 %v1731, 65535
    %v1733 = vshrl.u32 %v1731, 16
    %v1734 = vcvt.s32.f32 %v1732
    %v1735 = vcvt.s32.f32 %v1733
    %1736 = vadd.xlane.f32.xlu0 %v1734
    %v1737 = vpop.xlane.xlu0 %1736
    %1738 = vadd.xlane.f32.xlu0 %v1735
    %v1739 = vpop.xlane.xlu0 %1738
    %v1740 = vcvt.f32.s32 %v1737
    %v1741 = vcvt.f32.s32 %v1739
    %v1742 = vshll.u32 %v1741, 16
    %v1743 = vadd.s32 %v1742, %v1740
    %v1744 = vrot.slane %v1743, 4
    %v1745 = vadd.s32 %v1743, %v1744
    %v1746 = vrot.slane %v1745, 2
    %v1747 = vadd.s32 %v1745, %v1746
    %v1748 = vrot.slane %v1747, 1
    %v1749 = vadd.s32 %v1747, %v1748
    %vm1750 = vcmp.ge.s32.totalorder %v1749, 513
    %v1751 = vor.u32 %v1728, 256
    %v1752 = vsel %vm1750, %v1728, %v1751
    %v1753 = vor.u32 %v1752, 127
    %vm1754 = vcmp.le.s32.totalorder %v1201, %v1753
    %v1755 = vsel %vm1754, 1, 0
    %v1756 = vand.u32 %v1755, 65535
    %v1757 = vshrl.u32 %v1755, 16
    %v1758 = vcvt.s32.f32 %v1756
    %v1759 = vcvt.s32.f32 %v1757
    %1760 = vadd.xlane.f32.xlu0 %v1758
    %v1761 = vpop.xlane.xlu0 %1760
    %1762 = vadd.xlane.f32.xlu0 %v1759
    %v1763 = vpop.xlane.xlu0 %1762
    %v1764 = vcvt.f32.s32 %v1761
    %v1765 = vcvt.f32.s32 %v1763
    %v1766 = vshll.u32 %v1765, 16
    %v1767 = vadd.s32 %v1766, %v1764
    %v1768 = vrot.slane %v1767, 4
    %v1769 = vadd.s32 %v1767, %v1768
    %v1770 = vrot.slane %v1769, 2
    %v1771 = vadd.s32 %v1769, %v1770
    %v1772 = vrot.slane %v1771, 1
    %v1773 = vadd.s32 %v1771, %v1772
    %vm1774 = vcmp.ge.s32.totalorder %v1773, 513
    %v1775 = vor.u32 %v1752, 128
    %v1776 = vsel %vm1774, %v1752, %v1775
    %v1777 = vor.u32 %v1776, 63
    %vm1778 = vcmp.le.s32.totalorder %v1201, %v1777
    %v1779 = vsel %vm1778, 1, 0
    %v1780 = vand.u32 %v1779, 65535
    %v1781 = vshrl.u32 %v1779, 16
    %v1782 = vcvt.s32.f32 %v1780
    %v1783 = vcvt.s32.f32 %v1781
    %1784 = vadd.xlane.f32.xlu0 %v1782
    %v1785 = vpop.xlane.xlu0 %1784
    %1786 = vadd.xlane.f32.xlu0 %v1783
    %v1787 = vpop.xlane.xlu0 %1786
    %v1788 = vcvt.f32.s32 %v1785
    %v1789 = vcvt.f32.s32 %v1787
    %v1790 = vshll.u32 %v1789, 16
    %v1791 = vadd.s32 %v1790, %v1788
    %v1792 = vrot.slane %v1791, 4
    %v1793 = vadd.s32 %v1791, %v1792
    %v1794 = vrot.slane %v1793, 2
    %v1795 = vadd.s32 %v1793, %v1794
    %v1796 = vrot.slane %v1795, 1
    %v1797 = vadd.s32 %v1795, %v1796
    %vm1798 = vcmp.ge.s32.totalorder %v1797, 513
    %v1799 = vor.u32 %v1776, 64
    %v1800 = vsel %vm1798, %v1776, %v1799
    %v1801 = vor.u32 %v1800, 31
    %vm1802 = vcmp.le.s32.totalorder %v1201, %v1801
    %v1803 = vsel %vm1802, 1, 0
    %v1804 = vand.u32 %v1803, 65535
    %v1805 = vshrl.u32 %v1803, 16
    %v1806 = vcvt.s32.f32 %v1804
    %v1807 = vcvt.s32.f32 %v1805
    %1808 = vadd.xlane.f32.xlu0 %v1806
    %v1809 = vpop.xlane.xlu0 %1808
    %1810 = vadd.xlane.f32.xlu0 %v1807
    %v1811 = vpop.xlane.xlu0 %1810
    %v1812 = vcvt.f32.s32 %v1809
    %v1813 = vcvt.f32.s32 %v1811
    %v1814 = vshll.u32 %v1813, 16
    %v1815 = vadd.s32 %v1814, %v1812
    %v1816 = vrot.slane %v1815, 4
    %v1817 = vadd.s32 %v1815, %v1816
    %v1818 = vrot.slane %v1817, 2
    %v1819 = vadd.s32 %v1817, %v1818
    %v1820 = vrot.slane %v1819, 1
    %v1821 = vadd.s32 %v1819, %v1820
    %vm1822 = vcmp.ge.s32.totalorder %v1821, 513
    %v1823 = vor.u32 %v1800, 32
    %v1824 = vsel %vm1822, %v1800, %v1823
    %v1825 = vor.u32 %v1824, 15
    %vm1826 = vcmp.le.s32.totalorder %v1201, %v1825
    %v1827 = vsel %vm1826, 1, 0
    %v1828 = vand.u32 %v1827, 65535
    %v1829 = vshrl.u32 %v1827, 16
    %v1830 = vcvt.s32.f32 %v1828
    %v1831 = vcvt.s32.f32 %v1829
    %1832 = vadd.xlane.f32.xlu0 %v1830
    %v1833 = vpop.xlane.xlu0 %1832
    %1834 = vadd.xlane.f32.xlu0 %v1831
    %v1835 = vpop.xlane.xlu0 %1834
    %v1836 = vcvt.f32.s32 %v1833
    %v1837 = vcvt.f32.s32 %v1835
    %v1838 = vshll.u32 %v1837, 16
    %v1839 = vadd.s32 %v1838, %v1836
    %v1840 = vrot.slane %v1839, 4
    %v1841 = vadd.s32 %v1839, %v1840
    %v1842 = vrot.slane %v1841, 2
    %v1843 = vadd.s32 %v1841, %v1842
    %v1844 = vrot.slane %v1843, 1
    %v1845 = vadd.s32 %v1843, %v1844
    %vm1846 = vcmp.ge.s32.totalorder %v1845, 513
    %v1847 = vor.u32 %v1824, 16
    %v1848 = vsel %vm1846, %v1824, %v1847
    %v1849 = vor.u32 %v1848, 7
    %vm1850 = vcmp.le.s32.totalorder %v1201, %v1849
    %v1851 = vsel %vm1850, 1, 0
    %v1852 = vand.u32 %v1851, 65535
    %v1853 = vshrl.u32 %v1851, 16
    %v1854 = vcvt.s32.f32 %v1852
    %v1855 = vcvt.s32.f32 %v1853
    %1856 = vadd.xlane.f32.xlu0 %v1854
    %v1857 = vpop.xlane.xlu0 %1856
    %1858 = vadd.xlane.f32.xlu0 %v1855
    %v1859 = vpop.xlane.xlu0 %1858
    %v1860 = vcvt.f32.s32 %v1857
    %v1861 = vcvt.f32.s32 %v1859
    %v1862 = vshll.u32 %v1861, 16
    %v1863 = vadd.s32 %v1862, %v1860
    %v1864 = vrot.slane %v1863, 4
    %v1865 = vadd.s32 %v1863, %v1864
    %v1866 = vrot.slane %v1865, 2
    %v1867 = vadd.s32 %v1865, %v1866
    %v1868 = vrot.slane %v1867, 1
    %v1869 = vadd.s32 %v1867, %v1868
    %vm1870 = vcmp.ge.s32.totalorder %v1869, 513
    %v1871 = vor.u32 %v1848, 8
    %v1872 = vsel %vm1870, %v1848, %v1871
    %v1873 = vor.u32 %v1872, 3
    %vm1874 = vcmp.le.s32.totalorder %v1201, %v1873
    %v1875 = vsel %vm1874, 1, 0
    %v1876 = vand.u32 %v1875, 65535
    %v1877 = vshrl.u32 %v1875, 16
    %v1878 = vcvt.s32.f32 %v1876
    %v1879 = vcvt.s32.f32 %v1877
    %1880 = vadd.xlane.f32.xlu0 %v1878
    %v1881 = vpop.xlane.xlu0 %1880
    %1882 = vadd.xlane.f32.xlu0 %v1879
    %v1883 = vpop.xlane.xlu0 %1882
    %v1884 = vcvt.f32.s32 %v1881
    %v1885 = vcvt.f32.s32 %v1883
    %v1886 = vshll.u32 %v1885, 16
    %v1887 = vadd.s32 %v1886, %v1884
    %v1888 = vrot.slane %v1887, 4
    %v1889 = vadd.s32 %v1887, %v1888
    %v1890 = vrot.slane %v1889, 2
    %v1891 = vadd.s32 %v1889, %v1890
    %v1892 = vrot.slane %v1891, 1
    %v1893 = vadd.s32 %v1891, %v1892
    %vm1894 = vcmp.ge.s32.totalorder %v1893, 513
    %v1895 = vor.u32 %v1872, 4
    %v1896 = vsel %vm1894, %v1872, %v1895
    %v1897 = vor.u32 %v1896, 1
    %vm1898 = vcmp.le.s32.totalorder %v1201, %v1897
    %v1899 = vsel %vm1898, 1, 0
    %v1900 = vand.u32 %v1899, 65535
    %v1901 = vshrl.u32 %v1899, 16
    %v1902 = vcvt.s32.f32 %v1900
    %v1903 = vcvt.s32.f32 %v1901
    %1904 = vadd.xlane.f32.xlu0 %v1902
    %v1905 = vpop.xlane.xlu0 %1904
    %1906 = vadd.xlane.f32.xlu0 %v1903
    %v1907 = vpop.xlane.xlu0 %1906
    %v1908 = vcvt.f32.s32 %v1905
    %v1909 = vcvt.f32.s32 %v1907
    %v1910 = vshll.u32 %v1909, 16
    %v1911 = vadd.s32 %v1910, %v1908
    %v1912 = vrot.slane %v1911, 4
    %v1913 = vadd.s32 %v1911, %v1912
    %v1914 = vrot.slane %v1913, 2
    %v1915 = vadd.s32 %v1913, %v1914
    %v1916 = vrot.slane %v1915, 1
    %v1917 = vadd.s32 %v1915, %v1916
    %vm1918 = vcmp.ge.s32.totalorder %v1917, 513
    %v1919 = vor.u32 %v1896, 2
    %v1920 = vsel %vm1918, %v1896, %v1919
    %vm1921 = vcmp.le.s32.totalorder %v1201, %v1920
    %v1922 = vsel %vm1921, 1, 0
    %v1923 = vand.u32 %v1922, 65535
    %v1924 = vshrl.u32 %v1922, 16
    %v1925 = vcvt.s32.f32 %v1923
    %v1926 = vcvt.s32.f32 %v1924
    %1927 = vadd.xlane.f32.xlu0 %v1925
    %v1928 = vpop.xlane.xlu0 %1927
    %1929 = vadd.xlane.f32.xlu0 %v1926
    %v1930 = vpop.xlane.xlu0 %1929
    %v1931 = vcvt.f32.s32 %v1928
    %v1932 = vcvt.f32.s32 %v1930
    %v1933 = vshll.u32 %v1932, 16
    %v1934 = vadd.s32 %v1933, %v1931
    %v1935 = vrot.slane %v1934, 4
    %v1936 = vadd.s32 %v1934, %v1935
    %v1937 = vrot.slane %v1936, 2
    %v1938 = vadd.s32 %v1936, %v1937
    %v1939 = vrot.slane %v1938, 1
    %v1940 = vadd.s32 %v1938, %v1939
    %vm1941 = vcmp.ge.s32.totalorder %v1940, 513
    %v1942 = vor.u32 %v1920, 1
    %v1943 = vsel %vm1941, %v1920, %v1942
    %vm1944 = vcmp.ge.s32.totalorder %v1201, %v1943
    %v1945 = vsel %vm1944, %v1200, 0.0
    %v1946 = vpack.c.bf16 %v1945, %v1945
    %v1947 = vld [vmem:[%s5] sm:$0xf]
    %v1948 = vld [vmem:[%s5 + $0x4] sm:$0xf]
    %v1949 = vld [vmem:[%s5 + $0x8] sm:$0xf]
    %v1950 = vld [vmem:[%s5 + $0xc] sm:$0xf]
    %v1951 = vld [vmem:[%s5 + $0x10] sm:$0xf]
    %v1952 = vld [vmem:[%s5 + $0x14] sm:$0xf]
    %v1953 = vld [vmem:[%s5 + $0x18] sm:$0xf]
    %v1954 = vld [vmem:[%s5 + $0x1c] sm:$0xf]
    %v1955 = vld [vmem:[%s5 + $0x20] sm:$0xf]
    %v1956 = vld [vmem:[%s5 + $0x24] sm:$0xf]
    %v1957 = vld [vmem:[%s5 + $0x28] sm:$0xf]
    %v1958 = vld [vmem:[%s5 + $0x2c] sm:$0xf]
    %v1959 = vld [vmem:[%s5 + $0x30] sm:$0xf]
    %v1960 = vld [vmem:[%s5 + $0x34] sm:$0xf]
    %v1961 = vld [vmem:[%s5 + $0x38] sm:$0xf]
    %v1962 = vld [vmem:[%s5 + $0x3c] sm:$0xf]
    %v1963 = vld [vmem:[%s6] sm:$0x1]
    %v1965 = vlaneseq
    %v1966 = vshrl.u32 %v1965, 7
    %v1967 = vsub.s32 0, %v1966
    %v1968 = vrot.slane %v1963, %v1967
    %v1986 = vunpack.c.l.b16 %v1947
    %v1987 = vunpack.c.l.b16 %v1948
    %v1988 = vunpack.c.l.b16 %v1949
    %v1989 = vunpack.c.l.b16 %v1950
    %v1990 = vunpack.c.l.b16 %v1951
    %v1991 = vunpack.c.l.b16 %v1952
    %v1992 = vunpack.c.l.b16 %v1953
    %v1993 = vunpack.c.l.b16 %v1954
    %v1994 = vunpack.c.l.b16 %v1955
    %v1995 = vunpack.c.l.b16 %v1956
    %v1996 = vunpack.c.l.b16 %v1957
    %v1997 = vunpack.c.l.b16 %v1958
    %v1998 = vunpack.c.l.b16 %v1959
    %v1999 = vunpack.c.l.b16 %v1960
    %v2000 = vunpack.c.l.b16 %v1961
    %v2001 = vunpack.c.l.b16 %v1962
    %v2002 = vpack.c.b16 %v1987, %v1986
    %v2003 = vpack.c.b16 %v1989, %v1988
    %v2004 = vpack.c.b16 %v1991, %v1990
    %v2005 = vpack.c.b16 %v1993, %v1992
    %v2006 = vpack.c.b16 %v1995, %v1994
    %v2007 = vpack.c.b16 %v1997, %v1996
    %v2008 = vpack.c.b16 %v1999, %v1998
    %v2009 = vpack.c.b16 %v2001, %v2000
    %2018 = vmatprep.subr.bf16.mxu0 0
    %2019 = vmatpush1.bf16.msra.mxu0 %v2009
    %2020 = vmatprep.subr.bf16.mxu0 0
    %2021 = vmatpush1.bf16.msra.mxu0 %v2008
    %2022 = vmatprep.subr.bf16.mxu0 0
    %2023 = vmatpush1.bf16.msra.mxu0 %v2007
    %2024 = vmatprep.subr.bf16.mxu0 0
    %2025 = vmatpush1.bf16.msra.mxu0 %v2006
    %2026 = vmatprep.subr.bf16.mxu0 0
    %2027 = vmatpush1.bf16.msra.mxu0 %v2005
    %2028 = vmatprep.subr.bf16.mxu0 0
    %2029 = vmatpush1.bf16.msra.mxu0 %v2004
    %2030 = vmatprep.subr.bf16.mxu0 0
    %2031 = vmatpush1.bf16.msra.mxu0 %v2003
    %2032 = vmatprep.subr.bf16.mxu0 0
    %2033 = vmatpush1.bf16.msra.mxu0 %v2002
    %2034 = vmatprep.subr.bf16.mxu0 0
    %2035 = vmatpush2.bf16.msra.mxu0 0
    %2036 = vmatprep.subr.bf16.mxu0 0
    %2037 = vmatpush2.bf16.msra.mxu0 0
    %2038 = vmatprep.subr.bf16.mxu0 0
    %2039 = vmatpush2.bf16.msra.mxu0 0
    %2040 = vmatprep.subr.bf16.mxu0 0
    %2041 = vmatpush2.bf16.msra.mxu0 0
    %2042 = vmatprep.subr.bf16.mxu0 0
    %2043 = vmatpush2.bf16.msra.mxu0 0
    %2044 = vmatprep.subr.bf16.mxu0 0
    %2045 = vmatpush2.bf16.msra.mxu0 0
    %2046 = vmatprep.subr.bf16.mxu0 0
    %2047 = vmatpush2.bf16.msra.mxu0 0
    %2048 = vmatprep.subr.bf16.mxu0 0
    %2049 = vmatpush2.bf16.msra.mxu0 0
    %2050 = vmatprep.mubr.bf16.mxu0 0
    %2051 = vmatmul.mubr.bf16.gmra.mxu0 %v1946
    %v2052 = vpop.f32.mrf.mxu0
    %v2053 = vadd.f32 %v1968, %v2052
    %v2054 = vpop.f32.mrf.mxu0
    %v2055 = vpop.f32.mrf.mxu0
    %v2056 = vpop.f32.mrf.mxu0
    %2057 = vdwg.mxu0
    %2058 = vst [vmem:[#allocation2] sm:$0xff] %v2053
    // Predicated region
    $region30: #{graph_embedding_forward.1} parent=1 // pred_check
      _
    $region31: #{graph_embedding_forward.1} parent=1 // pred_check_branch
      %2060 = sbr.rel (0) target = $region33
    $region32: #{graph_embedding_forward.1} parent=1 // pred_region
      %s2062 = ssub.s32 128, 128
      %2063 = vsyncadd [#allocation3], %s2062
      %s2065 = sshll.u32 [#allocation2], 4
      %s2066 = int_to_ptr.vmem [resolvable:$true] %s2065
      %2068 = dma.vmem_to_hbm [thread:$0]  %s2066, 128, %s7, [#allocation3]
    $region33: #{graph_embedding_forward.1} parent=1 // pred_fallthru
      _
    // Predicated region
    $region34: #{graph_embedding_forward.1} parent=1 // pred_check
      _
    $region35: #{graph_embedding_forward.1} parent=1 // pred_check_branch
      %2070 = sbr.rel (0) target = $region37
    $region36: #{graph_embedding_forward.1} parent=1 // pred_region
      %2071 = dma.done [#allocation3], 128
    $region37: #{graph_embedding_forward.1} parent=1 // pred_fallthru
      _
    %2072 = vsyncpa [#allocation3], 1

</llo_original>
